<compile_context>
chip_gen: v5e
topology: v5e:2x2
jax: 0.10.0
libtpu: 0.0.40
codegen_flags: <defaults>
</compile_context>

<pallas_src>
import math

import numpy as np

import jax
import jax.numpy as jnp
from jax.experimental import pallas as pl
from jax.experimental.pallas import tpu as pltpu


# ------------------------------ Pallas kernel -------------------------------

def _fused_forward_kernel(
    x_ref,
    r1, bd1, cb1, cs1, rs1,
    r2, bd2, cb2, cs2, rs2,
    r3, bd3, cb3, cs3, rs3,
    w1, b1, w2, b2, w3, b3, w4, b4, w5, b5,
    o_ref,
):
    f32 = jnp.float32

    def conv_pool(xp, r_ref, bd_ref, bias_ref, cs_ref, rs_ref):
        # xp: (H, (W+2)*Cin) f32, w-padded activation.
        acc = None
        for kh in range(3):
            # row shift (handles the h-padding): (H,H) @ (H, Wp*Cin)
            shifted = jnp.dot(r_ref[kh].astype(f32), xp,
                              preferred_element_type=f32)
            # banded block-diagonal conv tap: (H, Wp*Cin) @ (Wp*Cin, W*Cout)
            part = jnp.dot(shifted, bd_ref[kh].astype(f32),
                           preferred_element_type=f32)
            acc = part if acc is None else acc + part
        act = jnp.maximum(acc + bias_ref[...], 0.0)                 # bias + ReLU
        # 2x2 max-pool, fused: column-selection gathers (even/odd w), then
        # row-selection gathers (even/odd h).  The column selectors also write
        # the zero w-padding of the next layer's layout.
        pooled_w = jnp.maximum(
            jnp.dot(act, cs_ref[0].astype(f32), preferred_element_type=f32),
            jnp.dot(act, cs_ref[1].astype(f32), preferred_element_type=f32))
        return jnp.maximum(
            jnp.dot(rs_ref[0].astype(f32), pooled_w, preferred_element_type=f32),
            jnp.dot(rs_ref[1].astype(f32), pooled_w, preferred_element_type=f32))

    h = x_ref[0]                                      # (32, 102) f32
    h = conv_pool(h, r1, bd1, cb1, cs1, rs1)          # (16, 108)
    h = conv_pool(h, r2, bd2, cb2, cs2, rs2)          # (8, 120)
    h = conv_pool(h, r3, bd3, cb3, cs3, rs3)          # (4, 96)   (unpadded)

    # fc1: the PyTorch NCHW flatten is folded into the permuted weight W1p,
    # so fc1 is a 4-term accumulation over the rows of the (4, 96) feature map.
    z = b1[...]
    for hh in range(4):
        z = z + jnp.dot(h[hh:hh + 1, :], w1[hh].astype(f32),
                        preferred_element_type=f32)
    z = jnp.maximum(z, 0.0)
    for w_ref, b_ref in ((w2, b2), (w3, b3), (w4, b4)):
        z = jnp.maximum(
            jnp.dot(z, w_ref[...].astype(f32), preferred_element_type=f32)
            + b_ref[...], 0.0)
    logits = jnp.dot(z, w5[...].astype(f32), preferred_element_type=f32) + b5[...]

    # softmax(dim=1), numerically stable
    m = jnp.max(logits, axis=1, keepdims=True)
    e = jnp.exp(logits - m)
    probs = e / jnp.sum(e, axis=1, keepdims=True)
    o_ref[0] = probs.astype(o_ref.dtype)


# ------------------------------ host wrappers --------------------------------

_CONV_SHAPES = [(32, 3, 6), (16, 6, 12), (8, 12, 24)]   # (W=H, Cin, Cout)


def _const_spec(shape):
    n = len(shape)
    return pl.BlockSpec(shape, lambda i, _n=n: (0,) * _n)


def pack_input(x_nchw):
    """NCHW image -> (B, H, (W+2)*C) w-padded, channel-minor layout."""
    B, C, H, W = x_nchw.shape
    x = jnp.transpose(x_nchw, (0, 2, 3, 1))                 # NHWC
    x = jnp.pad(x, ((0, 0), (0, 0), (1, 1), (0, 0)))        # pad w by 1
    return x.reshape(B, H, (W + 2) * C)


def pack_params(raw, weight_dtype=jnp.bfloat16):
    """Repack raw PyTorch-layout parameters into the kernel's matrices."""
    convs = []
    for idx, ((wc, bc), (W, Cin, Cout)) in enumerate(zip(raw["convs"], _CONV_SHAPES)):
        wc = np.asarray(wc, np.float32)
        bc = np.asarray(bc, np.float32)
        H = W
        Wp = W + 2
        # banded block matrices: one per row-tap kh
        bd = np.zeros((3, Wp * Cin, W * Cout), np.float32)
        for kh in range(3):
            for w in range(W):
                for kw in range(3):
                    wp = w + kw
                    bd[kh, wp * Cin:(wp + 1) * Cin,
                           w * Cout:(w + 1) * Cout] = wc[:, :, kh, kw].T
        # row-shift matrices (implement the h padding of the 3x3 conv)
        R = np.zeros((3, H, H), np.float32)
        for kh in range(3):
            for h in range(H):
                hp = h + kh - 1
                if 0 <= hp < H:
                    R[kh, h, hp] = 1.0
        # 2x2 max-pool selectors
        last = (idx == len(_CONV_SHAPES) - 1)
        W2, H2 = W // 2, H // 2
        T = W2 if last else W2 + 2          # last layer: no w-padding needed
        off = 0 if last else 1
        CS = np.zeros((2, W * Cout, T * Cout), np.float32)
        for par in range(2):
            for w2 in range(W2):
                src = 2 * w2 + par
                for c in range(Cout):
                    CS[par, src * Cout + c, (w2 + off) * Cout + c] = 1.0
        RS = np.zeros((2, H2, H), np.float32)
        for par in range(2):
            for h2 in range(H2):
                RS[par, h2, 2 * h2 + par] = 1.0
        convs.append(dict(
            R=jnp.asarray(R, weight_dtype),
            BD=jnp.asarray(bd, weight_dtype),
            bias=jnp.asarray(np.tile(bc, W).reshape(1, W * Cout), jnp.float32),
            CS=jnp.asarray(CS, weight_dtype),
            RS=jnp.asarray(RS, weight_dtype),
        ))

    fcs = []
    w1, b1 = raw["fcs"][0]
    w1 = np.asarray(w1, np.float32)
    # fold PyTorch's NCHW flatten (f = c*16 + h*4 + w) into fc1's weight rows
    W1p = np.zeros((4, 96, 330), np.float32)
    for hh in range(4):
        for ww in range(4):
            for c in range(24):
                W1p[hh, ww * 24 + c, :] = w1[:, c * 16 + hh * 4 + ww]
    fcs.append((jnp.asarray(W1p, weight_dtype),
                jnp.asarray(np.asarray(b1, np.float32).reshape(1, -1), jnp.float32)))
    for w, b in raw["fcs"][1:]:
        fcs.append((jnp.asarray(np.asarray(w, np.float32).T, weight_dtype),
                    jnp.asarray(np.asarray(b, np.float32).reshape(1, -1), jnp.float32)))

    return {"convs": convs, "fcs": fcs}


def forward(x_nchw, params):
    """Exact forward-pass semantics of Method_CNN_CIFAR.forward."""
    B = x_nchw.shape[0]
    xp = pack_input(x_nchw)                                  # (B, 32, 102)

    args, specs = [xp], [pl.BlockSpec((1,) + xp.shape[1:], lambda i: (i, 0, 0))]
    for c in params["convs"]:
        for name in ("R", "BD", "bias", "CS", "RS"):
            a = c[name]
            args.append(a)
            specs.append(_const_spec(a.shape))
    for w, b in params["fcs"]:
        args += [w, b]
        specs += [_const_spec(w.shape), _const_spec(b.shape)]

    out = pl.pallas_call(
        _fused_forward_kernel,
        out_shape=jax.ShapeDtypeStruct((B, 1, 10), jnp.float32),
        grid=(B,),
        in_specs=specs,
        out_specs=pl.BlockSpec((1, 1, 10), lambda i: (i, 0, 0)),
        compiler_params=pltpu.CompilerParams(dimension_semantics=("parallel",)),
    )(*args)
    return out.reshape(B, 10)


# ------------------------- params & pure-JAX reference -----------------------

def init_raw_params(key, scale=2.0):
    """Synthetic parameters with the PyTorch module's shapes.

    `scale` enlarges the default uniform(+-1/sqrt(fan_in)) init so the softmax
    output is peaked enough for the self-check below to distinguish structural
    errors from low-precision (bf16) matmul noise.
    """
    keys = jax.random.split(key, 16)

    def u(k, shape, fan_in):
        bound = scale / math.sqrt(fan_in)
        return jax.random.uniform(k, shape, jnp.float32, -bound, bound)

    ki = 0
    convs = []
    for cin, cout in [(3, 6), (6, 12), (12, 24)]:
        w = u(keys[ki], (cout, cin, 3, 3), cin * 9); ki += 1    # (Cout,Cin,3,3)
        b = u(keys[ki], (cout,), cin * 9); ki += 1
        convs.append((w, b))
    fcs = []
    for fin, fout in [(24 * 4 * 4, 330), (330, 250), (250, 100), (100, 50), (50, 10)]:
        w = u(keys[ki], (fout, fin), fin); ki += 1              # (out, in)
        b = u(keys[ki], (fout,), fin); ki += 1
        fcs.append((w, b))
    return {"convs": convs, "fcs": fcs}


def reference_forward(x_nchw, raw):
    """Pure-JAX mirror of the PyTorch module (f32, high-precision)."""
    h = x_nchw
    for w, b in raw["convs"]:
        h = jax.lax.conv_general_dilated(
            h, w, window_strides=(1, 1), padding=((1, 1), (1, 1)),
            dimension_numbers=("NCHW", "OIHW", "NCHW"),
            precision=jax.lax.Precision.HIGHEST)
        h = jnp.maximum(h + b[None, :, None, None], 0.0)
        h = jax.lax.reduce_window(h, -jnp.inf, jax.lax.max,
                                  (1, 1, 2, 2), (1, 1, 2, 2), "VALID")
    h = h.reshape(h.shape[0], -1)                              # NCHW flatten
    n = len(raw["fcs"])
    for i, (w, b) in enumerate(raw["fcs"]):
        h = jnp.dot(h, w.T, precision=jax.lax.Precision.HIGHEST) + b
        if i < n - 1:
            h = jnp.maximum(h, 0.0)
    return jax.nn.softmax(h, axis=1)


# ---------------------------------- main -------------------------------------

if __name__ == "__main__":
    key = jax.random.PRNGKey(0)
    kx, kp = jax.random.split(key)
    raw = init_raw_params(kp)
    params = pack_params(raw, jnp.bfloat16)   # bf16 weights, f32 accumulation
    # CIFAR-shaped input (32x32 so the flatten is exactly 24*4*4)
    x = jax.random.normal(kx, (2, 3, 32, 32), dtype=jnp.float32)

    y = jax.block_until_ready(jax.jit(forward)(x, params))
    y_ref = jax.block_until_ready(jax.jit(reference_forward)(x, raw))

    assert y.shape == (2, 10), y.shape
    assert bool(jnp.all(jnp.isfinite(y)))
    assert bool(jnp.allclose(jnp.sum(y, axis=1), 1.0, atol=1e-4))
    # Loose tolerance covers bf16 weights + MXU matmul precision; structural
    # errors (wrong conv packing / flatten permutation / pooling) are far larger.
    err = float(jnp.max(jnp.abs(y - y_ref)))
    assert err < 8e-2, f"max |kernel - reference| = {err}"
    print("KERNEL_OK")
</pallas_src>

<mosaic_0001>
module attributes {stable_mosaic.version = 11 : i64} {
  func.func @_fused_forward_kernel(%arg0: i32, %arg1: memref<1x32x102xf32, #tpu.memory_space<vmem>>, %arg2: memref<3x32x32xbf16, #tpu.memory_space<vmem>>, %arg3: memref<3x102x192xbf16, #tpu.memory_space<vmem>>, %arg4: memref<1x192xf32, #tpu.memory_space<vmem>>, %arg5: memref<2x192x108xbf16, #tpu.memory_space<vmem>>, %arg6: memref<2x16x32xbf16, #tpu.memory_space<vmem>>, %arg7: memref<3x16x16xbf16, #tpu.memory_space<vmem>>, %arg8: memref<3x108x192xbf16, #tpu.memory_space<vmem>>, %arg9: memref<1x192xf32, #tpu.memory_space<vmem>>, %arg10: memref<2x192x120xbf16, #tpu.memory_space<vmem>>, %arg11: memref<2x8x16xbf16, #tpu.memory_space<vmem>>, %arg12: memref<3x8x8xbf16, #tpu.memory_space<vmem>>, %arg13: memref<3x120x192xbf16, #tpu.memory_space<vmem>>, %arg14: memref<1x192xf32, #tpu.memory_space<vmem>>, %arg15: memref<2x192x96xbf16, #tpu.memory_space<vmem>>, %arg16: memref<2x4x8xbf16, #tpu.memory_space<vmem>>, %arg17: memref<4x96x330xbf16, #tpu.memory_space<vmem>>, %arg18: memref<1x330xf32, #tpu.memory_space<vmem>>, %arg19: memref<330x250xbf16, #tpu.memory_space<vmem>>, %arg20: memref<1x250xf32, #tpu.memory_space<vmem>>, %arg21: memref<250x100xbf16, #tpu.memory_space<vmem>>, %arg22: memref<1x100xf32, #tpu.memory_space<vmem>>, %arg23: memref<100x50xbf16, #tpu.memory_space<vmem>>, %arg24: memref<1x50xf32, #tpu.memory_space<vmem>>, %arg25: memref<50x10xbf16, #tpu.memory_space<vmem>>, %arg26: memref<1x10xf32, #tpu.memory_space<vmem>>, %arg27: memref<1x1x10xf32, #tpu.memory_space<vmem>>) attributes {dimension_semantics = [#tpu.dimension_semantics<parallel>], iteration_bounds = array<i64: 2>, scalar_prefetch = 0 : i64, scratch_operands = 0 : i64, tpu.core_type = #tpu.core_type<tc>, window_params = [{transform_indices = @transform_0, window_bounds = array<i64: 1, 32, 102>}, {pipeline_mode = #tpu.pipeline_mode<synchronous>, transform_indices = @transform_1, window_bounds = array<i64: 3, 32, 32>}, {pipeline_mode = #tpu.pipeline_mode<synchronous>, transform_indices = @transform_2, window_bounds = array<i64: 3, 102, 192>}, {pipeline_mode = #tpu.pipeline_mode<synchronous>, transform_indices = @transform_3, window_bounds = array<i64: 1, 192>}, {pipeline_mode = #tpu.pipeline_mode<synchronous>, transform_indices = @transform_4, window_bounds = array<i64: 2, 192, 108>}, {pipeline_mode = #tpu.pipeline_mode<synchronous>, transform_indices = @transform_5, window_bounds = array<i64: 2, 16, 32>}, {pipeline_mode = #tpu.pipeline_mode<synchronous>, transform_indices = @transform_6, window_bounds = array<i64: 3, 16, 16>}, {pipeline_mode = #tpu.pipeline_mode<synchronous>, transform_indices = @transform_7, window_bounds = array<i64: 3, 108, 192>}, {pipeline_mode = #tpu.pipeline_mode<synchronous>, transform_indices = @transform_8, window_bounds = array<i64: 1, 192>}, {pipeline_mode = #tpu.pipeline_mode<synchronous>, transform_indices = @transform_9, window_bounds = array<i64: 2, 192, 120>}, {pipeline_mode = #tpu.pipeline_mode<synchronous>, transform_indices = @transform_10, window_bounds = array<i64: 2, 8, 16>}, {pipeline_mode = #tpu.pipeline_mode<synchronous>, transform_indices = @transform_11, window_bounds = array<i64: 3, 8, 8>}, {pipeline_mode = #tpu.pipeline_mode<synchronous>, transform_indices = @transform_12, window_bounds = array<i64: 3, 120, 192>}, {pipeline_mode = #tpu.pipeline_mode<synchronous>, transform_indices = @transform_13, window_bounds = array<i64: 1, 192>}, {pipeline_mode = #tpu.pipeline_mode<synchronous>, transform_indices = @transform_14, window_bounds = array<i64: 2, 192, 96>}, {pipeline_mode = #tpu.pipeline_mode<synchronous>, transform_indices = @transform_15, window_bounds = array<i64: 2, 4, 8>}, {pipeline_mode = #tpu.pipeline_mode<synchronous>, transform_indices = @transform_16, window_bounds = array<i64: 4, 96, 330>}, {pipeline_mode = #tpu.pipeline_mode<synchronous>, transform_indices = @transform_17, window_bounds = array<i64: 1, 330>}, {pipeline_mode = #tpu.pipeline_mode<synchronous>, transform_indices = @transform_18, window_bounds = array<i64: 330, 250>}, {pipeline_mode = #tpu.pipeline_mode<synchronous>, transform_indices = @transform_19, window_bounds = array<i64: 1, 250>}, {pipeline_mode = #tpu.pipeline_mode<synchronous>, transform_indices = @transform_20, window_bounds = array<i64: 250, 100>}, {pipeline_mode = #tpu.pipeline_mode<synchronous>, transform_indices = @transform_21, window_bounds = array<i64: 1, 100>}, {pipeline_mode = #tpu.pipeline_mode<synchronous>, transform_indices = @transform_22, window_bounds = array<i64: 100, 50>}, {pipeline_mode = #tpu.pipeline_mode<synchronous>, transform_indices = @transform_23, window_bounds = array<i64: 1, 50>}, {pipeline_mode = #tpu.pipeline_mode<synchronous>, transform_indices = @transform_24, window_bounds = array<i64: 50, 10>}, {pipeline_mode = #tpu.pipeline_mode<synchronous>, transform_indices = @transform_25, window_bounds = array<i64: 1, 10>}, {transform_indices = @transform_26, window_bounds = array<i64: 1, 1, 10>}]} {
    %c0 = arith.constant 0 : index
    %c0_0 = arith.constant 0 : index
    %c0_1 = arith.constant 0 : index
    %0 = vector.load %arg1[%c0, %c0_0, %c0_1] : memref<1x32x102xf32, #tpu.memory_space<vmem>>, vector<1x32x102xf32>
    %1 = vector.shape_cast %0 : vector<1x32x102xf32> to vector<32x102xf32>
    %c0_2 = arith.constant 0 : index
    %c0_3 = arith.constant 0 : index
    %c0_4 = arith.constant 0 : index
    %2 = vector.load %arg2[%c0_2, %c0_3, %c0_4] : memref<3x32x32xbf16, #tpu.memory_space<vmem>>, vector<1x32x32xbf16>
    %3 = vector.shape_cast %2 : vector<1x32x32xbf16> to vector<32x32xbf16>
    %4 = arith.extf %3 : vector<32x32xbf16> to vector<32x32xf32>
    %cst = arith.constant dense<0.000000e+00> : vector<32x102xf32>
    %5 = tpu.matmul %4, %1, %cst {dimension_numbers = #tpu.dot_dimension_numbers<[1], [0], [0], [1], [0, 0, 1, 1], [], []>} : vector<32x32xf32>, vector<32x102xf32>, vector<32x102xf32> -> vector<32x102xf32>
    %c0_5 = arith.constant 0 : index
    %c0_6 = arith.constant 0 : index
    %c0_7 = arith.constant 0 : index
    %6 = vector.load %arg3[%c0_5, %c0_6, %c0_7] : memref<3x102x192xbf16, #tpu.memory_space<vmem>>, vector<1x102x192xbf16>
    %7 = vector.shape_cast %6 : vector<1x102x192xbf16> to vector<102x192xbf16>
    %8 = arith.extf %7 : vector<102x192xbf16> to vector<102x192xf32>
    %cst_8 = arith.constant dense<0.000000e+00> : vector<32x192xf32>
    %9 = tpu.matmul %5, %8, %cst_8 {dimension_numbers = #tpu.dot_dimension_numbers<[1], [0], [0], [1], [0, 0, 1, 1], [], []>} : vector<32x102xf32>, vector<102x192xf32>, vector<32x192xf32> -> vector<32x192xf32>
    %c1 = arith.constant 1 : index
    %c0_9 = arith.constant 0 : index
    %c0_10 = arith.constant 0 : index
    %10 = vector.load %arg2[%c1, %c0_9, %c0_10] : memref<3x32x32xbf16, #tpu.memory_space<vmem>>, vector<1x32x32xbf16>
    %11 = vector.shape_cast %10 : vector<1x32x32xbf16> to vector<32x32xbf16>
    %12 = arith.extf %11 : vector<32x32xbf16> to vector<32x32xf32>
    %cst_11 = arith.constant dense<0.000000e+00> : vector<32x102xf32>
    %13 = tpu.matmul %12, %1, %cst_11 {dimension_numbers = #tpu.dot_dimension_numbers<[1], [0], [0], [1], [0, 0, 1, 1], [], []>} : vector<32x32xf32>, vector<32x102xf32>, vector<32x102xf32> -> vector<32x102xf32>
    %c1_12 = arith.constant 1 : index
    %c0_13 = arith.constant 0 : index
    %c0_14 = arith.constant 0 : index
    %14 = vector.load %arg3[%c1_12, %c0_13, %c0_14] : memref<3x102x192xbf16, #tpu.memory_space<vmem>>, vector<1x102x192xbf16>
    %15 = vector.shape_cast %14 : vector<1x102x192xbf16> to vector<102x192xbf16>
    %16 = arith.extf %15 : vector<102x192xbf16> to vector<102x192xf32>
    %cst_15 = arith.constant dense<0.000000e+00> : vector<32x192xf32>
    %17 = tpu.matmul %13, %16, %cst_15 {dimension_numbers = #tpu.dot_dimension_numbers<[1], [0], [0], [1], [0, 0, 1, 1], [], []>} : vector<32x102xf32>, vector<102x192xf32>, vector<32x192xf32> -> vector<32x192xf32>
    %18 = arith.addf %9, %17 : vector<32x192xf32>
    %c2 = arith.constant 2 : index
    %c0_16 = arith.constant 0 : index
    %c0_17 = arith.constant 0 : index
    %19 = vector.load %arg2[%c2, %c0_16, %c0_17] : memref<3x32x32xbf16, #tpu.memory_space<vmem>>, vector<1x32x32xbf16>
    %20 = vector.shape_cast %19 : vector<1x32x32xbf16> to vector<32x32xbf16>
    %21 = arith.extf %20 : vector<32x32xbf16> to vector<32x32xf32>
    %cst_18 = arith.constant dense<0.000000e+00> : vector<32x102xf32>
    %22 = tpu.matmul %21, %1, %cst_18 {dimension_numbers = #tpu.dot_dimension_numbers<[1], [0], [0], [1], [0, 0, 1, 1], [], []>} : vector<32x32xf32>, vector<32x102xf32>, vector<32x102xf32> -> vector<32x102xf32>
    %c2_19 = arith.constant 2 : index
    %c0_20 = arith.constant 0 : index
    %c0_21 = arith.constant 0 : index
    %23 = vector.load %arg3[%c2_19, %c0_20, %c0_21] : memref<3x102x192xbf16, #tpu.memory_space<vmem>>, vector<1x102x192xbf16>
    %24 = vector.shape_cast %23 : vector<1x102x192xbf16> to vector<102x192xbf16>
    %25 = arith.extf %24 : vector<102x192xbf16> to vector<102x192xf32>
    %cst_22 = arith.constant dense<0.000000e+00> : vector<32x192xf32>
    %26 = tpu.matmul %22, %25, %cst_22 {dimension_numbers = #tpu.dot_dimension_numbers<[1], [0], [0], [1], [0, 0, 1, 1], [], []>} : vector<32x102xf32>, vector<102x192xf32>, vector<32x192xf32> -> vector<32x192xf32>
    %27 = arith.addf %18, %26 : vector<32x192xf32>
    %c0_23 = arith.constant 0 : index
    %c0_24 = arith.constant 0 : index
    %28 = vector.load %arg4[%c0_23, %c0_24] : memref<1x192xf32, #tpu.memory_space<vmem>>, vector<1x192xf32>
    %29 = vector.broadcast %28 : vector<1x192xf32> to vector<32x192xf32>
    %30 = arith.addf %27, %29 : vector<32x192xf32>
    %cst_25 = arith.constant 0.000000e+00 : f32
    %31 = vector.broadcast %cst_25 : f32 to vector<32x192xf32>
    %32 = arith.maximumf %30, %31 : vector<32x192xf32>
    %c0_26 = arith.constant 0 : index
    %c0_27 = arith.constant 0 : index
    %c0_28 = arith.constant 0 : index
    %33 = vector.load %arg5[%c0_26, %c0_27, %c0_28] : memref<2x192x108xbf16, #tpu.memory_space<vmem>>, vector<1x192x108xbf16>
    %34 = vector.shape_cast %33 : vector<1x192x108xbf16> to vector<192x108xbf16>
    %35 = arith.extf %34 : vector<192x108xbf16> to vector<192x108xf32>
    %cst_29 = arith.constant dense<0.000000e+00> : vector<32x108xf32>
    %36 = tpu.matmul %32, %35, %cst_29 {dimension_numbers = #tpu.dot_dimension_numbers<[1], [0], [0], [1], [0, 0, 1, 1], [], []>} : vector<32x192xf32>, vector<192x108xf32>, vector<32x108xf32> -> vector<32x108xf32>
    %c1_30 = arith.constant 1 : index
    %c0_31 = arith.constant 0 : index
    %c0_32 = arith.constant 0 : index
    %37 = vector.load %arg5[%c1_30, %c0_31, %c0_32] : memref<2x192x108xbf16, #tpu.memory_space<vmem>>, vector<1x192x108xbf16>
    %38 = vector.shape_cast %37 : vector<1x192x108xbf16> to vector<192x108xbf16>
    %39 = arith.extf %38 : vector<192x108xbf16> to vector<192x108xf32>
    %cst_33 = arith.constant dense<0.000000e+00> : vector<32x108xf32>
    %40 = tpu.matmul %32, %39, %cst_33 {dimension_numbers = #tpu.dot_dimension_numbers<[1], [0], [0], [1], [0, 0, 1, 1], [], []>} : vector<32x192xf32>, vector<192x108xf32>, vector<32x108xf32> -> vector<32x108xf32>
    %41 = arith.maximumf %36, %40 : vector<32x108xf32>
    %c0_34 = arith.constant 0 : index
    %c0_35 = arith.constant 0 : index
    %c0_36 = arith.constant 0 : index
    %42 = vector.load %arg6[%c0_34, %c0_35, %c0_36] : memref<2x16x32xbf16, #tpu.memory_space<vmem>>, vector<1x16x32xbf16>
    %43 = vector.shape_cast %42 : vector<1x16x32xbf16> to vector<16x32xbf16>
    %44 = arith.extf %43 : vector<16x32xbf16> to vector<16x32xf32>
    %cst_37 = arith.constant dense<0.000000e+00> : vector<16x108xf32>
    %45 = tpu.matmul %44, %41, %cst_37 {dimension_numbers = #tpu.dot_dimension_numbers<[1], [0], [0], [1], [0, 0, 1, 1], [], []>} : vector<16x32xf32>, vector<32x108xf32>, vector<16x108xf32> -> vector<16x108xf32>
    %c1_38 = arith.constant 1 : index
    %c0_39 = arith.constant 0 : index
    %c0_40 = arith.constant 0 : index
    %46 = vector.load %arg6[%c1_38, %c0_39, %c0_40] : memref<2x16x32xbf16, #tpu.memory_space<vmem>>, vector<1x16x32xbf16>
    %47 = vector.shape_cast %46 : vector<1x16x32xbf16> to vector<16x32xbf16>
    %48 = arith.extf %47 : vector<16x32xbf16> to vector<16x32xf32>
    %cst_41 = arith.constant dense<0.000000e+00> : vector<16x108xf32>
    %49 = tpu.matmul %48, %41, %cst_41 {dimension_numbers = #tpu.dot_dimension_numbers<[1], [0], [0], [1], [0, 0, 1, 1], [], []>} : vector<16x32xf32>, vector<32x108xf32>, vector<16x108xf32> -> vector<16x108xf32>
    %50 = arith.maximumf %45, %49 : vector<16x108xf32>
    %c0_42 = arith.constant 0 : index
    %c0_43 = arith.constant 0 : index
    %c0_44 = arith.constant 0 : index
    %51 = vector.load %arg7[%c0_42, %c0_43, %c0_44] : memref<3x16x16xbf16, #tpu.memory_space<vmem>>, vector<1x16x16xbf16>
    %52 = vector.shape_cast %51 : vector<1x16x16xbf16> to vector<16x16xbf16>
    %53 = arith.extf %52 : vector<16x16xbf16> to vector<16x16xf32>
    %cst_45 = arith.constant dense<0.000000e+00> : vector<16x108xf32>
    %54 = tpu.matmul %53, %50, %cst_45 {dimension_numbers = #tpu.dot_dimension_numbers<[1], [0], [0], [1], [0, 0, 1, 1], [], []>} : vector<16x16xf32>, vector<16x108xf32>, vector<16x108xf32> -> vector<16x108xf32>
    %c0_46 = arith.constant 0 : index
    %c0_47 = arith.constant 0 : index
    %c0_48 = arith.constant 0 : index
    %55 = vector.load %arg8[%c0_46, %c0_47, %c0_48] : memref<3x108x192xbf16, #tpu.memory_space<vmem>>, vector<1x108x192xbf16>
    %56 = vector.shape_cast %55 : vector<1x108x192xbf16> to vector<108x192xbf16>
    %57 = arith.extf %56 : vector<108x192xbf16> to vector<108x192xf32>
    %cst_49 = arith.constant dense<0.000000e+00> : vector<16x192xf32>
    %58 = tpu.matmul %54, %57, %cst_49 {dimension_numbers = #tpu.dot_dimension_numbers<[1], [0], [0], [1], [0, 0, 1, 1], [], []>} : vector<16x108xf32>, vector<108x192xf32>, vector<16x192xf32> -> vector<16x192xf32>
    %c1_50 = arith.constant 1 : index
    %c0_51 = arith.constant 0 : index
    %c0_52 = arith.constant 0 : index
    %59 = vector.load %arg7[%c1_50, %c0_51, %c0_52] : memref<3x16x16xbf16, #tpu.memory_space<vmem>>, vector<1x16x16xbf16>
    %60 = vector.shape_cast %59 : vector<1x16x16xbf16> to vector<16x16xbf16>
    %61 = arith.extf %60 : vector<16x16xbf16> to vector<16x16xf32>
    %cst_53 = arith.constant dense<0.000000e+00> : vector<16x108xf32>
    %62 = tpu.matmul %61, %50, %cst_53 {dimension_numbers = #tpu.dot_dimension_numbers<[1], [0], [0], [1], [0, 0, 1, 1], [], []>} : vector<16x16xf32>, vector<16x108xf32>, vector<16x108xf32> -> vector<16x108xf32>
    %c1_54 = arith.constant 1 : index
    %c0_55 = arith.constant 0 : index
    %c0_56 = arith.constant 0 : index
    %63 = vector.load %arg8[%c1_54, %c0_55, %c0_56] : memref<3x108x192xbf16, #tpu.memory_space<vmem>>, vector<1x108x192xbf16>
    %64 = vector.shape_cast %63 : vector<1x108x192xbf16> to vector<108x192xbf16>
    %65 = arith.extf %64 : vector<108x192xbf16> to vector<108x192xf32>
    %cst_57 = arith.constant dense<0.000000e+00> : vector<16x192xf32>
    %66 = tpu.matmul %62, %65, %cst_57 {dimension_numbers = #tpu.dot_dimension_numbers<[1], [0], [0], [1], [0, 0, 1, 1], [], []>} : vector<16x108xf32>, vector<108x192xf32>, vector<16x192xf32> -> vector<16x192xf32>
    %67 = arith.addf %58, %66 : vector<16x192xf32>
    %c2_58 = arith.constant 2 : index
    %c0_59 = arith.constant 0 : index
    %c0_60 = arith.constant 0 : index
    %68 = vector.load %arg7[%c2_58, %c0_59, %c0_60] : memref<3x16x16xbf16, #tpu.memory_space<vmem>>, vector<1x16x16xbf16>
    %69 = vector.shape_cast %68 : vector<1x16x16xbf16> to vector<16x16xbf16>
    %70 = arith.extf %69 : vector<16x16xbf16> to vector<16x16xf32>
    %cst_61 = arith.constant dense<0.000000e+00> : vector<16x108xf32>
    %71 = tpu.matmul %70, %50, %cst_61 {dimension_numbers = #tpu.dot_dimension_numbers<[1], [0], [0], [1], [0, 0, 1, 1], [], []>} : vector<16x16xf32>, vector<16x108xf32>, vector<16x108xf32> -> vector<16x108xf32>
    %c2_62 = arith.constant 2 : index
    %c0_63 = arith.constant 0 : index
    %c0_64 = arith.constant 0 : index
    %72 = vector.load %arg8[%c2_62, %c0_63, %c0_64] : memref<3x108x192xbf16, #tpu.memory_space<vmem>>, vector<1x108x192xbf16>
    %73 = vector.shape_cast %72 : vector<1x108x192xbf16> to vector<108x192xbf16>
    %74 = arith.extf %73 : vector<108x192xbf16> to vector<108x192xf32>
    %cst_65 = arith.constant dense<0.000000e+00> : vector<16x192xf32>
    %75 = tpu.matmul %71, %74, %cst_65 {dimension_numbers = #tpu.dot_dimension_numbers<[1], [0], [0], [1], [0, 0, 1, 1], [], []>} : vector<16x108xf32>, vector<108x192xf32>, vector<16x192xf32> -> vector<16x192xf32>
    %76 = arith.addf %67, %75 : vector<16x192xf32>
    %c0_66 = arith.constant 0 : index
    %c0_67 = arith.constant 0 : index
    %77 = vector.load %arg9[%c0_66, %c0_67] : memref<1x192xf32, #tpu.memory_space<vmem>>, vector<1x192xf32>
    %78 = vector.broadcast %77 : vector<1x192xf32> to vector<16x192xf32>
    %79 = arith.addf %76, %78 : vector<16x192xf32>
    %cst_68 = arith.constant 0.000000e+00 : f32
    %80 = vector.broadcast %cst_68 : f32 to vector<16x192xf32>
    %81 = arith.maximumf %79, %80 : vector<16x192xf32>
    %c0_69 = arith.constant 0 : index
    %c0_70 = arith.constant 0 : index
    %c0_71 = arith.constant 0 : index
    %82 = vector.load %arg10[%c0_69, %c0_70, %c0_71] : memref<2x192x120xbf16, #tpu.memory_space<vmem>>, vector<1x192x120xbf16>
    %83 = vector.shape_cast %82 : vector<1x192x120xbf16> to vector<192x120xbf16>
    %84 = arith.extf %83 : vector<192x120xbf16> to vector<192x120xf32>
    %cst_72 = arith.constant dense<0.000000e+00> : vector<16x120xf32>
    %85 = tpu.matmul %81, %84, %cst_72 {dimension_numbers = #tpu.dot_dimension_numbers<[1], [0], [0], [1], [0, 0, 1, 1], [], []>} : vector<16x192xf32>, vector<192x120xf32>, vector<16x120xf32> -> vector<16x120xf32>
    %c1_73 = arith.constant 1 : index
    %c0_74 = arith.constant 0 : index
    %c0_75 = arith.constant 0 : index
    %86 = vector.load %arg10[%c1_73, %c0_74, %c0_75] : memref<2x192x120xbf16, #tpu.memory_space<vmem>>, vector<1x192x120xbf16>
    %87 = vector.shape_cast %86 : vector<1x192x120xbf16> to vector<192x120xbf16>
    %88 = arith.extf %87 : vector<192x120xbf16> to vector<192x120xf32>
    %cst_76 = arith.constant dense<0.000000e+00> : vector<16x120xf32>
    %89 = tpu.matmul %81, %88, %cst_76 {dimension_numbers = #tpu.dot_dimension_numbers<[1], [0], [0], [1], [0, 0, 1, 1], [], []>} : vector<16x192xf32>, vector<192x120xf32>, vector<16x120xf32> -> vector<16x120xf32>
    %90 = arith.maximumf %85, %89 : vector<16x120xf32>
    %c0_77 = arith.constant 0 : index
    %c0_78 = arith.constant 0 : index
    %c0_79 = arith.constant 0 : index
    %91 = vector.load %arg11[%c0_77, %c0_78, %c0_79] : memref<2x8x16xbf16, #tpu.memory_space<vmem>>, vector<1x8x16xbf16>
    %92 = vector.shape_cast %91 : vector<1x8x16xbf16> to vector<8x16xbf16>
    %93 = arith.extf %92 : vector<8x16xbf16> to vector<8x16xf32>
    %cst_80 = arith.constant dense<0.000000e+00> : vector<8x120xf32>
    %94 = tpu.matmul %93, %90, %cst_80 {dimension_numbers = #tpu.dot_dimension_numbers<[1], [0], [0], [1], [0, 0, 1, 1], [], []>} : vector<8x16xf32>, vector<16x120xf32>, vector<8x120xf32> -> vector<8x120xf32>
    %c1_81 = arith.constant 1 : index
    %c0_82 = arith.constant 0 : index
    %c0_83 = arith.constant 0 : index
    %95 = vector.load %arg11[%c1_81, %c0_82, %c0_83] : memref<2x8x16xbf16, #tpu.memory_space<vmem>>, vector<1x8x16xbf16>
    %96 = vector.shape_cast %95 : vector<1x8x16xbf16> to vector<8x16xbf16>
    %97 = arith.extf %96 : vector<8x16xbf16> to vector<8x16xf32>
    %cst_84 = arith.constant dense<0.000000e+00> : vector<8x120xf32>
    %98 = tpu.matmul %97, %90, %cst_84 {dimension_numbers = #tpu.dot_dimension_numbers<[1], [0], [0], [1], [0, 0, 1, 1], [], []>} : vector<8x16xf32>, vector<16x120xf32>, vector<8x120xf32> -> vector<8x120xf32>
    %99 = arith.maximumf %94, %98 : vector<8x120xf32>
    %c0_85 = arith.constant 0 : index
    %c0_86 = arith.constant 0 : index
    %c0_87 = arith.constant 0 : index
    %100 = vector.load %arg12[%c0_85, %c0_86, %c0_87] : memref<3x8x8xbf16, #tpu.memory_space<vmem>>, vector<1x8x8xbf16>
    %101 = vector.shape_cast %100 : vector<1x8x8xbf16> to vector<8x8xbf16>
    %102 = arith.extf %101 : vector<8x8xbf16> to vector<8x8xf32>
    %cst_88 = arith.constant dense<0.000000e+00> : vector<8x120xf32>
    %103 = tpu.matmul %102, %99, %cst_88 {dimension_numbers = #tpu.dot_dimension_numbers<[1], [0], [0], [1], [0, 0, 1, 1], [], []>} : vector<8x8xf32>, vector<8x120xf32>, vector<8x120xf32> -> vector<8x120xf32>
    %c0_89 = arith.constant 0 : index
    %c0_90 = arith.constant 0 : index
    %c0_91 = arith.constant 0 : index
    %104 = vector.load %arg13[%c0_89, %c0_90, %c0_91] : memref<3x120x192xbf16, #tpu.memory_space<vmem>>, vector<1x120x192xbf16>
    %105 = vector.shape_cast %104 : vector<1x120x192xbf16> to vector<120x192xbf16>
    %106 = arith.extf %105 : vector<120x192xbf16> to vector<120x192xf32>
    %cst_92 = arith.constant dense<0.000000e+00> : vector<8x192xf32>
    %107 = tpu.matmul %103, %106, %cst_92 {dimension_numbers = #tpu.dot_dimension_numbers<[1], [0], [0], [1], [0, 0, 1, 1], [], []>} : vector<8x120xf32>, vector<120x192xf32>, vector<8x192xf32> -> vector<8x192xf32>
    %c1_93 = arith.constant 1 : index
    %c0_94 = arith.constant 0 : index
    %c0_95 = arith.constant 0 : index
    %108 = vector.load %arg12[%c1_93, %c0_94, %c0_95] : memref<3x8x8xbf16, #tpu.memory_space<vmem>>, vector<1x8x8xbf16>
    %109 = vector.shape_cast %108 : vector<1x8x8xbf16> to vector<8x8xbf16>
    %110 = arith.extf %109 : vector<8x8xbf16> to vector<8x8xf32>
    %cst_96 = arith.constant dense<0.000000e+00> : vector<8x120xf32>
    %111 = tpu.matmul %110, %99, %cst_96 {dimension_numbers = #tpu.dot_dimension_numbers<[1], [0], [0], [1], [0, 0, 1, 1], [], []>} : vector<8x8xf32>, vector<8x120xf32>, vector<8x120xf32> -> vector<8x120xf32>
    %c1_97 = arith.constant 1 : index
    %c0_98 = arith.constant 0 : index
    %c0_99 = arith.constant 0 : index
    %112 = vector.load %arg13[%c1_97, %c0_98, %c0_99] : memref<3x120x192xbf16, #tpu.memory_space<vmem>>, vector<1x120x192xbf16>
    %113 = vector.shape_cast %112 : vector<1x120x192xbf16> to vector<120x192xbf16>
    %114 = arith.extf %113 : vector<120x192xbf16> to vector<120x192xf32>
    %cst_100 = arith.constant dense<0.000000e+00> : vector<8x192xf32>
    %115 = tpu.matmul %111, %114, %cst_100 {dimension_numbers = #tpu.dot_dimension_numbers<[1], [0], [0], [1], [0, 0, 1, 1], [], []>} : vector<8x120xf32>, vector<120x192xf32>, vector<8x192xf32> -> vector<8x192xf32>
    %116 = arith.addf %107, %115 : vector<8x192xf32>
    %c2_101 = arith.constant 2 : index
    %c0_102 = arith.constant 0 : index
    %c0_103 = arith.constant 0 : index
    %117 = vector.load %arg12[%c2_101, %c0_102, %c0_103] : memref<3x8x8xbf16, #tpu.memory_space<vmem>>, vector<1x8x8xbf16>
    %118 = vector.shape_cast %117 : vector<1x8x8xbf16> to vector<8x8xbf16>
    %119 = arith.extf %118 : vector<8x8xbf16> to vector<8x8xf32>
    %cst_104 = arith.constant dense<0.000000e+00> : vector<8x120xf32>
    %120 = tpu.matmul %119, %99, %cst_104 {dimension_numbers = #tpu.dot_dimension_numbers<[1], [0], [0], [1], [0, 0, 1, 1], [], []>} : vector<8x8xf32>, vector<8x120xf32>, vector<8x120xf32> -> vector<8x120xf32>
    %c2_105 = arith.constant 2 : index
    %c0_106 = arith.constant 0 : index
    %c0_107 = arith.constant 0 : index
    %121 = vector.load %arg13[%c2_105, %c0_106, %c0_107] : memref<3x120x192xbf16, #tpu.memory_space<vmem>>, vector<1x120x192xbf16>
    %122 = vector.shape_cast %121 : vector<1x120x192xbf16> to vector<120x192xbf16>
    %123 = arith.extf %122 : vector<120x192xbf16> to vector<120x192xf32>
    %cst_108 = arith.constant dense<0.000000e+00> : vector<8x192xf32>
    %124 = tpu.matmul %120, %123, %cst_108 {dimension_numbers = #tpu.dot_dimension_numbers<[1], [0], [0], [1], [0, 0, 1, 1], [], []>} : vector<8x120xf32>, vector<120x192xf32>, vector<8x192xf32> -> vector<8x192xf32>
    %125 = arith.addf %116, %124 : vector<8x192xf32>
    %c0_109 = arith.constant 0 : index
    %c0_110 = arith.constant 0 : index
    %126 = vector.load %arg14[%c0_109, %c0_110] : memref<1x192xf32, #tpu.memory_space<vmem>>, vector<1x192xf32>
    %127 = vector.broadcast %126 : vector<1x192xf32> to vector<8x192xf32>
    %128 = arith.addf %125, %127 : vector<8x192xf32>
    %cst_111 = arith.constant 0.000000e+00 : f32
    %129 = vector.broadcast %cst_111 : f32 to vector<8x192xf32>
    %130 = arith.maximumf %128, %129 : vector<8x192xf32>
    %c0_112 = arith.constant 0 : index
    %c0_113 = arith.constant 0 : index
    %c0_114 = arith.constant 0 : index
    %131 = vector.load %arg15[%c0_112, %c0_113, %c0_114] : memref<2x192x96xbf16, #tpu.memory_space<vmem>>, vector<1x192x96xbf16>
    %132 = vector.shape_cast %131 : vector<1x192x96xbf16> to vector<192x96xbf16>
    %133 = arith.extf %132 : vector<192x96xbf16> to vector<192x96xf32>
    %cst_115 = arith.constant dense<0.000000e+00> : vector<8x96xf32>
    %134 = tpu.matmul %130, %133, %cst_115 {dimension_numbers = #tpu.dot_dimension_numbers<[1], [0], [0], [1], [0, 0, 1, 1], [], []>} : vector<8x192xf32>, vector<192x96xf32>, vector<8x96xf32> -> vector<8x96xf32>
    %c1_116 = arith.constant 1 : index
    %c0_117 = arith.constant 0 : index
    %c0_118 = arith.constant 0 : index
    %135 = vector.load %arg15[%c1_116, %c0_117, %c0_118] : memref<2x192x96xbf16, #tpu.memory_space<vmem>>, vector<1x192x96xbf16>
    %136 = vector.shape_cast %135 : vector<1x192x96xbf16> to vector<192x96xbf16>
    %137 = arith.extf %136 : vector<192x96xbf16> to vector<192x96xf32>
    %cst_119 = arith.constant dense<0.000000e+00> : vector<8x96xf32>
    %138 = tpu.matmul %130, %137, %cst_119 {dimension_numbers = #tpu.dot_dimension_numbers<[1], [0], [0], [1], [0, 0, 1, 1], [], []>} : vector<8x192xf32>, vector<192x96xf32>, vector<8x96xf32> -> vector<8x96xf32>
    %139 = arith.maximumf %134, %138 : vector<8x96xf32>
    %c0_120 = arith.constant 0 : index
    %c0_121 = arith.constant 0 : index
    %c0_122 = arith.constant 0 : index
    %140 = vector.load %arg16[%c0_120, %c0_121, %c0_122] : memref<2x4x8xbf16, #tpu.memory_space<vmem>>, vector<1x4x8xbf16>
    %141 = vector.shape_cast %140 : vector<1x4x8xbf16> to vector<4x8xbf16>
    %142 = arith.extf %141 : vector<4x8xbf16> to vector<4x8xf32>
    %cst_123 = arith.constant dense<0.000000e+00> : vector<4x96xf32>
    %143 = tpu.matmul %142, %139, %cst_123 {dimension_numbers = #tpu.dot_dimension_numbers<[1], [0], [0], [1], [0, 0, 1, 1], [], []>} : vector<4x8xf32>, vector<8x96xf32>, vector<4x96xf32> -> vector<4x96xf32>
    %c1_124 = arith.constant 1 : index
    %c0_125 = arith.constant 0 : index
    %c0_126 = arith.constant 0 : index
    %144 = vector.load %arg16[%c1_124, %c0_125, %c0_126] : memref<2x4x8xbf16, #tpu.memory_space<vmem>>, vector<1x4x8xbf16>
    %145 = vector.shape_cast %144 : vector<1x4x8xbf16> to vector<4x8xbf16>
    %146 = arith.extf %145 : vector<4x8xbf16> to vector<4x8xf32>
    %cst_127 = arith.constant dense<0.000000e+00> : vector<4x96xf32>
    %147 = tpu.matmul %146, %139, %cst_127 {dimension_numbers = #tpu.dot_dimension_numbers<[1], [0], [0], [1], [0, 0, 1, 1], [], []>} : vector<4x8xf32>, vector<8x96xf32>, vector<4x96xf32> -> vector<4x96xf32>
    %148 = arith.maximumf %143, %147 : vector<4x96xf32>
    %c0_128 = arith.constant 0 : index
    %c0_129 = arith.constant 0 : index
    %149 = vector.load %arg18[%c0_128, %c0_129] : memref<1x330xf32, #tpu.memory_space<vmem>>, vector<1x330xf32>
    %150 = vector.extract_strided_slice %148 {offsets = [0, 0], sizes = [1, 96], strides = [1, 1]} : vector<4x96xf32> to vector<1x96xf32>
    %c0_130 = arith.constant 0 : index
    %c0_131 = arith.constant 0 : index
    %c0_132 = arith.constant 0 : index
    %151 = vector.load %arg17[%c0_130, %c0_131, %c0_132] : memref<4x96x330xbf16, #tpu.memory_space<vmem>>, vector<1x96x330xbf16>
    %152 = vector.shape_cast %151 : vector<1x96x330xbf16> to vector<96x330xbf16>
    %153 = arith.extf %152 : vector<96x330xbf16> to vector<96x330xf32>
    %cst_133 = arith.constant dense<0.000000e+00> : vector<1x330xf32>
    %154 = tpu.matmul %150, %153, %cst_133 {dimension_numbers = #tpu.dot_dimension_numbers<[1], [0], [0], [1], [0, 0, 1, 1], [], []>} : vector<1x96xf32>, vector<96x330xf32>, vector<1x330xf32> -> vector<1x330xf32>
    %155 = arith.addf %149, %154 : vector<1x330xf32>
    %156 = vector.extract_strided_slice %148 {offsets = [1, 0], sizes = [1, 96], strides = [1, 1]} : vector<4x96xf32> to vector<1x96xf32>
    %c1_134 = arith.constant 1 : index
    %c0_135 = arith.constant 0 : index
    %c0_136 = arith.constant 0 : index
    %157 = vector.load %arg17[%c1_134, %c0_135, %c0_136] : memref<4x96x330xbf16, #tpu.memory_space<vmem>>, vector<1x96x330xbf16>
    %158 = vector.shape_cast %157 : vector<1x96x330xbf16> to vector<96x330xbf16>
    %159 = arith.extf %158 : vector<96x330xbf16> to vector<96x330xf32>
    %cst_137 = arith.constant dense<0.000000e+00> : vector<1x330xf32>
    %160 = tpu.matmul %156, %159, %cst_137 {dimension_numbers = #tpu.dot_dimension_numbers<[1], [0], [0], [1], [0, 0, 1, 1], [], []>} : vector<1x96xf32>, vector<96x330xf32>, vector<1x330xf32> -> vector<1x330xf32>
    %161 = arith.addf %155, %160 : vector<1x330xf32>
    %162 = vector.extract_strided_slice %148 {offsets = [2, 0], sizes = [1, 96], strides = [1, 1]} : vector<4x96xf32> to vector<1x96xf32>
    %c2_138 = arith.constant 2 : index
    %c0_139 = arith.constant 0 : index
    %c0_140 = arith.constant 0 : index
    %163 = vector.load %arg17[%c2_138, %c0_139, %c0_140] : memref<4x96x330xbf16, #tpu.memory_space<vmem>>, vector<1x96x330xbf16>
    %164 = vector.shape_cast %163 : vector<1x96x330xbf16> to vector<96x330xbf16>
    %165 = arith.extf %164 : vector<96x330xbf16> to vector<96x330xf32>
    %cst_141 = arith.constant dense<0.000000e+00> : vector<1x330xf32>
    %166 = tpu.matmul %162, %165, %cst_141 {dimension_numbers = #tpu.dot_dimension_numbers<[1], [0], [0], [1], [0, 0, 1, 1], [], []>} : vector<1x96xf32>, vector<96x330xf32>, vector<1x330xf32> -> vector<1x330xf32>
    %167 = arith.addf %161, %166 : vector<1x330xf32>
    %168 = vector.extract_strided_slice %148 {offsets = [3, 0], sizes = [1, 96], strides = [1, 1]} : vector<4x96xf32> to vector<1x96xf32>
    %c3 = arith.constant 3 : index
    %c0_142 = arith.constant 0 : index
    %c0_143 = arith.constant 0 : index
    %169 = vector.load %arg17[%c3, %c0_142, %c0_143] : memref<4x96x330xbf16, #tpu.memory_space<vmem>>, vector<1x96x330xbf16>
    %170 = vector.shape_cast %169 : vector<1x96x330xbf16> to vector<96x330xbf16>
    %171 = arith.extf %170 : vector<96x330xbf16> to vector<96x330xf32>
    %cst_144 = arith.constant dense<0.000000e+00> : vector<1x330xf32>
    %172 = tpu.matmul %168, %171, %cst_144 {dimension_numbers = #tpu.dot_dimension_numbers<[1], [0], [0], [1], [0, 0, 1, 1], [], []>} : vector<1x96xf32>, vector<96x330xf32>, vector<1x330xf32> -> vector<1x330xf32>
    %173 = arith.addf %167, %172 : vector<1x330xf32>
    %cst_145 = arith.constant 0.000000e+00 : f32
    %174 = vector.broadcast %cst_145 : f32 to vector<1x330xf32>
    %175 = arith.maximumf %173, %174 : vector<1x330xf32>
    %c0_146 = arith.constant 0 : index
    %c0_147 = arith.constant 0 : index
    %176 = vector.load %arg19[%c0_146, %c0_147] : memref<330x250xbf16, #tpu.memory_space<vmem>>, vector<330x250xbf16>
    %177 = arith.extf %176 : vector<330x250xbf16> to vector<330x250xf32>
    %cst_148 = arith.constant dense<0.000000e+00> : vector<1x250xf32>
    %178 = tpu.matmul %175, %177, %cst_148 {dimension_numbers = #tpu.dot_dimension_numbers<[1], [0], [0], [1], [0, 0, 1, 1], [], []>} : vector<1x330xf32>, vector<330x250xf32>, vector<1x250xf32> -> vector<1x250xf32>
    %c0_149 = arith.constant 0 : index
    %c0_150 = arith.constant 0 : index
    %179 = vector.load %arg20[%c0_149, %c0_150] : memref<1x250xf32, #tpu.memory_space<vmem>>, vector<1x250xf32>
    %180 = arith.addf %178, %179 : vector<1x250xf32>
    %cst_151 = arith.constant 0.000000e+00 : f32
    %181 = vector.broadcast %cst_151 : f32 to vector<1x250xf32>
    %182 = arith.maximumf %180, %181 : vector<1x250xf32>
    %c0_152 = arith.constant 0 : index
    %c0_153 = arith.constant 0 : index
    %183 = vector.load %arg21[%c0_152, %c0_153] : memref<250x100xbf16, #tpu.memory_space<vmem>>, vector<250x100xbf16>
    %184 = arith.extf %183 : vector<250x100xbf16> to vector<250x100xf32>
    %cst_154 = arith.constant dense<0.000000e+00> : vector<1x100xf32>
    %185 = tpu.matmul %182, %184, %cst_154 {dimension_numbers = #tpu.dot_dimension_numbers<[1], [0], [0], [1], [0, 0, 1, 1], [], []>} : vector<1x250xf32>, vector<250x100xf32>, vector<1x100xf32> -> vector<1x100xf32>
    %c0_155 = arith.constant 0 : index
    %c0_156 = arith.constant 0 : index
    %186 = vector.load %arg22[%c0_155, %c0_156] : memref<1x100xf32, #tpu.memory_space<vmem>>, vector<1x100xf32>
    %187 = arith.addf %185, %186 : vector<1x100xf32>
    %cst_157 = arith.constant 0.000000e+00 : f32
    %188 = vector.broadcast %cst_157 : f32 to vector<1x100xf32>
    %189 = arith.maximumf %187, %188 : vector<1x100xf32>
    %c0_158 = arith.constant 0 : index
    %c0_159 = arith.constant 0 : index
    %190 = vector.load %arg23[%c0_158, %c0_159] : memref<100x50xbf16, #tpu.memory_space<vmem>>, vector<100x50xbf16>
    %191 = arith.extf %190 : vector<100x50xbf16> to vector<100x50xf32>
    %cst_160 = arith.constant dense<0.000000e+00> : vector<1x50xf32>
    %192 = tpu.matmul %189, %191, %cst_160 {dimension_numbers = #tpu.dot_dimension_numbers<[1], [0], [0], [1], [0, 0, 1, 1], [], []>} : vector<1x100xf32>, vector<100x50xf32>, vector<1x50xf32> -> vector<1x50xf32>
    %c0_161 = arith.constant 0 : index
    %c0_162 = arith.constant 0 : index
    %193 = vector.load %arg24[%c0_161, %c0_162] : memref<1x50xf32, #tpu.memory_space<vmem>>, vector<1x50xf32>
    %194 = arith.addf %192, %193 : vector<1x50xf32>
    %cst_163 = arith.constant 0.000000e+00 : f32
    %195 = vector.broadcast %cst_163 : f32 to vector<1x50xf32>
    %196 = arith.maximumf %194, %195 : vector<1x50xf32>
    %c0_164 = arith.constant 0 : index
    %c0_165 = arith.constant 0 : index
    %197 = vector.load %arg25[%c0_164, %c0_165] : memref<50x10xbf16, #tpu.memory_space<vmem>>, vector<50x10xbf16>
    %198 = arith.extf %197 : vector<50x10xbf16> to vector<50x10xf32>
    %cst_166 = arith.constant dense<0.000000e+00> : vector<1x10xf32>
    %199 = tpu.matmul %196, %198, %cst_166 {dimension_numbers = #tpu.dot_dimension_numbers<[1], [0], [0], [1], [0, 0, 1, 1], [], []>} : vector<1x50xf32>, vector<50x10xf32>, vector<1x10xf32> -> vector<1x10xf32>
    %c0_167 = arith.constant 0 : index
    %c0_168 = arith.constant 0 : index
    %200 = vector.load %arg26[%c0_167, %c0_168] : memref<1x10xf32, #tpu.memory_space<vmem>>, vector<1x10xf32>
    %201 = arith.addf %199, %200 : vector<1x10xf32>
    %cst_169 = arith.constant dense<0xFF800000> : vector<1xf32>
    %202 = vector.multi_reduction <maximumf>, %201, %cst_169 [1] : vector<1x10xf32> to vector<1xf32>
    %203 = vector.shape_cast %202 : vector<1xf32> to vector<1x1xf32>
    %204 = vector.broadcast %203 : vector<1x1xf32> to vector<1x10xf32>
    %205 = arith.subf %201, %204 : vector<1x10xf32>
    %206 = math.exp %205 : vector<1x10xf32>
    %cst_170 = arith.constant dense<0.000000e+00> : vector<1xf32>
    %207 = vector.multi_reduction <add>, %206, %cst_170 [1] : vector<1x10xf32> to vector<1xf32>
    %208 = vector.shape_cast %207 : vector<1xf32> to vector<1x1xf32>
    %209 = vector.broadcast %208 : vector<1x1xf32> to vector<1x10xf32>
    %210 = arith.divf %206, %209 : vector<1x10xf32>
    %c0_171 = arith.constant 0 : index
    %c0_172 = arith.constant 0 : index
    %c0_173 = arith.constant 0 : index
    %211 = vector.load %arg27[%c0_171, %c0_172, %c0_173] : memref<1x1x10xf32, #tpu.memory_space<vmem>>, vector<1x1x10xf32>
    %212 = vector.shape_cast %211 : vector<1x1x10xf32> to vector<1x10xf32>
    %213 = vector.shape_cast %210 : vector<1x10xf32> to vector<1x1x10xf32>
    tpu.vector_store %arg27[%c0_171, %c0_172, %c0_173], %213 {strides = array<i32>} : memref<1x1x10xf32, #tpu.memory_space<vmem>>, vector<1x1x10xf32>,
    return
  }
  func.func @transform_0(%arg0: i32) -> (i32, i32, i32) {
    %c0_i32 = arith.constant 0 : i32
    %c0_i32_0 = arith.constant 0 : i32
    %c0_i32_1 = arith.constant 0 : i32
    return %arg0, %c0_i32, %c0_i32_0 : i32, i32, i32
  }
  func.func @transform_1(%arg0: i32) -> (i32, i32, i32) {
    %c0_i32 = arith.constant 0 : i32
    %c0_i32_0 = arith.constant 0 : i32
    %c0_i32_1 = arith.constant 0 : i32
    %c0_i32_2 = arith.constant 0 : i32
    return %c0_i32, %c0_i32_0, %c0_i32_1 : i32, i32, i32
  }
  func.func @transform_2(%arg0: i32) -> (i32, i32, i32) {
    %c0_i32 = arith.constant 0 : i32
    %c0_i32_0 = arith.constant 0 : i32
    %c0_i32_1 = arith.constant 0 : i32
    %c0_i32_2 = arith.constant 0 : i32
    return %c0_i32, %c0_i32_0, %c0_i32_1 : i32, i32, i32
  }
  func.func @transform_3(%arg0: i32) -> (i32, i32) {
    %c0_i32 = arith.constant 0 : i32
    %c0_i32_0 = arith.constant 0 : i32
    %c0_i32_1 = arith.constant 0 : i32
    return %c0_i32, %c0_i32_0 : i32, i32
  }
  func.func @transform_4(%arg0: i32) -> (i32, i32, i32) {
    %c0_i32 = arith.constant 0 : i32
    %c0_i32_0 = arith.constant 0 : i32
    %c0_i32_1 = arith.constant 0 : i32
    %c0_i32_2 = arith.constant 0 : i32
    return %c0_i32, %c0_i32_0, %c0_i32_1 : i32, i32, i32
  }
  func.func @transform_5(%arg0: i32) -> (i32, i32, i32) {
    %c0_i32 = arith.constant 0 : i32
    %c0_i32_0 = arith.constant 0 : i32
    %c0_i32_1 = arith.constant 0 : i32
    %c0_i32_2 = arith.constant 0 : i32
    return %c0_i32, %c0_i32_0, %c0_i32_1 : i32, i32, i32
  }
  func.func @transform_6(%arg0: i32) -> (i32, i32, i32) {
    %c0_i32 = arith.constant 0 : i32
    %c0_i32_0 = arith.constant 0 : i32
    %c0_i32_1 = arith.constant 0 : i32
    %c0_i32_2 = arith.constant 0 : i32
    return %c0_i32, %c0_i32_0, %c0_i32_1 : i32, i32, i32
  }
  func.func @transform_7(%arg0: i32) -> (i32, i32, i32) {
    %c0_i32 = arith.constant 0 : i32
    %c0_i32_0 = arith.constant 0 : i32
    %c0_i32_1 = arith.constant 0 : i32
    %c0_i32_2 = arith.constant 0 : i32
    return %c0_i32, %c0_i32_0, %c0_i32_1 : i32, i32, i32
  }
  func.func @transform_8(%arg0: i32) -> (i32, i32) {
    %c0_i32 = arith.constant 0 : i32
    %c0_i32_0 = arith.constant 0 : i32
    %c0_i32_1 = arith.constant 0 : i32
    return %c0_i32, %c0_i32_0 : i32, i32
  }
  func.func @transform_9(%arg0: i32) -> (i32, i32, i32) {
    %c0_i32 = arith.constant 0 : i32
    %c0_i32_0 = arith.constant 0 : i32
    %c0_i32_1 = arith.constant 0 : i32
    %c0_i32_2 = arith.constant 0 : i32
    return %c0_i32, %c0_i32_0, %c0_i32_1 : i32, i32, i32
  }
  func.func @transform_10(%arg0: i32) -> (i32, i32, i32) {
    %c0_i32 = arith.constant 0 : i32
    %c0_i32_0 = arith.constant 0 : i32
    %c0_i32_1 = arith.constant 0 : i32
    %c0_i32_2 = arith.constant 0 : i32
    return %c0_i32, %c0_i32_0, %c0_i32_1 : i32, i32, i32
  }
  func.func @transform_11(%arg0: i32) -> (i32, i32, i32) {
    %c0_i32 = arith.constant 0 : i32
    %c0_i32_0 = arith.constant 0 : i32
    %c0_i32_1 = arith.constant 0 : i32
    %c0_i32_2 = arith.constant 0 : i32
    return %c0_i32, %c0_i32_0, %c0_i32_1 : i32, i32, i32
  }
  func.func @transform_12(%arg0: i32) -> (i32, i32, i32) {
    %c0_i32 = arith.constant 0 : i32
    %c0_i32_0 = arith.constant 0 : i32
    %c0_i32_1 = arith.constant 0 : i32
    %c0_i32_2 = arith.constant 0 : i32
    return %c0_i32, %c0_i32_0, %c0_i32_1 : i32, i32, i32
  }
  func.func @transform_13(%arg0: i32) -> (i32, i32) {
    %c0_i32 = arith.constant 0 : i32
    %c0_i32_0 = arith.constant 0 : i32
    %c0_i32_1 = arith.constant 0 : i32
    return %c0_i32, %c0_i32_0 : i32, i32
  }
  func.func @transform_14(%arg0: i32) -> (i32, i32, i32) {
    %c0_i32 = arith.constant 0 : i32
    %c0_i32_0 = arith.constant 0 : i32
    %c0_i32_1 = arith.constant 0 : i32
    %c0_i32_2 = arith.constant 0 : i32
    return %c0_i32, %c0_i32_0, %c0_i32_1 : i32, i32, i32
  }
  func.func @transform_15(%arg0: i32) -> (i32, i32, i32) {
    %c0_i32 = arith.constant 0 : i32
    %c0_i32_0 = arith.constant 0 : i32
    %c0_i32_1 = arith.constant 0 : i32
    %c0_i32_2 = arith.constant 0 : i32
    return %c0_i32, %c0_i32_0, %c0_i32_1 : i32, i32, i32
  }
  func.func @transform_16(%arg0: i32) -> (i32, i32, i32) {
    %c0_i32 = arith.constant 0 : i32
    %c0_i32_0 = arith.constant 0 : i32
    %c0_i32_1 = arith.constant 0 : i32
    %c0_i32_2 = arith.constant 0 : i32
    return %c0_i32, %c0_i32_0, %c0_i32_1 : i32, i32, i32
  }
  func.func @transform_17(%arg0: i32) -> (i32, i32) {
    %c0_i32 = arith.constant 0 : i32
    %c0_i32_0 = arith.constant 0 : i32
    %c0_i32_1 = arith.constant 0 : i32
    return %c0_i32, %c0_i32_0 : i32, i32
  }
  func.func @transform_18(%arg0: i32) -> (i32, i32) {
    %c0_i32 = arith.constant 0 : i32
    %c0_i32_0 = arith.constant 0 : i32
    %c0_i32_1 = arith.constant 0 : i32
    return %c0_i32, %c0_i32_0 : i32, i32
  }
  func.func @transform_19(%arg0: i32) -> (i32, i32) {
    %c0_i32 = arith.constant 0 : i32
    %c0_i32_0 = arith.constant 0 : i32
    %c0_i32_1 = arith.constant 0 : i32
    return %c0_i32, %c0_i32_0 : i32, i32
  }
  func.func @transform_20(%arg0: i32) -> (i32, i32) {
    %c0_i32 = arith.constant 0 : i32
    %c0_i32_0 = arith.constant 0 : i32
    %c0_i32_1 = arith.constant 0 : i32
    return %c0_i32, %c0_i32_0 : i32, i32
  }
  func.func @transform_21(%arg0: i32) -> (i32, i32) {
    %c0_i32 = arith.constant 0 : i32
    %c0_i32_0 = arith.constant 0 : i32
    %c0_i32_1 = arith.constant 0 : i32
    return %c0_i32, %c0_i32_0 : i32, i32
  }
  func.func @transform_22(%arg0: i32) -> (i32, i32) {
    %c0_i32 = arith.constant 0 : i32
    %c0_i32_0 = arith.constant 0 : i32
    %c0_i32_1 = arith.constant 0 : i32
    return %c0_i32, %c0_i32_0 : i32, i32
  }
  func.func @transform_23(%arg0: i32) -> (i32, i32) {
    %c0_i32 = arith.constant 0 : i32
    %c0_i32_0 = arith.constant 0 : i32
    %c0_i32_1 = arith.constant 0 : i32
    return %c0_i32, %c0_i32_0 : i32, i32
  }
  func.func @transform_24(%arg0: i32) -> (i32, i32) {
    %c0_i32 = arith.constant 0 : i32
    %c0_i32_0 = arith.constant 0 : i32
    %c0_i32_1 = arith.constant 0 : i32
    return %c0_i32, %c0_i32_0 : i32, i32
  }
  func.func @transform_25(%arg0: i32) -> (i32, i32) {
    %c0_i32 = arith.constant 0 : i32
    %c0_i32_0 = arith.constant 0 : i32
    %c0_i32_1 = arith.constant 0 : i32
    return %c0_i32, %c0_i32_0 : i32, i32
  }
  func.func @transform_26(%arg0: i32) -> (i32, i32, i32) {
    %c0_i32 = arith.constant 0 : i32
    %c0_i32_0 = arith.constant 0 : i32
    %c0_i32_1 = arith.constant 0 : i32
    return %arg0, %c0_i32, %c0_i32_0 : i32, i32, i32
  }
}

</mosaic_0001>

<llo_original>
// kernel: forward.1
$region0: #{forward.1}
  #allocation0 [shape = 'u32[]', space=smem, size = 0x4, offset = 0x4, fixed_abs, tag = 'smem constant byte address 0x4 - core index']
  #allocation1 [shape = 'u32[72,128]{1,0:T(1,128)}', space=vmem, size = 0x9000, scoped, tag = 'internal scratch']
  %s0 = inlined_call_operand.vmem [shape: f32[2,32,102], index: 0, kind: input, shape index: {}]
  %s1 = inlined_call_operand.vmem [shape: bf16[3,32,32], index: 1, kind: input, shape index: {}]
  %s2 = inlined_call_operand.vmem [shape: bf16[3,102,192], index: 2, kind: input, shape index: {}]
  %s3 = inlined_call_operand.vmem [shape: f32[1,192], index: 3, kind: input, shape index: {}]
  %s4 = inlined_call_operand.vmem [shape: bf16[2,192,108], index: 4, kind: input, shape index: {}]
  %s5 = inlined_call_operand.vmem [shape: bf16[2,16,32], index: 5, kind: input, shape index: {}]
  %s6 = inlined_call_operand.vmem [shape: bf16[3,16,16], index: 6, kind: input, shape index: {}]
  %s7 = inlined_call_operand.vmem [shape: bf16[3,108,192], index: 7, kind: input, shape index: {}]
  %s8 = inlined_call_operand.vmem [shape: f32[1,192], index: 8, kind: input, shape index: {}]
  %s9 = inlined_call_operand.vmem [shape: bf16[2,192,120], index: 9, kind: input, shape index: {}]
  %s10 = inlined_call_operand.vmem [shape: bf16[2,8,16], index: 10, kind: input, shape index: {}]
  %s11 = inlined_call_operand.vmem [shape: bf16[3,8,8], index: 11, kind: input, shape index: {}]
  %s12 = inlined_call_operand.vmem [shape: bf16[3,120,192], index: 12, kind: input, shape index: {}]
  %s13 = inlined_call_operand.vmem [shape: f32[1,192], index: 13, kind: input, shape index: {}]
  %s14 = inlined_call_operand.vmem [shape: bf16[2,192,96], index: 14, kind: input, shape index: {}]
  %s15 = inlined_call_operand.vmem [shape: bf16[2,4,8], index: 15, kind: input, shape index: {}]
  %s16 = inlined_call_operand.vmem [shape: bf16[4,96,330], index: 16, kind: input, shape index: {}]
  %s17 = inlined_call_operand.vmem [shape: f32[1,330], index: 17, kind: input, shape index: {}]
  %s18 = inlined_call_operand.vmem [shape: bf16[330,250], index: 18, kind: input, shape index: {}]
  %s19 = inlined_call_operand.vmem [shape: f32[1,250], index: 19, kind: input, shape index: {}]
  %s20 = inlined_call_operand.vmem [shape: bf16[250,100], index: 20, kind: input, shape index: {}]
  %s21 = inlined_call_operand.vmem [shape: f32[1,100], index: 21, kind: input, shape index: {}]
  %s22 = inlined_call_operand.vmem [shape: bf16[100,50], index: 22, kind: input, shape index: {}]
  %s23 = inlined_call_operand.vmem [shape: f32[1,50], index: 23, kind: input, shape index: {}]
  %s24 = inlined_call_operand.vmem [shape: bf16[50,10], index: 24, kind: input, shape index: {}]
  %s25 = inlined_call_operand.vmem [shape: f32[1,10], index: 25, kind: input, shape index: {}]
  %s26 = inlined_call_operand.hbm [shape: f32[2,1,10], index: 26, kind: output, shape index: {}]
  %s27 = sld [smem:[#allocation0]]
  $region137: #{forward.1} parent=0
    _
  %s29 = ssub.s32 1, %s27
  %s30 = scalar_select 0, %s29, %s27
  $region1: #{forward.1} parent=0
    #allocation2 [shape = 'u8[1024]{0}', space=vmem, size = 0x400, scoped, tag = 'output window, operand 0']
    #allocation3 [shape = 's32[2]{0}', space=sflag, size = 0x8, scoped, tag = 'scoped memory for forward.1']
    %31 = vsyncpa [#allocation3], 0
    %s32 = scalar_lea.sflag [#allocation3], 1
    %33 = vsyncpa %s32, 0
    loop: start=0, step=1, limit=4
    $region2: #{forward.1} parent=1 // loop_pre_header
      _
    $region3: #{forward.1} parent=1 // loop_header
      %s35 = sphi 0, %s39
      %p36 = scmp.ge.s32.totalorder %s35, 4
      %s45 = sphi 0, %s47
      %s48 = sphi 0, %s45
      %s49 = sphi 0, %s48
      %s65 = sphi 0, %s49
      %s69 = sphi 0, %s69
      %s71 = sphi 0, %s69
      %s72 = sphi 0, %s71
      %s86 = sphi 0, %s72
      %s90 = sphi 0, %s90
      %s92 = sphi 0, %s90
      %s93 = sphi 0, %s92
      %s107 = sphi 0, %s93
      %s111 = sphi 0, %s111
      %s113 = sphi 0, %s111
      %s114 = sphi 0, %s113
      %s128 = sphi 0, %s114
      %s132 = sphi 0, %s132
      %s134 = sphi 0, %s132
      %s135 = sphi 0, %s134
      %s149 = sphi 0, %s135
      %s153 = sphi 0, %s153
      %s155 = sphi 0, %s153
      %s156 = sphi 0, %s155
      %s170 = sphi 0, %s156
      %s174 = sphi 0, %s174
      %s176 = sphi 0, %s174
      %s177 = sphi 0, %s176
      %s191 = sphi 0, %s177
      %s195 = sphi 0, %s195
      %s197 = sphi 0, %s195
      %s198 = sphi 0, %s197
      %s212 = sphi 0, %s198
      %s216 = sphi 0, %s216
      %s218 = sphi 0, %s216
      %s219 = sphi 0, %s218
      %s233 = sphi 0, %s219
      %s237 = sphi 0, %s237
      %s239 = sphi 0, %s237
      %s240 = sphi 0, %s239
      %s254 = sphi 0, %s240
      %s258 = sphi 0, %s258
      %s260 = sphi 0, %s258
      %s261 = sphi 0, %s260
      %s275 = sphi 0, %s261
      %s279 = sphi 0, %s279
      %s281 = sphi 0, %s279
      %s282 = sphi 0, %s281
      %s296 = sphi 0, %s282
      %s300 = sphi 0, %s300
      %s302 = sphi 0, %s300
      %s303 = sphi 0, %s302
      %s317 = sphi 0, %s303
      %s321 = sphi 0, %s321
      %s323 = sphi 0, %s321
      %s324 = sphi 0, %s323
      %s338 = sphi 0, %s324
      %s342 = sphi 0, %s342
      %s344 = sphi 0, %s342
      %s345 = sphi 0, %s344
      %s359 = sphi 0, %s345
      %s363 = sphi 0, %s363
      %s365 = sphi 0, %s363
      %s366 = sphi 0, %s365
      %s380 = sphi 0, %s366
      %s384 = sphi 0, %s384
      %s386 = sphi 0, %s384
      %s387 = sphi 0, %s386
      %s401 = sphi 0, %s387
      %s405 = sphi 0, %s405
      %s407 = sphi 0, %s405
      %s408 = sphi 0, %s407
      %s422 = sphi 0, %s408
      %s426 = sphi 0, %s426
      %s428 = sphi 0, %s426
      %s429 = sphi 0, %s428
      %s443 = sphi 0, %s429
      %s447 = sphi 0, %s447
      %s449 = sphi 0, %s447
      %s450 = sphi 0, %s449
      %s464 = sphi 0, %s450
      %s468 = sphi 0, %s468
      %s470 = sphi 0, %s468
      %s471 = sphi 0, %s470
      %s485 = sphi 0, %s471
      %s489 = sphi 0, %s489
      %s491 = sphi 0, %s489
      %s492 = sphi 0, %s491
      %s506 = sphi 0, %s492
      %s510 = sphi 0, %s510
      %s512 = sphi 0, %s510
      %s513 = sphi 0, %s512
      %s527 = sphi 0, %s513
      %s531 = sphi 0, %s531
      %s533 = sphi 0, %s531
      %s534 = sphi 0, %s533
      %s548 = sphi 0, %s534
      %s552 = sphi 0, %s552
      %s554 = sphi 0, %s552
      %s555 = sphi 0, %s554
      %s569 = sphi 0, %s555
      %s573 = sphi 0, %s573
      %s575 = sphi 0, %s573
      %s576 = sphi 0, %s575
      %s590 = sphi 0, %s576
      %s596 = sphi 0, %s598
      %s599 = sphi 0, %s596
      %s600 = sphi 0, %s599
      %s616 = sphi 0, %s600
    $region4: #{forward.1} parent=1 // loop_header_branch
      %38 = sbr.rel (%p36) target = $region8
    $region5: #{forward.1} parent=1 // loop_body
      %s40 = ssub.s32 %s35, 1
      %s41 = ssub.s32 %s35, 2
      %s42 = sadd.s32 %s35, 1
      %s43 = ssub.s32 %s35, %s42
      %p44 = scmp.eq.s32.totalorder %s43, 0
      %s46 = sadd.s32 %s45, 1
      %s47 = scalar_select %p44, %s45, %s46
      %p50 = pneg %p44
      %p51 = scmp.eq.s32.totalorder %s35, 1
      %p52 = por %p50, %p51
      %p53 = scmp.ne.s32.totalorder %s45, %s48
      %p54 = scmp.eq.s32.totalorder %s35, 0
      %p55 = por %p53, %p54
      %p56 = scmp.ne.s32.totalorder %s45, %s48
      %p57 = scmp.eq.s32.totalorder %s40, 1
      %p58 = por %p56, %p57
      %p59 = scmp.ne.s32.totalorder %s48, %s49
      %p60 = scmp.eq.s32.totalorder %s40, 0
      %p61 = por %p59, %p60
      %p62 = scmp.ne.s32.totalorder %s48, %s49
      %p63 = scmp.eq.s32.totalorder %s41, 1
      %p64 = por %p62, %p63
      %p66 = scmp.ne.s32.totalorder %s49, %s65
      %p67 = scmp.eq.s32.totalorder %s41, 0
      %p68 = por %p66, %p67
      %s70 = sadd.s32 %s69, 1
      %p73 = scmp.eq.s32.totalorder %s35, 1
      %p74 = scmp.ne.s32.totalorder %s69, %s71
      %p75 = scmp.eq.s32.totalorder %s35, 0
      %p76 = por %p74, %p75
      %p77 = scmp.ne.s32.totalorder %s69, %s71
      %p78 = scmp.eq.s32.totalorder %s40, 1
      %p79 = por %p77, %p78
      %p80 = scmp.ne.s32.totalorder %s71, %s72
      %p81 = scmp.eq.s32.totalorder %s40, 0
      %p82 = por %p80, %p81
      %p83 = scmp.ne.s32.totalorder %s71, %s72
      %p84 = scmp.eq.s32.totalorder %s41, 1
      %p85 = por %p83, %p84
      %p87 = scmp.ne.s32.totalorder %s72, %s86
      %p88 = scmp.eq.s32.totalorder %s41, 0
      %p89 = por %p87, %p88
      %s91 = sadd.s32 %s90, 1
      %p94 = scmp.eq.s32.totalorder %s35, 1
      %p95 = scmp.ne.s32.totalorder %s90, %s92
      %p96 = scmp.eq.s32.totalorder %s35, 0
      %p97 = por %p95, %p96
      %p98 = scmp.ne.s32.totalorder %s90, %s92
      %p99 = scmp.eq.s32.totalorder %s40, 1
      %p100 = por %p98, %p99
      %p101 = scmp.ne.s32.totalorder %s92, %s93
      %p102 = scmp.eq.s32.totalorder %s40, 0
      %p103 = por %p101, %p102
      %p104 = scmp.ne.s32.totalorder %s92, %s93
      %p105 = scmp.eq.s32.totalorder %s41, 1
      %p106 = por %p104, %p105
      %p108 = scmp.ne.s32.totalorder %s93, %s107
      %p109 = scmp.eq.s32.totalorder %s41, 0
      %p110 = por %p108, %p109
      %s112 = sadd.s32 %s111, 1
      %p115 = scmp.eq.s32.totalorder %s35, 1
      %p116 = scmp.ne.s32.totalorder %s111, %s113
      %p117 = scmp.eq.s32.totalorder %s35, 0
      %p118 = por %p116, %p117
      %p119 = scmp.ne.s32.totalorder %s111, %s113
      %p120 = scmp.eq.s32.totalorder %s40, 1
      %p121 = por %p119, %p120
      %p122 = scmp.ne.s32.totalorder %s113, %s114
      %p123 = scmp.eq.s32.totalorder %s40, 0
      %p124 = por %p122, %p123
      %p125 = scmp.ne.s32.totalorder %s113, %s114
      %p126 = scmp.eq.s32.totalorder %s41, 1
      %p127 = por %p125, %p126
      %p129 = scmp.ne.s32.totalorder %s114, %s128
      %p130 = scmp.eq.s32.totalorder %s41, 0
      %p131 = por %p129, %p130
      %s133 = sadd.s32 %s132, 1
      %p136 = scmp.eq.s32.totalorder %s35, 1
      %p137 = scmp.ne.s32.totalorder %s132, %s134
      %p138 = scmp.eq.s32.totalorder %s35, 0
      %p139 = por %p137, %p138
      %p140 = scmp.ne.s32.totalorder %s132, %s134
      %p141 = scmp.eq.s32.totalorder %s40, 1
      %p142 = por %p140, %p141
      %p143 = scmp.ne.s32.totalorder %s134, %s135
      %p144 = scmp.eq.s32.totalorder %s40, 0
      %p145 = por %p143, %p144
      %p146 = scmp.ne.s32.totalorder %s134, %s135
      %p147 = scmp.eq.s32.totalorder %s41, 1
      %p148 = por %p146, %p147
      %p150 = scmp.ne.s32.totalorder %s135, %s149
      %p151 = scmp.eq.s32.totalorder %s41, 0
      %p152 = por %p150, %p151
      %s154 = sadd.s32 %s153, 1
      %p157 = scmp.eq.s32.totalorder %s35, 1
      %p158 = scmp.ne.s32.totalorder %s153, %s155
      %p159 = scmp.eq.s32.totalorder %s35, 0
      %p160 = por %p158, %p159
      %p161 = scmp.ne.s32.totalorder %s153, %s155
      %p162 = scmp.eq.s32.totalorder %s40, 1
      %p163 = por %p161, %p162
      %p164 = scmp.ne.s32.totalorder %s155, %s156
      %p165 = scmp.eq.s32.totalorder %s40, 0
      %p166 = por %p164, %p165
      %p167 = scmp.ne.s32.totalorder %s155, %s156
      %p168 = scmp.eq.s32.totalorder %s41, 1
      %p169 = por %p167, %p168
      %p171 = scmp.ne.s32.totalorder %s156, %s170
      %p172 = scmp.eq.s32.totalorder %s41, 0
      %p173 = por %p171, %p172
      %s175 = sadd.s32 %s174, 1
      %p178 = scmp.eq.s32.totalorder %s35, 1
      %p179 = scmp.ne.s32.totalorder %s174, %s176
      %p180 = scmp.eq.s32.totalorder %s35, 0
      %p181 = por %p179, %p180
      %p182 = scmp.ne.s32.totalorder %s174, %s176
      %p183 = scmp.eq.s32.totalorder %s40, 1
      %p184 = por %p182, %p183
      %p185 = scmp.ne.s32.totalorder %s176, %s177
      %p186 = scmp.eq.s32.totalorder %s40, 0
      %p187 = por %p185, %p186
      %p188 = scmp.ne.s32.totalorder %s176, %s177
      %p189 = scmp.eq.s32.totalorder %s41, 1
      %p190 = por %p188, %p189
      %p192 = scmp.ne.s32.totalorder %s177, %s191
      %p193 = scmp.eq.s32.totalorder %s41, 0
      %p194 = por %p192, %p193
      %s196 = sadd.s32 %s195, 1
      %p199 = scmp.eq.s32.totalorder %s35, 1
      %p200 = scmp.ne.s32.totalorder %s195, %s197
      %p201 = scmp.eq.s32.totalorder %s35, 0
      %p202 = por %p200, %p201
      %p203 = scmp.ne.s32.totalorder %s195, %s197
      %p204 = scmp.eq.s32.totalorder %s40, 1
      %p205 = por %p203, %p204
      %p206 = scmp.ne.s32.totalorder %s197, %s198
      %p207 = scmp.eq.s32.totalorder %s40, 0
      %p208 = por %p206, %p207
      %p209 = scmp.ne.s32.totalorder %s197, %s198
      %p210 = scmp.eq.s32.totalorder %s41, 1
      %p211 = por %p209, %p210
      %p213 = scmp.ne.s32.totalorder %s198, %s212
      %p214 = scmp.eq.s32.totalorder %s41, 0
      %p215 = por %p213, %p214
      %s217 = sadd.s32 %s216, 1
      %p220 = scmp.eq.s32.totalorder %s35, 1
      %p221 = scmp.ne.s32.totalorder %s216, %s218
      %p222 = scmp.eq.s32.totalorder %s35, 0
      %p223 = por %p221, %p222
      %p224 = scmp.ne.s32.totalorder %s216, %s218
      %p225 = scmp.eq.s32.totalorder %s40, 1
      %p226 = por %p224, %p225
      %p227 = scmp.ne.s32.totalorder %s218, %s219
      %p228 = scmp.eq.s32.totalorder %s40, 0
      %p229 = por %p227, %p228
      %p230 = scmp.ne.s32.totalorder %s218, %s219
      %p231 = scmp.eq.s32.totalorder %s41, 1
      %p232 = por %p230, %p231
      %p234 = scmp.ne.s32.totalorder %s219, %s233
      %p235 = scmp.eq.s32.totalorder %s41, 0
      %p236 = por %p234, %p235
      %s238 = sadd.s32 %s237, 1
      %p241 = scmp.eq.s32.totalorder %s35, 1
      %p242 = scmp.ne.s32.totalorder %s237, %s239
      %p243 = scmp.eq.s32.totalorder %s35, 0
      %p244 = por %p242, %p243
      %p245 = scmp.ne.s32.totalorder %s237, %s239
      %p246 = scmp.eq.s32.totalorder %s40, 1
      %p247 = por %p245, %p246
      %p248 = scmp.ne.s32.totalorder %s239, %s240
      %p249 = scmp.eq.s32.totalorder %s40, 0
      %p250 = por %p248, %p249
      %p251 = scmp.ne.s32.totalorder %s239, %s240
      %p252 = scmp.eq.s32.totalorder %s41, 1
      %p253 = por %p251, %p252
      %p255 = scmp.ne.s32.totalorder %s240, %s254
      %p256 = scmp.eq.s32.totalorder %s41, 0
      %p257 = por %p255, %p256
      %s259 = sadd.s32 %s258, 1
      %p262 = scmp.eq.s32.totalorder %s35, 1
      %p263 = scmp.ne.s32.totalorder %s258, %s260
      %p264 = scmp.eq.s32.totalorder %s35, 0
      %p265 = por %p263, %p264
      %p266 = scmp.ne.s32.totalorder %s258, %s260
      %p267 = scmp.eq.s32.totalorder %s40, 1
      %p268 = por %p266, %p267
      %p269 = scmp.ne.s32.totalorder %s260, %s261
      %p270 = scmp.eq.s32.totalorder %s40, 0
      %p271 = por %p269, %p270
      %p272 = scmp.ne.s32.totalorder %s260, %s261
      %p273 = scmp.eq.s32.totalorder %s41, 1
      %p274 = por %p272, %p273
      %p276 = scmp.ne.s32.totalorder %s261, %s275
      %p277 = scmp.eq.s32.totalorder %s41, 0
      %p278 = por %p276, %p277
      %s280 = sadd.s32 %s279, 1
      %p283 = scmp.eq.s32.totalorder %s35, 1
      %p284 = scmp.ne.s32.totalorder %s279, %s281
      %p285 = scmp.eq.s32.totalorder %s35, 0
      %p286 = por %p284, %p285
      %p287 = scmp.ne.s32.totalorder %s279, %s281
      %p288 = scmp.eq.s32.totalorder %s40, 1
      %p289 = por %p287, %p288
      %p290 = scmp.ne.s32.totalorder %s281, %s282
      %p291 = scmp.eq.s32.totalorder %s40, 0
      %p292 = por %p290, %p291
      %p293 = scmp.ne.s32.totalorder %s281, %s282
      %p294 = scmp.eq.s32.totalorder %s41, 1
      %p295 = por %p293, %p294
      %p297 = scmp.ne.s32.totalorder %s282, %s296
      %p298 = scmp.eq.s32.totalorder %s41, 0
      %p299 = por %p297, %p298
      %s301 = sadd.s32 %s300, 1
      %p304 = scmp.eq.s32.totalorder %s35, 1
      %p305 = scmp.ne.s32.totalorder %s300, %s302
      %p306 = scmp.eq.s32.totalorder %s35, 0
      %p307 = por %p305, %p306
      %p308 = scmp.ne.s32.totalorder %s300, %s302
      %p309 = scmp.eq.s32.totalorder %s40, 1
      %p310 = por %p308, %p309
      %p311 = scmp.ne.s32.totalorder %s302, %s303
      %p312 = scmp.eq.s32.totalorder %s40, 0
      %p313 = por %p311, %p312
      %p314 = scmp.ne.s32.totalorder %s302, %s303
      %p315 = scmp.eq.s32.totalorder %s41, 1
      %p316 = por %p314, %p315
      %p318 = scmp.ne.s32.totalorder %s303, %s317
      %p319 = scmp.eq.s32.totalorder %s41, 0
      %p320 = por %p318, %p319
      %s322 = sadd.s32 %s321, 1
      %p325 = scmp.eq.s32.totalorder %s35, 1
      %p326 = scmp.ne.s32.totalorder %s321, %s323
      %p327 = scmp.eq.s32.totalorder %s35, 0
      %p328 = por %p326, %p327
      %p329 = scmp.ne.s32.totalorder %s321, %s323
      %p330 = scmp.eq.s32.totalorder %s40, 1
      %p331 = por %p329, %p330
      %p332 = scmp.ne.s32.totalorder %s323, %s324
      %p333 = scmp.eq.s32.totalorder %s40, 0
      %p334 = por %p332, %p333
      %p335 = scmp.ne.s32.totalorder %s323, %s324
      %p336 = scmp.eq.s32.totalorder %s41, 1
      %p337 = por %p335, %p336
      %p339 = scmp.ne.s32.totalorder %s324, %s338
      %p340 = scmp.eq.s32.totalorder %s41, 0
      %p341 = por %p339, %p340
      %s343 = sadd.s32 %s342, 1
      %p346 = scmp.eq.s32.totalorder %s35, 1
      %p347 = scmp.ne.s32.totalorder %s342, %s344
      %p348 = scmp.eq.s32.totalorder %s35, 0
      %p349 = por %p347, %p348
      %p350 = scmp.ne.s32.totalorder %s342, %s344
      %p351 = scmp.eq.s32.totalorder %s40, 1
      %p352 = por %p350, %p351
      %p353 = scmp.ne.s32.totalorder %s344, %s345
      %p354 = scmp.eq.s32.totalorder %s40, 0
      %p355 = por %p353, %p354
      %p356 = scmp.ne.s32.totalorder %s344, %s345
      %p357 = scmp.eq.s32.totalorder %s41, 1
      %p358 = por %p356, %p357
      %p360 = scmp.ne.s32.totalorder %s345, %s359
      %p361 = scmp.eq.s32.totalorder %s41, 0
      %p362 = por %p360, %p361
      %s364 = sadd.s32 %s363, 1
      %p367 = scmp.eq.s32.totalorder %s35, 1
      %p368 = scmp.ne.s32.totalorder %s363, %s365
      %p369 = scmp.eq.s32.totalorder %s35, 0
      %p370 = por %p368, %p369
      %p371 = scmp.ne.s32.totalorder %s363, %s365
      %p372 = scmp.eq.s32.totalorder %s40, 1
      %p373 = por %p371, %p372
      %p374 = scmp.ne.s32.totalorder %s365, %s366
      %p375 = scmp.eq.s32.totalorder %s40, 0
      %p376 = por %p374, %p375
      %p377 = scmp.ne.s32.totalorder %s365, %s366
      %p378 = scmp.eq.s32.totalorder %s41, 1
      %p379 = por %p377, %p378
      %p381 = scmp.ne.s32.totalorder %s366, %s380
      %p382 = scmp.eq.s32.totalorder %s41, 0
      %p383 = por %p381, %p382
      %s385 = sadd.s32 %s384, 1
      %p388 = scmp.eq.s32.totalorder %s35, 1
      %p389 = scmp.ne.s32.totalorder %s384, %s386
      %p390 = scmp.eq.s32.totalorder %s35, 0
      %p391 = por %p389, %p390
      %p392 = scmp.ne.s32.totalorder %s384, %s386
      %p393 = scmp.eq.s32.totalorder %s40, 1
      %p394 = por %p392, %p393
      %p395 = scmp.ne.s32.totalorder %s386, %s387
      %p396 = scmp.eq.s32.totalorder %s40, 0
      %p397 = por %p395, %p396
      %p398 = scmp.ne.s32.totalorder %s386, %s387
      %p399 = scmp.eq.s32.totalorder %s41, 1
      %p400 = por %p398, %p399
      %p402 = scmp.ne.s32.totalorder %s387, %s401
      %p403 = scmp.eq.s32.totalorder %s41, 0
      %p404 = por %p402, %p403
      %s406 = sadd.s32 %s405, 1
      %p409 = scmp.eq.s32.totalorder %s35, 1
      %p410 = scmp.ne.s32.totalorder %s405, %s407
      %p411 = scmp.eq.s32.totalorder %s35, 0
      %p412 = por %p410, %p411
      %p413 = scmp.ne.s32.totalorder %s405, %s407
      %p414 = scmp.eq.s32.totalorder %s40, 1
      %p415 = por %p413, %p414
      %p416 = scmp.ne.s32.totalorder %s407, %s408
      %p417 = scmp.eq.s32.totalorder %s40, 0
      %p418 = por %p416, %p417
      %p419 = scmp.ne.s32.totalorder %s407, %s408
      %p420 = scmp.eq.s32.totalorder %s41, 1
      %p421 = por %p419, %p420
      %p423 = scmp.ne.s32.totalorder %s408, %s422
      %p424 = scmp.eq.s32.totalorder %s41, 0
      %p425 = por %p423, %p424
      %s427 = sadd.s32 %s426, 1
      %p430 = scmp.eq.s32.totalorder %s35, 1
      %p431 = scmp.ne.s32.totalorder %s426, %s428
      %p432 = scmp.eq.s32.totalorder %s35, 0
      %p433 = por %p431, %p432
      %p434 = scmp.ne.s32.totalorder %s426, %s428
      %p435 = scmp.eq.s32.totalorder %s40, 1
      %p436 = por %p434, %p435
      %p437 = scmp.ne.s32.totalorder %s428, %s429
      %p438 = scmp.eq.s32.totalorder %s40, 0
      %p439 = por %p437, %p438
      %p440 = scmp.ne.s32.totalorder %s428, %s429
      %p441 = scmp.eq.s32.totalorder %s41, 1
      %p442 = por %p440, %p441
      %p444 = scmp.ne.s32.totalorder %s429, %s443
      %p445 = scmp.eq.s32.totalorder %s41, 0
      %p446 = por %p444, %p445
      %s448 = sadd.s32 %s447, 1
      %p451 = scmp.eq.s32.totalorder %s35, 1
      %p452 = scmp.ne.s32.totalorder %s447, %s449
      %p453 = scmp.eq.s32.totalorder %s35, 0
      %p454 = por %p452, %p453
      %p455 = scmp.ne.s32.totalorder %s447, %s449
      %p456 = scmp.eq.s32.totalorder %s40, 1
      %p457 = por %p455, %p456
      %p458 = scmp.ne.s32.totalorder %s449, %s450
      %p459 = scmp.eq.s32.totalorder %s40, 0
      %p460 = por %p458, %p459
      %p461 = scmp.ne.s32.totalorder %s449, %s450
      %p462 = scmp.eq.s32.totalorder %s41, 1
      %p463 = por %p461, %p462
      %p465 = scmp.ne.s32.totalorder %s450, %s464
      %p466 = scmp.eq.s32.totalorder %s41, 0
      %p467 = por %p465, %p466
      %s469 = sadd.s32 %s468, 1
      %p472 = scmp.eq.s32.totalorder %s35, 1
      %p473 = scmp.ne.s32.totalorder %s468, %s470
      %p474 = scmp.eq.s32.totalorder %s35, 0
      %p475 = por %p473, %p474
      %p476 = scmp.ne.s32.totalorder %s468, %s470
      %p477 = scmp.eq.s32.totalorder %s40, 1
      %p478 = por %p476, %p477
      %p479 = scmp.ne.s32.totalorder %s470, %s471
      %p480 = scmp.eq.s32.totalorder %s40, 0
      %p481 = por %p479, %p480
      %p482 = scmp.ne.s32.totalorder %s470, %s471
      %p483 = scmp.eq.s32.totalorder %s41, 1
      %p484 = por %p482, %p483
      %p486 = scmp.ne.s32.totalorder %s471, %s485
      %p487 = scmp.eq.s32.totalorder %s41, 0
      %p488 = por %p486, %p487
      %s490 = sadd.s32 %s489, 1
      %p493 = scmp.eq.s32.totalorder %s35, 1
      %p494 = scmp.ne.s32.totalorder %s489, %s491
      %p495 = scmp.eq.s32.totalorder %s35, 0
      %p496 = por %p494, %p495
      %p497 = scmp.ne.s32.totalorder %s489, %s491
      %p498 = scmp.eq.s32.totalorder %s40, 1
      %p499 = por %p497, %p498
      %p500 = scmp.ne.s32.totalorder %s491, %s492
      %p501 = scmp.eq.s32.totalorder %s40, 0
      %p502 = por %p500, %p501
      %p503 = scmp.ne.s32.totalorder %s491, %s492
      %p504 = scmp.eq.s32.totalorder %s41, 1
      %p505 = por %p503, %p504
      %p507 = scmp.ne.s32.totalorder %s492, %s506
      %p508 = scmp.eq.s32.totalorder %s41, 0
      %p509 = por %p507, %p508
      %s511 = sadd.s32 %s510, 1
      %p514 = scmp.eq.s32.totalorder %s35, 1
      %p515 = scmp.ne.s32.totalorder %s510, %s512
      %p516 = scmp.eq.s32.totalorder %s35, 0
      %p517 = por %p515, %p516
      %p518 = scmp.ne.s32.totalorder %s510, %s512
      %p519 = scmp.eq.s32.totalorder %s40, 1
      %p520 = por %p518, %p519
      %p521 = scmp.ne.s32.totalorder %s512, %s513
      %p522 = scmp.eq.s32.totalorder %s40, 0
      %p523 = por %p521, %p522
      %p524 = scmp.ne.s32.totalorder %s512, %s513
      %p525 = scmp.eq.s32.totalorder %s41, 1
      %p526 = por %p524, %p525
      %p528 = scmp.ne.s32.totalorder %s513, %s527
      %p529 = scmp.eq.s32.totalorder %s41, 0
      %p530 = por %p528, %p529
      %s532 = sadd.s32 %s531, 1
      %p535 = scmp.eq.s32.totalorder %s35, 1
      %p536 = scmp.ne.s32.totalorder %s531, %s533
      %p537 = scmp.eq.s32.totalorder %s35, 0
      %p538 = por %p536, %p537
      %p539 = scmp.ne.s32.totalorder %s531, %s533
      %p540 = scmp.eq.s32.totalorder %s40, 1
      %p541 = por %p539, %p540
      %p542 = scmp.ne.s32.totalorder %s533, %s534
      %p543 = scmp.eq.s32.totalorder %s40, 0
      %p544 = por %p542, %p543
      %p545 = scmp.ne.s32.totalorder %s533, %s534
      %p546 = scmp.eq.s32.totalorder %s41, 1
      %p547 = por %p545, %p546
      %p549 = scmp.ne.s32.totalorder %s534, %s548
      %p550 = scmp.eq.s32.totalorder %s41, 0
      %p551 = por %p549, %p550
      %s553 = sadd.s32 %s552, 1
      %p556 = scmp.eq.s32.totalorder %s35, 1
      %p557 = scmp.ne.s32.totalorder %s552, %s554
      %p558 = scmp.eq.s32.totalorder %s35, 0
      %p559 = por %p557, %p558
      %p560 = scmp.ne.s32.totalorder %s552, %s554
      %p561 = scmp.eq.s32.totalorder %s40, 1
      %p562 = por %p560, %p561
      %p563 = scmp.ne.s32.totalorder %s554, %s555
      %p564 = scmp.eq.s32.totalorder %s40, 0
      %p565 = por %p563, %p564
      %p566 = scmp.ne.s32.totalorder %s554, %s555
      %p567 = scmp.eq.s32.totalorder %s41, 1
      %p568 = por %p566, %p567
      %p570 = scmp.ne.s32.totalorder %s555, %s569
      %p571 = scmp.eq.s32.totalorder %s41, 0
      %p572 = por %p570, %p571
      %s574 = sadd.s32 %s573, 1
      %p577 = scmp.eq.s32.totalorder %s35, 1
      %p578 = scmp.ne.s32.totalorder %s573, %s575
      %p579 = scmp.eq.s32.totalorder %s35, 0
      %p580 = por %p578, %p579
      %p581 = scmp.ne.s32.totalorder %s573, %s575
      %p582 = scmp.eq.s32.totalorder %s40, 1
      %p583 = por %p581, %p582
      %p584 = scmp.ne.s32.totalorder %s575, %s576
      %p585 = scmp.eq.s32.totalorder %s40, 0
      %p586 = por %p584, %p585
      %p587 = scmp.ne.s32.totalorder %s575, %s576
      %p588 = scmp.eq.s32.totalorder %s41, 1
      %p589 = por %p587, %p588
      %p591 = scmp.ne.s32.totalorder %s576, %s590
      %p592 = scmp.eq.s32.totalorder %s41, 0
      %p593 = por %p591, %p592
      %s594 = ssub.s32 %s35, %s42
      %p595 = scmp.eq.s32.totalorder %s594, 0
      %s597 = sadd.s32 %s596, 1
      %s598 = scalar_select %p595, %s596, %s597
      %p601 = pneg %p595
      %p602 = scmp.eq.s32.totalorder %s35, 1
      %p603 = por %p601, %p602
      %p604 = scmp.ne.s32.totalorder %s596, %s599
      %p605 = scmp.eq.s32.totalorder %s35, 0
      %p606 = por %p604, %p605
      %p607 = scmp.ne.s32.totalorder %s596, %s599
      %p608 = scmp.eq.s32.totalorder %s40, 1
      %p609 = por %p607, %p608
      %p610 = scmp.ne.s32.totalorder %s599, %s600
      %p611 = scmp.eq.s32.totalorder %s40, 0
      %p612 = por %p610, %p611
      %p613 = scmp.ne.s32.totalorder %s599, %s600
      %p614 = scmp.eq.s32.totalorder %s41, 1
      %p615 = por %p613, %p614
      %p617 = scmp.ne.s32.totalorder %s600, %s616
      %p618 = scmp.eq.s32.totalorder %s41, 0
      %p619 = por %p617, %p618
      %p620 = scmp.le.s32.totalorder 1, %s35
      %p621 = scmp.lt.s32.totalorder %s35, 3
      %p622 = pnand %p620, %p621
      %p623 = pneg %p622
      // Predicated region
      $region9: #{forward.1} parent=5 // pred_check
        _
      $region10: #{forward.1} parent=5 // pred_check_branch
        %625 = sbr.rel (%p622) target = $region12
      $region11: #{forward.1} parent=5 // pred_region
        %s626 = ssub.s32 %s35, 1
        // Predicated region
        $region13: #{forward.1} parent=11 // pred_check
          %p627 = pneg %p82
        $region14: #{forward.1} parent=11 // pred_check_branch
          %629 = sbr.rel (%p627) target = $region16
        $region15: #{forward.1} parent=11 // pred_region
          _
        $region16: #{forward.1} parent=11 // pred_fallthru
          _
        // Predicated region
        $region17: #{forward.1} parent=11 // pred_check
          %p630 = pneg %p103
        $region18: #{forward.1} parent=11 // pred_check_branch
          %632 = sbr.rel (%p630) target = $region20
        $region19: #{forward.1} parent=11 // pred_region
          _
        $region20: #{forward.1} parent=11 // pred_fallthru
          _
        // Predicated region
        $region21: #{forward.1} parent=11 // pred_check
          %p633 = pneg %p124
        $region22: #{forward.1} parent=11 // pred_check_branch
          %635 = sbr.rel (%p633) target = $region24
        $region23: #{forward.1} parent=11 // pred_region
          _
        $region24: #{forward.1} parent=11 // pred_fallthru
          _
        // Predicated region
        $region25: #{forward.1} parent=11 // pred_check
          %p636 = pneg %p145
        $region26: #{forward.1} parent=11 // pred_check_branch
          %638 = sbr.rel (%p636) target = $region28
        $region27: #{forward.1} parent=11 // pred_region
          _
        $region28: #{forward.1} parent=11 // pred_fallthru
          _
        // Predicated region
        $region29: #{forward.1} parent=11 // pred_check
          %p639 = pneg %p166
        $region30: #{forward.1} parent=11 // pred_check_branch
          %641 = sbr.rel (%p639) target = $region32
        $region31: #{forward.1} parent=11 // pred_region
          _
        $region32: #{forward.1} parent=11 // pred_fallthru
          _
        // Predicated region
        $region33: #{forward.1} parent=11 // pred_check
          %p642 = pneg %p187
        $region34: #{forward.1} parent=11 // pred_check_branch
          %644 = sbr.rel (%p642) target = $region36
        $region35: #{forward.1} parent=11 // pred_region
          _
        $region36: #{forward.1} parent=11 // pred_fallthru
          _
        // Predicated region
        $region37: #{forward.1} parent=11 // pred_check
          %p645 = pneg %p208
        $region38: #{forward.1} parent=11 // pred_check_branch
          %647 = sbr.rel (%p645) target = $region40
        $region39: #{forward.1} parent=11 // pred_region
          _
        $region40: #{forward.1} parent=11 // pred_fallthru
          _
        // Predicated region
        $region41: #{forward.1} parent=11 // pred_check
          %p648 = pneg %p229
        $region42: #{forward.1} parent=11 // pred_check_branch
          %650 = sbr.rel (%p648) target = $region44
        $region43: #{forward.1} parent=11 // pred_region
          _
        $region44: #{forward.1} parent=11 // pred_fallthru
          _
        // Predicated region
        $region45: #{forward.1} parent=11 // pred_check
          %p651 = pneg %p250
        $region46: #{forward.1} parent=11 // pred_check_branch
          %653 = sbr.rel (%p651) target = $region48
        $region47: #{forward.1} parent=11 // pred_region
          _
        $region48: #{forward.1} parent=11 // pred_fallthru
          _
        // Predicated region
        $region49: #{forward.1} parent=11 // pred_check
          %p654 = pneg %p271
        $region50: #{forward.1} parent=11 // pred_check_branch
          %656 = sbr.rel (%p654) target = $region52
        $region51: #{forward.1} parent=11 // pred_region
          _
        $region52: #{forward.1} parent=11 // pred_fallthru
          _
        // Predicated region
        $region53: #{forward.1} parent=11 // pred_check
          %p657 = pneg %p292
        $region54: #{forward.1} parent=11 // pred_check_branch
          %659 = sbr.rel (%p657) target = $region56
        $region55: #{forward.1} parent=11 // pred_region
          _
        $region56: #{forward.1} parent=11 // pred_fallthru
          _
        // Predicated region
        $region57: #{forward.1} parent=11 // pred_check
          %p660 = pneg %p313
        $region58: #{forward.1} parent=11 // pred_check_branch
          %662 = sbr.rel (%p660) target = $region60
        $region59: #{forward.1} parent=11 // pred_region
          _
        $region60: #{forward.1} parent=11 // pred_fallthru
          _
        // Predicated region
        $region61: #{forward.1} parent=11 // pred_check
          %p663 = pneg %p334
        $region62: #{forward.1} parent=11 // pred_check_branch
          %665 = sbr.rel (%p663) target = $region64
        $region63: #{forward.1} parent=11 // pred_region
          _
        $region64: #{forward.1} parent=11 // pred_fallthru
          _
        // Predicated region
        $region65: #{forward.1} parent=11 // pred_check
          %p666 = pneg %p355
        $region66: #{forward.1} parent=11 // pred_check_branch
          %668 = sbr.rel (%p666) target = $region68
        $region67: #{forward.1} parent=11 // pred_region
          _
        $region68: #{forward.1} parent=11 // pred_fallthru
          _
        // Predicated region
        $region69: #{forward.1} parent=11 // pred_check
          %p669 = pneg %p376
        $region70: #{forward.1} parent=11 // pred_check_branch
          %671 = sbr.rel (%p669) target = $region72
        $region71: #{forward.1} parent=11 // pred_region
          _
        $region72: #{forward.1} parent=11 // pred_fallthru
          _
        // Predicated region
        $region73: #{forward.1} parent=11 // pred_check
          %p672 = pneg %p397
        $region74: #{forward.1} parent=11 // pred_check_branch
          %674 = sbr.rel (%p672) target = $region76
        $region75: #{forward.1} parent=11 // pred_region
          _
        $region76: #{forward.1} parent=11 // pred_fallthru
          _
        // Predicated region
        $region77: #{forward.1} parent=11 // pred_check
          %p675 = pneg %p418
        $region78: #{forward.1} parent=11 // pred_check_branch
          %677 = sbr.rel (%p675) target = $region80
        $region79: #{forward.1} parent=11 // pred_region
          _
        $region80: #{forward.1} parent=11 // pred_fallthru
          _
        // Predicated region
        $region81: #{forward.1} parent=11 // pred_check
          %p678 = pneg %p439
        $region82: #{forward.1} parent=11 // pred_check_branch
          %680 = sbr.rel (%p678) target = $region84
        $region83: #{forward.1} parent=11 // pred_region
          _
        $region84: #{forward.1} parent=11 // pred_fallthru
          _
        // Predicated region
        $region85: #{forward.1} parent=11 // pred_check
          %p681 = pneg %p460
        $region86: #{forward.1} parent=11 // pred_check_branch
          %683 = sbr.rel (%p681) target = $region88
        $region87: #{forward.1} parent=11 // pred_region
          _
        $region88: #{forward.1} parent=11 // pred_fallthru
          _
        // Predicated region
        $region89: #{forward.1} parent=11 // pred_check
          %p684 = pneg %p481
        $region90: #{forward.1} parent=11 // pred_check_branch
          %686 = sbr.rel (%p684) target = $region92
        $region91: #{forward.1} parent=11 // pred_region
          _
        $region92: #{forward.1} parent=11 // pred_fallthru
          _
        // Predicated region
        $region93: #{forward.1} parent=11 // pred_check
          %p687 = pneg %p502
        $region94: #{forward.1} parent=11 // pred_check_branch
          %689 = sbr.rel (%p687) target = $region96
        $region95: #{forward.1} parent=11 // pred_region
          _
        $region96: #{forward.1} parent=11 // pred_fallthru
          _
        // Predicated region
        $region97: #{forward.1} parent=11 // pred_check
          %p690 = pneg %p523
        $region98: #{forward.1} parent=11 // pred_check_branch
          %692 = sbr.rel (%p690) target = $region100
        $region99: #{forward.1} parent=11 // pred_region
          _
        $region100: #{forward.1} parent=11 // pred_fallthru
          _
        // Predicated region
        $region101: #{forward.1} parent=11 // pred_check
          %p693 = pneg %p544
        $region102: #{forward.1} parent=11 // pred_check_branch
          %695 = sbr.rel (%p693) target = $region104
        $region103: #{forward.1} parent=11 // pred_region
          _
        $region104: #{forward.1} parent=11 // pred_fallthru
          _
        // Predicated region
        $region105: #{forward.1} parent=11 // pred_check
          %p696 = pneg %p565
        $region106: #{forward.1} parent=11 // pred_check_branch
          %698 = sbr.rel (%p696) target = $region108
        $region107: #{forward.1} parent=11 // pred_region
          _
        $region108: #{forward.1} parent=11 // pred_fallthru
          _
        // Predicated region
        $region109: #{forward.1} parent=11 // pred_check
          %p699 = pneg %p586
        $region110: #{forward.1} parent=11 // pred_check_branch
          %701 = sbr.rel (%p699) target = $region112
        $region111: #{forward.1} parent=11 // pred_region
          _
        $region112: #{forward.1} parent=11 // pred_fallthru
          _
      $region12: #{forward.1} parent=5 // pred_fallthru
        _
      %p702 = scmp.lt.s32.totalorder %s35, 2
      // Predicated region
      $region113: #{forward.1} parent=5 // pred_check
        %p703 = pneg %p702
      $region114: #{forward.1} parent=5 // pred_check_branch
        %705 = sbr.rel (%p703) target = $region116
      $region115: #{forward.1} parent=5 // pred_region
        // Predicated region
        $region117: #{forward.1} parent=115 // pred_check
          %p706 = pneg %p55
        $region118: #{forward.1} parent=115 // pred_check_branch
          %708 = sbr.rel (%p706) target = $region120
        $region119: #{forward.1} parent=115 // pred_region
          %p709 = scmp.lt.s32.totalorder %s35, 1
          %s710 = scalar_select %p709, %s35, 1
          %s711 = smul.addr %s710, 4
          %s712 = smul.addr %s711, 8
          %s713 = scalar_lea.vmem %s0, %s712
        $region120: #{forward.1} parent=115 // pred_fallthru
          _
      $region116: #{forward.1} parent=5 // pred_fallthru
        _
      %p714 = scmp.le.s32.totalorder 1, %s35
      %p715 = scmp.lt.s32.totalorder %s35, 3
      %p716 = pnand %p714, %p715
      %p717 = pneg %p716
      // Predicated region
      $region121: #{forward.1} parent=5 // pred_check
        _
      $region122: #{forward.1} parent=5 // pred_check_branch
        %719 = sbr.rel (%p716) target = $region124
      $region123: #{forward.1} parent=5 // pred_region
        %s720 = ssub.s32 %s35, 1
        %p721 = scmp.lt.s32.totalorder %s40, 1
        %s722 = scalar_select %p721, %s40, 1
        %s723 = smul.addr %s722, 4
        %s724 = smul.addr %s723, 8
        %s725 = scalar_lea.vmem %s0, %s724
        %p726 = pneg %p61
        %p727 = pneg %p58
        %p728 = pneg %p82
        %p729 = pneg %p79
        %p730 = pneg %p103
        %p731 = pneg %p100
        %p732 = pneg %p124
        %p733 = pneg %p121
        %p734 = pneg %p145
        %p735 = pneg %p142
        %p736 = pneg %p166
        %p737 = pneg %p163
        %p738 = pneg %p187
        %p739 = pneg %p184
        %p740 = pneg %p208
        %p741 = pneg %p205
        %p742 = pneg %p229
        %p743 = pneg %p226
        %p744 = pneg %p250
        %p745 = pneg %p247
        %p746 = pneg %p271
        %p747 = pneg %p268
        %p748 = pneg %p292
        %p749 = pneg %p289
        %p750 = pneg %p313
        %p751 = pneg %p310
        %p752 = pneg %p334
        %p753 = pneg %p331
        %p754 = pneg %p355
        %p755 = pneg %p352
        %p756 = pneg %p376
        %p757 = pneg %p373
        %p758 = pneg %p397
        %p759 = pneg %p394
        %p760 = pneg %p418
        %p761 = pneg %p415
        %p762 = pneg %p439
        %p763 = pneg %p436
        %p764 = pneg %p460
        %p765 = pneg %p457
        %p766 = pneg %p481
        %p767 = pneg %p478
        %p768 = pneg %p502
        %p769 = pneg %p499
        %p770 = pneg %p523
        %p771 = pneg %p520
        %p772 = pneg %p544
        %p773 = pneg %p541
        %p774 = pneg %p565
        %p775 = pneg %p562
        %p776 = pneg %p586
        %p777 = pneg %p583
        %p778 = pneg %p612
        %p779 = pneg %p609
        %s780 = sand.u32 %s599, 1
        %s781 = scalar_lea.sflag [#allocation3], %s780
        %s782 = sand.u32 %s599, 1
        %s783 = scalar_lea.vmem [#allocation2], %s782
        %p784 = scmp.lt.s32.totalorder %s40, 1
        %s785 = scalar_select %p784, %s40, 1
        %s786 = smul.addr %s785, 4
        %s787 = smul.addr %s786, 8
        %s788 = scalar_lea.vmem %s0, %s787
        %v789 = vld [vmem:[%s788] sm:$0xff]
        %v790 = vld [vmem:[%s788 + $0x8] sm:$0xff]
        %v791 = vld [vmem:[%s788 + $0x10] sm:$0xff]
        %v792 = vld [vmem:[%s788 + $0x18] sm:$0xff]
        %v793 = vld [vmem:[%s1] sm:$0xf]
        %v794 = vld [vmem:[%s1 + $0x4] sm:$0xf]
        %v795 = vld [vmem:[%s1 + $0x8] sm:$0xf]
        %v796 = vld [vmem:[%s1 + $0xc] sm:$0xf]
        %v797 = vunpack.c.l.bf16 %v793
        %v798 = vunpack.c.l.bf16 %v794
        %v799 = vunpack.c.l.bf16 %v795
        %v800 = vunpack.c.l.bf16 %v796
        %vm801 = vcmask 261120
        %v803 = vsel %vm801, %v797, 0
        %v806 = vsel %vm801, %v798, 0
        %v809 = vsel %vm801, %v799, 0
        %v812 = vsel %vm801, %v800, 0
        %814 = vmatpush.msra.mxu0 0.0
        %815 = vmatpush.msra.mxu0 0.0
        %816 = vmatpush.msra.mxu0 0.0
        %817 = vmatpush.msra.mxu0 0.0
        %818 = vmatpush.msra.mxu0 0.0
        %819 = vmatpush.msra.mxu0 0.0
        %820 = vmatpush.msra.mxu0 0.0
        %821 = vmatpush.msra.mxu0 0.0
        %822 = vmatpush.msra.mxu0 0.0
        %823 = vmatpush.msra.mxu0 0.0
        %824 = vmatpush.msra.mxu0 0.0
        %825 = vmatpush.msra.mxu0 0.0
        %826 = vmatpush.msra.mxu0 %v792
        %827 = vmatpush.msra.mxu0 %v791
        %828 = vmatpush.msra.mxu0 %v790
        %829 = vmatpush.msra.mxu0 %v789
        %830 = vmatmul.f32.gmra.mxu0 %v803
        %v831 = vpop.f32.mrf.mxu0
        %v832 = vadd.f32 0.0, %v831
        %833 = vmatmul.f32.gmra.mxu0 %v806
        %v834 = vpop.f32.mrf.mxu0
        %v835 = vadd.f32 0.0, %v834
        %836 = vmatmul.f32.gmra.mxu0 %v809
        %v837 = vpop.f32.mrf.mxu0
        %v838 = vadd.f32 0.0, %v837
        %839 = vmatmul.f32.gmra.mxu0 %v812
        %v840 = vpop.f32.mrf.mxu0
        %v841 = vadd.f32 0.0, %v840
        %842 = vdwg.mxu0
        %v843 = vld [vmem:[%s2] sm:$0xff]
        %v844 = vld [vmem:[%s2 + $0x8] sm:$0xff]
        %v845 = vld [vmem:[%s2 + $0x10] sm:$0xff]
        %v846 = vld [vmem:[%s2 + $0x18] sm:$0xff]
        %v847 = vld [vmem:[%s2 + $0x20] sm:$0xff]
        %v848 = vld [vmem:[%s2 + $0x28] sm:$0xff]
        %v849 = vld [vmem:[%s2 + $0x30] sm:$0xff]
        %v850 = vld [vmem:[%s2 + $0x38] sm:$0xff]
        %v851 = vld [vmem:[%s2 + $0x40] sm:$0xff]
        %v852 = vld [vmem:[%s2 + $0x48] sm:$0xff]
        %v853 = vld [vmem:[%s2 + $0x50] sm:$0xff]
        %v854 = vld [vmem:[%s2 + $0x58] sm:$0xff]
        %v855 = vld [vmem:[%s2 + $0x60] sm:$0x77]
        %v856 = vunpack.c.l.bf16 %v843
        %v857 = vunpack.c.h.bf16 %v843
        %v858 = vunpack.c.l.bf16 %v844
        %v859 = vunpack.c.h.bf16 %v844
        %v860 = vunpack.c.l.bf16 %v845
        %v861 = vunpack.c.h.bf16 %v845
        %v862 = vunpack.c.l.bf16 %v846
        %v863 = vunpack.c.h.bf16 %v846
        %v864 = vunpack.c.l.bf16 %v847
        %v865 = vunpack.c.h.bf16 %v847
        %v866 = vunpack.c.l.bf16 %v848
        %v867 = vunpack.c.h.bf16 %v848
        %v868 = vunpack.c.l.bf16 %v849
        %v869 = vunpack.c.h.bf16 %v849
        %v870 = vunpack.c.l.bf16 %v850
        %v871 = vunpack.c.h.bf16 %v850
        %v872 = vunpack.c.l.bf16 %v851
        %v873 = vunpack.c.h.bf16 %v851
        %v874 = vunpack.c.l.bf16 %v852
        %v875 = vunpack.c.h.bf16 %v852
        %v876 = vunpack.c.l.bf16 %v853
        %v877 = vunpack.c.h.bf16 %v853
        %v878 = vunpack.c.l.bf16 %v854
        %v879 = vunpack.c.h.bf16 %v854
        %v880 = vunpack.c.l.bf16 %v855
        %v881 = vunpack.c.h.bf16 %v855
        %s882 = scalar_lea.vmem %s1, 16
        %v883 = vld [vmem:[%s882] sm:$0xf]
        %v884 = vld [vmem:[%s882 + $0x4] sm:$0xf]
        %v885 = vld [vmem:[%s882 + $0x8] sm:$0xf]
        %v886 = vld [vmem:[%s882 + $0xc] sm:$0xf]
        %v887 = vunpack.c.l.bf16 %v883
        %v888 = vunpack.c.l.bf16 %v884
        %v889 = vunpack.c.l.bf16 %v885
        %v890 = vunpack.c.l.bf16 %v886
        %v892 = vsel %vm801, %v887, 0
        %v895 = vsel %vm801, %v888, 0
        %v898 = vsel %vm801, %v889, 0
        %v901 = vsel %vm801, %v890, 0
        %903 = vmatpush.msra.mxu0 0.0
        %904 = vmatpush.msra.mxu0 0.0
        %905 = vmatpush.msra.mxu0 0.0
        %906 = vmatpush.msra.mxu0 0.0
        %907 = vmatpush.msra.mxu0 0.0
        %908 = vmatpush.msra.mxu0 0.0
        %909 = vmatpush.msra.mxu0 0.0
        %910 = vmatpush.msra.mxu0 0.0
        %911 = vmatpush.msra.mxu0 0.0
        %912 = vmatpush.msra.mxu0 0.0
        %913 = vmatpush.msra.mxu0 0.0
        %914 = vmatpush.msra.mxu0 0.0
        %915 = vmatpush.msra.mxu0 %v792
        %916 = vmatpush.msra.mxu0 %v791
        %917 = vmatpush.msra.mxu0 %v790
        %918 = vmatpush.msra.mxu0 %v789
        %919 = vmatmul.f32.gmra.mxu0 %v892
        %v920 = vpop.f32.mrf.mxu0
        %v921 = vadd.f32 0.0, %v920
        %922 = vmatmul.f32.gmra.mxu0 %v895
        %v923 = vpop.f32.mrf.mxu0
        %v924 = vadd.f32 0.0, %v923
        %925 = vmatmul.f32.gmra.mxu0 %v898
        %v926 = vpop.f32.mrf.mxu0
        %v927 = vadd.f32 0.0, %v926
        %928 = vmatmul.f32.gmra.mxu0 %v901
        %v929 = vpop.f32.mrf.mxu0
        %v930 = vadd.f32 0.0, %v929
        %931 = vdwg.mxu0
        %s932 = scalar_lea.vmem %s2, 104
        %v933 = vld [vmem:[%s932] sm:$0xff]
        %v934 = vld [vmem:[%s932 + $0x8] sm:$0xff]
        %v935 = vld [vmem:[%s932 + $0x10] sm:$0xff]
        %v936 = vld [vmem:[%s932 + $0x18] sm:$0xff]
        %v937 = vld [vmem:[%s932 + $0x20] sm:$0xff]
        %v938 = vld [vmem:[%s932 + $0x28] sm:$0xff]
        %v939 = vld [vmem:[%s932 + $0x30] sm:$0xff]
        %v940 = vld [vmem:[%s932 + $0x38] sm:$0xff]
        %v941 = vld [vmem:[%s932 + $0x40] sm:$0xff]
        %v942 = vld [vmem:[%s932 + $0x48] sm:$0xff]
        %v943 = vld [vmem:[%s932 + $0x50] sm:$0xff]
        %v944 = vld [vmem:[%s932 + $0x58] sm:$0xff]
        %v945 = vld [vmem:[%s932 + $0x60] sm:$0x77]
        %v946 = vunpack.c.l.bf16 %v933
        %v947 = vunpack.c.h.bf16 %v933
        %v948 = vunpack.c.l.bf16 %v934
        %v949 = vunpack.c.h.bf16 %v934
        %v950 = vunpack.c.l.bf16 %v935
        %v951 = vunpack.c.h.bf16 %v935
        %v952 = vunpack.c.l.bf16 %v936
        %v953 = vunpack.c.h.bf16 %v936
        %v954 = vunpack.c.l.bf16 %v937
        %v955 = vunpack.c.h.bf16 %v937
        %v956 = vunpack.c.l.bf16 %v938
        %v957 = vunpack.c.h.bf16 %v938
        %v958 = vunpack.c.l.bf16 %v939
        %v959 = vunpack.c.h.bf16 %v939
        %v960 = vunpack.c.l.bf16 %v940
        %v961 = vunpack.c.h.bf16 %v940
        %v962 = vunpack.c.l.bf16 %v941
        %v963 = vunpack.c.h.bf16 %v941
        %v964 = vunpack.c.l.bf16 %v942
        %v965 = vunpack.c.h.bf16 %v942
        %v966 = vunpack.c.l.bf16 %v943
        %v967 = vunpack.c.h.bf16 %v943
        %v968 = vunpack.c.l.bf16 %v944
        %v969 = vunpack.c.h.bf16 %v944
        %v970 = vunpack.c.l.bf16 %v945
        %v971 = vunpack.c.h.bf16 %v945
        %vm972 = vcmask 834560
        %v974 = vsel %vm972, %v921, 0
        %v977 = vsel %vm972, %v924, 0
        %v980 = vsel %vm972, %v927, 0
        %v983 = vsel %vm972, %v930, 0
        %vm985 = vcmask 1045504
        %v987 = vsel %vm985, %v970, 0
        %v990 = vsel %vm985, %v971, 0
        %992 = vmatpush.msra.mxu0 0.0
        %993 = vmatpush.msra.mxu0 0.0
        %994 = vmatpush.msra.mxu0 0.0
        %995 = vmatpush.msra.mxu0 %v987
        %996 = vmatpush.msra.mxu0 %v968
        %997 = vmatpush.msra.mxu0 %v966
        %998 = vmatpush.msra.mxu0 %v964
        %999 = vmatpush.msra.mxu0 %v962
        %1000 = vmatpush.msra.mxu0 %v960
        %1001 = vmatpush.msra.mxu0 %v958
        %1002 = vmatpush.msra.mxu0 %v956
        %1003 = vmatpush.msra.mxu0 %v954
        %1004 = vmatpush.msra.mxu0 %v952
        %1005 = vmatpush.msra.mxu0 %v950
        %1006 = vmatpush.msra.mxu0 %v948
        %1007 = vmatpush.msra.mxu0 %v946
        %1008 = vmatmul.f32.gmra.mxu0 %v974
        %v1009 = vpop.f32.mrf.mxu0
        %v1010 = vadd.f32 0.0, %v1009
        %1011 = vmatmul.f32.gmra.mxu0 %v977
        %v1012 = vpop.f32.mrf.mxu0
        %v1013 = vadd.f32 0.0, %v1012
        %1014 = vmatmul.f32.gmra.mxu0 %v980
        %v1015 = vpop.f32.mrf.mxu0
        %v1016 = vadd.f32 0.0, %v1015
        %1017 = vmatmul.f32.gmra.mxu0 %v983
        %v1018 = vpop.f32.mrf.mxu0
        %v1019 = vadd.f32 0.0, %v1018
        %1020 = vdwg.mxu0
        %1021 = vmatpush.msra.mxu0 0.0
        %1022 = vmatpush.msra.mxu0 0.0
        %1023 = vmatpush.msra.mxu0 0.0
        %1024 = vmatpush.msra.mxu0 %v990
        %1025 = vmatpush.msra.mxu0 %v969
        %1026 = vmatpush.msra.mxu0 %v967
        %1027 = vmatpush.msra.mxu0 %v965
        %1028 = vmatpush.msra.mxu0 %v963
        %1029 = vmatpush.msra.mxu0 %v961
        %1030 = vmatpush.msra.mxu0 %v959
        %1031 = vmatpush.msra.mxu0 %v957
        %1032 = vmatpush.msra.mxu0 %v955
        %1033 = vmatpush.msra.mxu0 %v953
        %1034 = vmatpush.msra.mxu0 %v951
        %1035 = vmatpush.msra.mxu0 %v949
        %1036 = vmatpush.msra.mxu0 %v947
        %1037 = vmatmul.f32.gmra.mxu0 %v974
        %v1038 = vpop.f32.mrf.mxu0
        %v1039 = vadd.f32 0.0, %v1038
        %1040 = vmatmul.f32.gmra.mxu0 %v977
        %v1041 = vpop.f32.mrf.mxu0
        %v1042 = vadd.f32 0.0, %v1041
        %1043 = vmatmul.f32.gmra.mxu0 %v980
        %v1044 = vpop.f32.mrf.mxu0
        %v1045 = vadd.f32 0.0, %v1044
        %1046 = vmatmul.f32.gmra.mxu0 %v983
        %v1047 = vpop.f32.mrf.mxu0
        %v1048 = vadd.f32 0.0, %v1047
        %1049 = vdwg.mxu0
        %v1051 = vsel %vm972, %v832, 0
        %v1054 = vsel %vm972, %v835, 0
        %v1057 = vsel %vm972, %v838, 0
        %v1060 = vsel %vm972, %v841, 0
        %v1063 = vsel %vm985, %v880, 0
        %v1066 = vsel %vm985, %v881, 0
        %1068 = vmatpush.msra.mxu0 0.0
        %1069 = vmatpush.msra.mxu0 0.0
        %1070 = vmatpush.msra.mxu0 0.0
        %1071 = vmatpush.msra.mxu0 %v1063
        %1072 = vmatpush.msra.mxu0 %v878
        %1073 = vmatpush.msra.mxu0 %v876
        %1074 = vmatpush.msra.mxu0 %v874
        %1075 = vmatpush.msra.mxu0 %v872
        %1076 = vmatpush.msra.mxu0 %v870
        %1077 = vmatpush.msra.mxu0 %v868
        %1078 = vmatpush.msra.mxu0 %v866
        %1079 = vmatpush.msra.mxu0 %v864
        %1080 = vmatpush.msra.mxu0 %v862
        %1081 = vmatpush.msra.mxu0 %v860
        %1082 = vmatpush.msra.mxu0 %v858
        %1083 = vmatpush.msra.mxu0 %v856
        %1084 = vmatmul.f32.gmra.mxu0 %v1051
        %v1085 = vpop.f32.mrf.mxu0
        %v1086 = vadd.f32 %v1010, %v1085
        %1087 = vmatmul.f32.gmra.mxu0 %v1054
        %v1088 = vpop.f32.mrf.mxu0
        %v1089 = vadd.f32 %v1013, %v1088
        %1090 = vmatmul.f32.gmra.mxu0 %v1057
        %v1091 = vpop.f32.mrf.mxu0
        %v1092 = vadd.f32 %v1016, %v1091
        %1093 = vmatmul.f32.gmra.mxu0 %v1060
        %v1094 = vpop.f32.mrf.mxu0
        %v1095 = vadd.f32 %v1019, %v1094
        %1096 = vdwg.mxu0
        %1097 = vmatpush.msra.mxu0 0.0
        %1098 = vmatpush.msra.mxu0 0.0
        %1099 = vmatpush.msra.mxu0 0.0
        %1100 = vmatpush.msra.mxu0 %v1066
        %1101 = vmatpush.msra.mxu0 %v879
        %1102 = vmatpush.msra.mxu0 %v877
        %1103 = vmatpush.msra.mxu0 %v875
        %1104 = vmatpush.msra.mxu0 %v873
        %1105 = vmatpush.msra.mxu0 %v871
        %1106 = vmatpush.msra.mxu0 %v869
        %1107 = vmatpush.msra.mxu0 %v867
        %1108 = vmatpush.msra.mxu0 %v865
        %1109 = vmatpush.msra.mxu0 %v863
        %1110 = vmatpush.msra.mxu0 %v861
        %1111 = vmatpush.msra.mxu0 %v859
        %1112 = vmatpush.msra.mxu0 %v857
        %1113 = vmatmul.f32.gmra.mxu0 %v1051
        %v1114 = vpop.f32.mrf.mxu0
        %v1115 = vadd.f32 %v1039, %v1114
        %1116 = vmatmul.f32.gmra.mxu0 %v1054
        %v1117 = vpop.f32.mrf.mxu0
        %v1118 = vadd.f32 %v1042, %v1117
        %1119 = vmatmul.f32.gmra.mxu0 %v1057
        %v1120 = vpop.f32.mrf.mxu0
        %v1121 = vadd.f32 %v1045, %v1120
        %1122 = vmatmul.f32.gmra.mxu0 %v1060
        %v1123 = vpop.f32.mrf.mxu0
        %v1124 = vadd.f32 %v1048, %v1123
        %1125 = vdwg.mxu0
        %s1126 = scalar_lea.vmem %s1, 32
        %v1127 = vld [vmem:[%s1126] sm:$0xf]
        %v1128 = vld [vmem:[%s1126 + $0x4] sm:$0xf]
        %v1129 = vld [vmem:[%s1126 + $0x8] sm:$0xf]
        %v1130 = vld [vmem:[%s1126 + $0xc] sm:$0xf]
        %v1131 = vunpack.c.l.bf16 %v1127
        %v1132 = vunpack.c.l.bf16 %v1128
        %v1133 = vunpack.c.l.bf16 %v1129
        %v1134 = vunpack.c.l.bf16 %v1130
        %v1136 = vsel %vm801, %v1131, 0
        %v1139 = vsel %vm801, %v1132, 0
        %v1142 = vsel %vm801, %v1133, 0
        %v1145 = vsel %vm801, %v1134, 0
        %1147 = vmatpush.msra.mxu0 0.0
        %1148 = vmatpush.msra.mxu0 0.0
        %1149 = vmatpush.msra.mxu0 0.0
        %1150 = vmatpush.msra.mxu0 0.0
        %1151 = vmatpush.msra.mxu0 0.0
        %1152 = vmatpush.msra.mxu0 0.0
        %1153 = vmatpush.msra.mxu0 0.0
        %1154 = vmatpush.msra.mxu0 0.0
        %1155 = vmatpush.msra.mxu0 0.0
        %1156 = vmatpush.msra.mxu0 0.0
        %1157 = vmatpush.msra.mxu0 0.0
        %1158 = vmatpush.msra.mxu0 0.0
        %1159 = vmatpush.msra.mxu0 %v792
        %1160 = vmatpush.msra.mxu0 %v791
        %1161 = vmatpush.msra.mxu0 %v790
        %1162 = vmatpush.msra.mxu0 %v789
        %1163 = vmatmul.f32.gmra.mxu0 %v1136
        %v1164 = vpop.f32.mrf.mxu0
        %v1165 = vadd.f32 0.0, %v1164
        %1166 = vmatmul.f32.gmra.mxu0 %v1139
        %v1167 = vpop.f32.mrf.mxu0
        %v1168 = vadd.f32 0.0, %v1167
        %1169 = vmatmul.f32.gmra.mxu0 %v1142
        %v1170 = vpop.f32.mrf.mxu0
        %v1171 = vadd.f32 0.0, %v1170
        %1172 = vmatmul.f32.gmra.mxu0 %v1145
        %v1173 = vpop.f32.mrf.mxu0
        %v1174 = vadd.f32 0.0, %v1173
        %1175 = vdwg.mxu0
        %s1176 = scalar_lea.vmem %s2, 208
        %v1177 = vld [vmem:[%s1176] sm:$0xff]
        %v1178 = vld [vmem:[%s1176 + $0x8] sm:$0xff]
        %v1179 = vld [vmem:[%s1176 + $0x10] sm:$0xff]
        %v1180 = vld [vmem:[%s1176 + $0x18] sm:$0xff]
        %v1181 = vld [vmem:[%s1176 + $0x20] sm:$0xff]
        %v1182 = vld [vmem:[%s1176 + $0x28] sm:$0xff]
        %v1183 = vld [vmem:[%s1176 + $0x30] sm:$0xff]
        %v1184 = vld [vmem:[%s1176 + $0x38] sm:$0xff]
        %v1185 = vld [vmem:[%s1176 + $0x40] sm:$0xff]
        %v1186 = vld [vmem:[%s1176 + $0x48] sm:$0xff]
        %v1187 = vld [vmem:[%s1176 + $0x50] sm:$0xff]
        %v1188 = vld [vmem:[%s1176 + $0x58] sm:$0xff]
        %v1189 = vld [vmem:[%s1176 + $0x60] sm:$0x77]
        %v1190 = vunpack.c.l.bf16 %v1177
        %v1191 = vunpack.c.h.bf16 %v1177
        %v1192 = vunpack.c.l.bf16 %v1178
        %v1193 = vunpack.c.h.bf16 %v1178
        %v1194 = vunpack.c.l.bf16 %v1179
        %v1195 = vunpack.c.h.bf16 %v1179
        %v1196 = vunpack.c.l.bf16 %v1180
        %v1197 = vunpack.c.h.bf16 %v1180
        %v1198 = vunpack.c.l.bf16 %v1181
        %v1199 = vunpack.c.h.bf16 %v1181
        %v1200 = vunpack.c.l.bf16 %v1182
        %v1201 = vunpack.c.h.bf16 %v1182
        %v1202 = vunpack.c.l.bf16 %v1183
        %v1203 = vunpack.c.h.bf16 %v1183
        %v1204 = vunpack.c.l.bf16 %v1184
        %v1205 = vunpack.c.h.bf16 %v1184
        %v1206 = vunpack.c.l.bf16 %v1185
        %v1207 = vunpack.c.h.bf16 %v1185
        %v1208 = vunpack.c.l.bf16 %v1186
        %v1209 = vunpack.c.h.bf16 %v1186
        %v1210 = vunpack.c.l.bf16 %v1187
        %v1211 = vunpack.c.h.bf16 %v1187
        %v1212 = vunpack.c.l.bf16 %v1188
        %v1213 = vunpack.c.h.bf16 %v1188
        %v1214 = vunpack.c.l.bf16 %v1189
        %v1215 = vunpack.c.h.bf16 %v1189
        %v1217 = vsel %vm972, %v1165, 0
        %v1220 = vsel %vm972, %v1168, 0
        %v1223 = vsel %vm972, %v1171, 0
        %v1226 = vsel %vm972, %v1174, 0
        %v1229 = vsel %vm985, %v1214, 0
        %v1232 = vsel %vm985, %v1215, 0
        %1234 = vmatpush.msra.mxu0 0.0
        %1235 = vmatpush.msra.mxu0 0.0
        %1236 = vmatpush.msra.mxu0 0.0
        %1237 = vmatpush.msra.mxu0 %v1229
        %1238 = vmatpush.msra.mxu0 %v1212
        %1239 = vmatpush.msra.mxu0 %v1210
        %1240 = vmatpush.msra.mxu0 %v1208
        %1241 = vmatpush.msra.mxu0 %v1206
        %1242 = vmatpush.msra.mxu0 %v1204
        %1243 = vmatpush.msra.mxu0 %v1202
        %1244 = vmatpush.msra.mxu0 %v1200
        %1245 = vmatpush.msra.mxu0 %v1198
        %1246 = vmatpush.msra.mxu0 %v1196
        %1247 = vmatpush.msra.mxu0 %v1194
        %1248 = vmatpush.msra.mxu0 %v1192
        %1249 = vmatpush.msra.mxu0 %v1190
        %1250 = vmatmul.f32.gmra.mxu0 %v1217
        %v1251 = vpop.f32.mrf.mxu0
        %v1252 = vadd.f32 0.0, %v1251
        %1253 = vmatmul.f32.gmra.mxu0 %v1220
        %v1254 = vpop.f32.mrf.mxu0
        %v1255 = vadd.f32 0.0, %v1254
        %1256 = vmatmul.f32.gmra.mxu0 %v1223
        %v1257 = vpop.f32.mrf.mxu0
        %v1258 = vadd.f32 0.0, %v1257
        %1259 = vmatmul.f32.gmra.mxu0 %v1226
        %v1260 = vpop.f32.mrf.mxu0
        %v1261 = vadd.f32 0.0, %v1260
        %1262 = vdwg.mxu0
        %1263 = vmatpush.msra.mxu0 0.0
        %1264 = vmatpush.msra.mxu0 0.0
        %1265 = vmatpush.msra.mxu0 0.0
        %1266 = vmatpush.msra.mxu0 %v1232
        %1267 = vmatpush.msra.mxu0 %v1213
        %1268 = vmatpush.msra.mxu0 %v1211
        %1269 = vmatpush.msra.mxu0 %v1209
        %1270 = vmatpush.msra.mxu0 %v1207
        %1271 = vmatpush.msra.mxu0 %v1205
        %1272 = vmatpush.msra.mxu0 %v1203
        %1273 = vmatpush.msra.mxu0 %v1201
        %1274 = vmatpush.msra.mxu0 %v1199
        %1275 = vmatpush.msra.mxu0 %v1197
        %1276 = vmatpush.msra.mxu0 %v1195
        %1277 = vmatpush.msra.mxu0 %v1193
        %1278 = vmatpush.msra.mxu0 %v1191
        %1279 = vmatmul.f32.gmra.mxu0 %v1217
        %v1280 = vpop.f32.mrf.mxu0
        %v1281 = vadd.f32 0.0, %v1280
        %1282 = vmatmul.f32.gmra.mxu0 %v1220
        %v1283 = vpop.f32.mrf.mxu0
        %v1284 = vadd.f32 0.0, %v1283
        %1285 = vmatmul.f32.gmra.mxu0 %v1223
        %v1286 = vpop.f32.mrf.mxu0
        %v1287 = vadd.f32 0.0, %v1286
        %1288 = vmatmul.f32.gmra.mxu0 %v1226
        %v1289 = vpop.f32.mrf.mxu0
        %v1290 = vadd.f32 0.0, %v1289
        %1291 = vdwg.mxu0
        %v1292 = vadd.f32 %v1086, %v1252
        %v1293 = vadd.f32 %v1115, %v1281
        %v1294 = vadd.f32 %v1089, %v1255
        %v1295 = vadd.f32 %v1118, %v1284
        %v1296 = vadd.f32 %v1092, %v1258
        %v1297 = vadd.f32 %v1121, %v1287
        %v1298 = vadd.f32 %v1095, %v1261
        %v1299 = vadd.f32 %v1124, %v1290
        %v1300 = vld [vmem:[%s3] sm:$0x3]
        %v1302 = vperm.slane %v1300, 0
        %v1303 = vperm.slane %v1300, 1
        %v1306 = vadd.f32 %v1292, %v1302
        %v1307 = vadd.f32 %v1293, %v1303
        %v1308 = vadd.f32 %v1294, %v1302
        %v1309 = vadd.f32 %v1295, %v1303
        %v1310 = vadd.f32 %v1296, %v1302
        %v1311 = vadd.f32 %v1297, %v1303
        %v1312 = vadd.f32 %v1298, %v1302
        %v1313 = vadd.f32 %v1299, %v1303
        %v1314 = vmax.f32 %v1306, 0.0
        %v1315 = vmax.f32 %v1307, 0.0
        %v1316 = vmax.f32 %v1308, 0.0
        %v1317 = vmax.f32 %v1309, 0.0
        %v1318 = vmax.f32 %v1310, 0.0
        %v1319 = vmax.f32 %v1311, 0.0
        %v1320 = vmax.f32 %v1312, 0.0
        %v1321 = vmax.f32 %v1313, 0.0
        %v1322 = vld [vmem:[%s4] sm:$0xf]
        %v1323 = vld [vmem:[%s4 + $0x4] sm:$0xf]
        %v1324 = vld [vmem:[%s4 + $0x8] sm:$0xf]
        %v1325 = vld [vmem:[%s4 + $0xc] sm:$0xf]
        %v1326 = vld [vmem:[%s4 + $0x10] sm:$0xf]
        %v1327 = vld [vmem:[%s4 + $0x14] sm:$0xf]
        %v1328 = vld [vmem:[%s4 + $0x18] sm:$0xf]
        %v1329 = vld [vmem:[%s4 + $0x1c] sm:$0xf]
        %v1330 = vld [vmem:[%s4 + $0x20] sm:$0xf]
        %v1331 = vld [vmem:[%s4 + $0x24] sm:$0xf]
        %v1332 = vld [vmem:[%s4 + $0x28] sm:$0xf]
        %v1333 = vld [vmem:[%s4 + $0x2c] sm:$0xf]
        %v1334 = vld [vmem:[%s4 + $0x30] sm:$0xf]
        %v1335 = vld [vmem:[%s4 + $0x34] sm:$0xf]
        %v1336 = vld [vmem:[%s4 + $0x38] sm:$0xf]
        %v1337 = vld [vmem:[%s4 + $0x3c] sm:$0xf]
        %v1338 = vld [vmem:[%s4 + $0x40] sm:$0xf]
        %v1339 = vld [vmem:[%s4 + $0x44] sm:$0xf]
        %v1340 = vld [vmem:[%s4 + $0x48] sm:$0xf]
        %v1341 = vld [vmem:[%s4 + $0x4c] sm:$0xf]
        %v1342 = vld [vmem:[%s4 + $0x50] sm:$0xf]
        %v1343 = vld [vmem:[%s4 + $0x54] sm:$0xf]
        %v1344 = vld [vmem:[%s4 + $0x58] sm:$0xf]
        %v1345 = vld [vmem:[%s4 + $0x5c] sm:$0xf]
        %v1346 = vunpack.c.l.bf16 %v1322
        %v1347 = vunpack.c.l.bf16 %v1323
        %v1348 = vunpack.c.l.bf16 %v1324
        %v1349 = vunpack.c.l.bf16 %v1325
        %v1350 = vunpack.c.l.bf16 %v1326
        %v1351 = vunpack.c.l.bf16 %v1327
        %v1352 = vunpack.c.l.bf16 %v1328
        %v1353 = vunpack.c.l.bf16 %v1329
        %v1354 = vunpack.c.l.bf16 %v1330
        %v1355 = vunpack.c.l.bf16 %v1331
        %v1356 = vunpack.c.l.bf16 %v1332
        %v1357 = vunpack.c.l.bf16 %v1333
        %v1358 = vunpack.c.l.bf16 %v1334
        %v1359 = vunpack.c.l.bf16 %v1335
        %v1360 = vunpack.c.l.bf16 %v1336
        %v1361 = vunpack.c.l.bf16 %v1337
        %v1362 = vunpack.c.l.bf16 %v1338
        %v1363 = vunpack.c.l.bf16 %v1339
        %v1364 = vunpack.c.l.bf16 %v1340
        %v1365 = vunpack.c.l.bf16 %v1341
        %v1366 = vunpack.c.l.bf16 %v1342
        %v1367 = vunpack.c.l.bf16 %v1343
        %v1368 = vunpack.c.l.bf16 %v1344
        %v1369 = vunpack.c.l.bf16 %v1345
        %vm1370 = vcmask 523264
        %v1372 = vsel %vm1370, %v1315, 0
        %v1375 = vsel %vm1370, %v1317, 0
        %v1378 = vsel %vm1370, %v1319, 0
        %v1381 = vsel %vm1370, %v1321, 0
        %1383 = vmatpush.msra.mxu0 %v1361
        %1384 = vmatpush.msra.mxu0 %v1360
        %1385 = vmatpush.msra.mxu0 %v1359
        %1386 = vmatpush.msra.mxu0 %v1358
        %1387 = vmatpush.msra.mxu0 %v1357
        %1388 = vmatpush.msra.mxu0 %v1356
        %1389 = vmatpush.msra.mxu0 %v1355
        %1390 = vmatpush.msra.mxu0 %v1354
        %1391 = vmatpush.msra.mxu0 %v1353
        %1392 = vmatpush.msra.mxu0 %v1352
        %1393 = vmatpush.msra.mxu0 %v1351
        %1394 = vmatpush.msra.mxu0 %v1350
        %1395 = vmatpush.msra.mxu0 %v1349
        %1396 = vmatpush.msra.mxu0 %v1348
        %1397 = vmatpush.msra.mxu0 %v1347
        %1398 = vmatpush.msra.mxu0 %v1346
        %1399 = vmatmul.f32.gmra.mxu0 %v1314
        %v1400 = vpop.f32.mrf.mxu0
        %v1401 = vadd.f32 0.0, %v1400
        %1402 = vmatmul.f32.gmra.mxu0 %v1316
        %v1403 = vpop.f32.mrf.mxu0
        %v1404 = vadd.f32 0.0, %v1403
        %1405 = vmatmul.f32.gmra.mxu0 %v1318
        %v1406 = vpop.f32.mrf.mxu0
        %v1407 = vadd.f32 0.0, %v1406
        %1408 = vmatmul.f32.gmra.mxu0 %v1320
        %v1409 = vpop.f32.mrf.mxu0
        %v1410 = vadd.f32 0.0, %v1409
        %1411 = vdwg.mxu0
        %1412 = vmatpush.msra.mxu0 0.0
        %1413 = vmatpush.msra.mxu0 0.0
        %1414 = vmatpush.msra.mxu0 0.0
        %1415 = vmatpush.msra.mxu0 0.0
        %1416 = vmatpush.msra.mxu0 0.0
        %1417 = vmatpush.msra.mxu0 0.0
        %1418 = vmatpush.msra.mxu0 0.0
        %1419 = vmatpush.msra.mxu0 0.0
        %1420 = vmatpush.msra.mxu0 %v1369
        %1421 = vmatpush.msra.mxu0 %v1368
        %1422 = vmatpush.msra.mxu0 %v1367
        %1423 = vmatpush.msra.mxu0 %v1366
        %1424 = vmatpush.msra.mxu0 %v1365
        %1425 = vmatpush.msra.mxu0 %v1364
        %1426 = vmatpush.msra.mxu0 %v1363
        %1427 = vmatpush.msra.mxu0 %v1362
        %1428 = vmatmul.f32.gmra.mxu0 %v1372
        %v1429 = vpop.f32.mrf.mxu0
        %v1430 = vadd.f32 %v1401, %v1429
        %1431 = vmatmul.f32.gmra.mxu0 %v1375
        %v1432 = vpop.f32.mrf.mxu0
        %v1433 = vadd.f32 %v1404, %v1432
        %1434 = vmatmul.f32.gmra.mxu0 %v1378
        %v1435 = vpop.f32.mrf.mxu0
        %v1436 = vadd.f32 %v1407, %v1435
        %1437 = vmatmul.f32.gmra.mxu0 %v1381
        %v1438 = vpop.f32.mrf.mxu0
        %v1439 = vadd.f32 %v1410, %v1438
        %1440 = vdwg.mxu0
        %s1441 = scalar_lea.vmem %s4, 96
        %v1442 = vld [vmem:[%s1441] sm:$0xf]
        %v1443 = vld [vmem:[%s1441 + $0x4] sm:$0xf]
        %v1444 = vld [vmem:[%s1441 + $0x8] sm:$0xf]
        %v1445 = vld [vmem:[%s1441 + $0xc] sm:$0xf]
        %v1446 = vld [vmem:[%s1441 + $0x10] sm:$0xf]
        %v1447 = vld [vmem:[%s1441 + $0x14] sm:$0xf]
        %v1448 = vld [vmem:[%s1441 + $0x18] sm:$0xf]
        %v1449 = vld [vmem:[%s1441 + $0x1c] sm:$0xf]
        %v1450 = vld [vmem:[%s1441 + $0x20] sm:$0xf]
        %v1451 = vld [vmem:[%s1441 + $0x24] sm:$0xf]
        %v1452 = vld [vmem:[%s1441 + $0x28] sm:$0xf]
        %v1453 = vld [vmem:[%s1441 + $0x2c] sm:$0xf]
        %v1454 = vld [vmem:[%s1441 + $0x30] sm:$0xf]
        %v1455 = vld [vmem:[%s1441 + $0x34] sm:$0xf]
        %v1456 = vld [vmem:[%s1441 + $0x38] sm:$0xf]
        %v1457 = vld [vmem:[%s1441 + $0x3c] sm:$0xf]
        %v1458 = vld [vmem:[%s1441 + $0x40] sm:$0xf]
        %v1459 = vld [vmem:[%s1441 + $0x44] sm:$0xf]
        %v1460 = vld [vmem:[%s1441 + $0x48] sm:$0xf]
        %v1461 = vld [vmem:[%s1441 + $0x4c] sm:$0xf]
        %v1462 = vld [vmem:[%s1441 + $0x50] sm:$0xf]
        %v1463 = vld [vmem:[%s1441 + $0x54] sm:$0xf]
        %v1464 = vld [vmem:[%s1441 + $0x58] sm:$0xf]
        %v1465 = vld [vmem:[%s1441 + $0x5c] sm:$0xf]
        %v1466 = vunpack.c.l.bf16 %v1442
        %v1467 = vunpack.c.l.bf16 %v1443
        %v1468 = vunpack.c.l.bf16 %v1444
        %v1469 = vunpack.c.l.bf16 %v1445
        %v1470 = vunpack.c.l.bf16 %v1446
        %v1471 = vunpack.c.l.bf16 %v1447
        %v1472 = vunpack.c.l.bf16 %v1448
        %v1473 = vunpack.c.l.bf16 %v1449
        %v1474 = vunpack.c.l.bf16 %v1450
        %v1475 = vunpack.c.l.bf16 %v1451
        %v1476 = vunpack.c.l.bf16 %v1452
        %v1477 = vunpack.c.l.bf16 %v1453
        %v1478 = vunpack.c.l.bf16 %v1454
        %v1479 = vunpack.c.l.bf16 %v1455
        %v1480 = vunpack.c.l.bf16 %v1456
        %v1481 = vunpack.c.l.bf16 %v1457
        %v1482 = vunpack.c.l.bf16 %v1458
        %v1483 = vunpack.c.l.bf16 %v1459
        %v1484 = vunpack.c.l.bf16 %v1460
        %v1485 = vunpack.c.l.bf16 %v1461
        %v1486 = vunpack.c.l.bf16 %v1462
        %v1487 = vunpack.c.l.bf16 %v1463
        %v1488 = vunpack.c.l.bf16 %v1464
        %v1489 = vunpack.c.l.bf16 %v1465
        %1490 = vmatpush.msra.mxu0 %v1481
        %1491 = vmatpush.msra.mxu0 %v1480
        %1492 = vmatpush.msra.mxu0 %v1479
        %1493 = vmatpush.msra.mxu0 %v1478
        %1494 = vmatpush.msra.mxu0 %v1477
        %1495 = vmatpush.msra.mxu0 %v1476
        %1496 = vmatpush.msra.mxu0 %v1475
        %1497 = vmatpush.msra.mxu0 %v1474
        %1498 = vmatpush.msra.mxu0 %v1473
        %1499 = vmatpush.msra.mxu0 %v1472
        %1500 = vmatpush.msra.mxu0 %v1471
        %1501 = vmatpush.msra.mxu0 %v1470
        %1502 = vmatpush.msra.mxu0 %v1469
        %1503 = vmatpush.msra.mxu0 %v1468
        %1504 = vmatpush.msra.mxu0 %v1467
        %1505 = vmatpush.msra.mxu0 %v1466
        %1506 = vmatmul.f32.gmra.mxu0 %v1314
        %v1507 = vpop.f32.mrf.mxu0
        %v1508 = vadd.f32 0.0, %v1507
        %1509 = vmatmul.f32.gmra.mxu0 %v1316
        %v1510 = vpop.f32.mrf.mxu0
        %v1511 = vadd.f32 0.0, %v1510
        %1512 = vmatmul.f32.gmra.mxu0 %v1318
        %v1513 = vpop.f32.mrf.mxu0
        %v1514 = vadd.f32 0.0, %v1513
        %1515 = vmatmul.f32.gmra.mxu0 %v1320
        %v1516 = vpop.f32.mrf.mxu0
        %v1517 = vadd.f32 0.0, %v1516
        %1518 = vdwg.mxu0
        %1519 = vmatpush.msra.mxu0 0.0
        %1520 = vmatpush.msra.mxu0 0.0
        %1521 = vmatpush.msra.mxu0 0.0
        %1522 = vmatpush.msra.mxu0 0.0
        %1523 = vmatpush.msra.mxu0 0.0
        %1524 = vmatpush.msra.mxu0 0.0
        %1525 = vmatpush.msra.mxu0 0.0
        %1526 = vmatpush.msra.mxu0 0.0
        %1527 = vmatpush.msra.mxu0 %v1489
        %1528 = vmatpush.msra.mxu0 %v1488
        %1529 = vmatpush.msra.mxu0 %v1487
        %1530 = vmatpush.msra.mxu0 %v1486
        %1531 = vmatpush.msra.mxu0 %v1485
        %1532 = vmatpush.msra.mxu0 %v1484
        %1533 = vmatpush.msra.mxu0 %v1483
        %1534 = vmatpush.msra.mxu0 %v1482
        %1535 = vmatmul.f32.gmra.mxu0 %v1372
        %v1536 = vpop.f32.mrf.mxu0
        %v1537 = vadd.f32 %v1508, %v1536
        %1538 = vmatmul.f32.gmra.mxu0 %v1375
        %v1539 = vpop.f32.mrf.mxu0
        %v1540 = vadd.f32 %v1511, %v1539
        %1541 = vmatmul.f32.gmra.mxu0 %v1378
        %v1542 = vpop.f32.mrf.mxu0
        %v1543 = vadd.f32 %v1514, %v1542
        %1544 = vmatmul.f32.gmra.mxu0 %v1381
        %v1545 = vpop.f32.mrf.mxu0
        %v1546 = vadd.f32 %v1517, %v1545
        %1547 = vdwg.mxu0
        %v1548 = vmax.f32 %v1430, %v1537
        %v1549 = vmax.f32 %v1433, %v1540
        %v1550 = vmax.f32 %v1436, %v1543
        %v1551 = vmax.f32 %v1439, %v1546
        %v1552 = vld [vmem:[%s5] sm:$0xf]
        %v1553 = vld [vmem:[%s5 + $0x4] sm:$0xf]
        %v1554 = vunpack.c.l.bf16 %v1552
        %v1555 = vunpack.c.l.bf16 %v1553
        %v1557 = vsel %vm801, %v1554, 0
        %v1560 = vsel %vm801, %v1555, 0
        %1562 = vmatpush.msra.mxu0 0.0
        %1563 = vmatpush.msra.mxu0 0.0
        %1564 = vmatpush.msra.mxu0 0.0
        %1565 = vmatpush.msra.mxu0 0.0
        %1566 = vmatpush.msra.mxu0 0.0
        %1567 = vmatpush.msra.mxu0 0.0
        %1568 = vmatpush.msra.mxu0 0.0
        %1569 = vmatpush.msra.mxu0 0.0
        %1570 = vmatpush.msra.mxu0 0.0
        %1571 = vmatpush.msra.mxu0 0.0
        %1572 = vmatpush.msra.mxu0 0.0
        %1573 = vmatpush.msra.mxu0 0.0
        %1574 = vmatpush.msra.mxu0 %v1551
        %1575 = vmatpush.msra.mxu0 %v1550
        %1576 = vmatpush.msra.mxu0 %v1549
        %1577 = vmatpush.msra.mxu0 %v1548
        %1578 = vmatmul.f32.gmra.mxu0 %v1557
        %v1579 = vpop.f32.mrf.mxu0
        %v1580 = vadd.f32 0.0, %v1579
        %1581 = vmatmul.f32.gmra.mxu0 %v1560
        %v1582 = vpop.f32.mrf.mxu0
        %v1583 = vadd.f32 0.0, %v1582
        %1584 = vdwg.mxu0
        %s1585 = scalar_lea.vmem %s5, 8
        %v1586 = vld [vmem:[%s1585] sm:$0xf]
        %v1587 = vld [vmem:[%s1585 + $0x4] sm:$0xf]
        %v1588 = vunpack.c.l.bf16 %v1586
        %v1589 = vunpack.c.l.bf16 %v1587
        %v1591 = vsel %vm801, %v1588, 0
        %v1594 = vsel %vm801, %v1589, 0
        %1596 = vmatpush.msra.mxu0 0.0
        %1597 = vmatpush.msra.mxu0 0.0
        %1598 = vmatpush.msra.mxu0 0.0
        %1599 = vmatpush.msra.mxu0 0.0
        %1600 = vmatpush.msra.mxu0 0.0
        %1601 = vmatpush.msra.mxu0 0.0
        %1602 = vmatpush.msra.mxu0 0.0
        %1603 = vmatpush.msra.mxu0 0.0
        %1604 = vmatpush.msra.mxu0 0.0
        %1605 = vmatpush.msra.mxu0 0.0
        %1606 = vmatpush.msra.mxu0 0.0
        %1607 = vmatpush.msra.mxu0 0.0
        %1608 = vmatpush.msra.mxu0 %v1551
        %1609 = vmatpush.msra.mxu0 %v1550
        %1610 = vmatpush.msra.mxu0 %v1549
        %1611 = vmatpush.msra.mxu0 %v1548
        %1612 = vmatmul.f32.gmra.mxu0 %v1591
        %v1613 = vpop.f32.mrf.mxu0
        %v1614 = vadd.f32 0.0, %v1613
        %1615 = vmatmul.f32.gmra.mxu0 %v1594
        %v1616 = vpop.f32.mrf.mxu0
        %v1617 = vadd.f32 0.0, %v1616
        %1618 = vdwg.mxu0
        %v1619 = vmax.f32 %v1580, %v1614
        %v1620 = vmax.f32 %v1583, %v1617
        %v1621 = vld [vmem:[%s6] sm:$0xf]
        %v1622 = vld [vmem:[%s6 + $0x4] sm:$0xf]
        %v1623 = vunpack.c.l.bf16 %v1621
        %v1624 = vunpack.c.l.bf16 %v1622
        %vm1625 = vcmask 130048
        %v1627 = vsel %vm1625, %v1623, 0
        %v1630 = vsel %vm1625, %v1624, 0
        %1632 = vmatpush.msra.mxu0 0.0
        %1633 = vmatpush.msra.mxu0 0.0
        %1634 = vmatpush.msra.mxu0 0.0
        %1635 = vmatpush.msra.mxu0 0.0
        %1636 = vmatpush.msra.mxu0 0.0
        %1637 = vmatpush.msra.mxu0 0.0
        %1638 = vmatpush.msra.mxu0 0.0
        %1639 = vmatpush.msra.mxu0 0.0
        %1640 = vmatpush.msra.mxu0 0.0
        %1641 = vmatpush.msra.mxu0 0.0
        %1642 = vmatpush.msra.mxu0 0.0
        %1643 = vmatpush.msra.mxu0 0.0
        %1644 = vmatpush.msra.mxu0 0.0
        %1645 = vmatpush.msra.mxu0 0.0
        %1646 = vmatpush.msra.mxu0 %v1620
        %1647 = vmatpush.msra.mxu0 %v1619
        %1648 = vmatmul.f32.gmra.mxu0 %v1627
        %v1649 = vpop.f32.mrf.mxu0
        %v1650 = vadd.f32 0.0, %v1649
        %1651 = vmatmul.f32.gmra.mxu0 %v1630
        %v1652 = vpop.f32.mrf.mxu0
        %v1653 = vadd.f32 0.0, %v1652
        %1654 = vdwg.mxu0
        %v1655 = vld [vmem:[%s7] sm:$0xff]
        %v1656 = vld [vmem:[%s7 + $0x8] sm:$0xff]
        %v1657 = vld [vmem:[%s7 + $0x10] sm:$0xff]
        %v1658 = vld [vmem:[%s7 + $0x18] sm:$0xff]
        %v1659 = vld [vmem:[%s7 + $0x20] sm:$0xff]
        %v1660 = vld [vmem:[%s7 + $0x28] sm:$0xff]
        %v1661 = vld [vmem:[%s7 + $0x30] sm:$0xff]
        %v1662 = vld [vmem:[%s7 + $0x38] sm:$0xff]
        %v1663 = vld [vmem:[%s7 + $0x40] sm:$0xff]
        %v1664 = vld [vmem:[%s7 + $0x48] sm:$0xff]
        %v1665 = vld [vmem:[%s7 + $0x50] sm:$0xff]
        %v1666 = vld [vmem:[%s7 + $0x58] sm:$0xff]
        %v1667 = vld [vmem:[%s7 + $0x60] sm:$0xff]
        %v1668 = vld [vmem:[%s7 + $0x68] sm:$0x33]
        %v1669 = vunpack.c.l.bf16 %v1655
        %v1670 = vunpack.c.h.bf16 %v1655
        %v1671 = vunpack.c.l.bf16 %v1656
        %v1672 = vunpack.c.h.bf16 %v1656
        %v1673 = vunpack.c.l.bf16 %v1657
        %v1674 = vunpack.c.h.bf16 %v1657
        %v1675 = vunpack.c.l.bf16 %v1658
        %v1676 = vunpack.c.h.bf16 %v1658
        %v1677 = vunpack.c.l.bf16 %v1659
        %v1678 = vunpack.c.h.bf16 %v1659
        %v1679 = vunpack.c.l.bf16 %v1660
        %v1680 = vunpack.c.h.bf16 %v1660
        %v1681 = vunpack.c.l.bf16 %v1661
        %v1682 = vunpack.c.h.bf16 %v1661
        %v1683 = vunpack.c.l.bf16 %v1662
        %v1684 = vunpack.c.h.bf16 %v1662
        %v1685 = vunpack.c.l.bf16 %v1663
        %v1686 = vunpack.c.h.bf16 %v1663
        %v1687 = vunpack.c.l.bf16 %v1664
        %v1688 = vunpack.c.h.bf16 %v1664
        %v1689 = vunpack.c.l.bf16 %v1665
        %v1690 = vunpack.c.h.bf16 %v1665
        %v1691 = vunpack.c.l.bf16 %v1666
        %v1692 = vunpack.c.h.bf16 %v1666
        %v1693 = vunpack.c.l.bf16 %v1667
        %v1694 = vunpack.c.h.bf16 %v1667
        %v1695 = vunpack.c.l.bf16 %v1668
        %v1696 = vunpack.c.h.bf16 %v1668
        %s1697 = scalar_lea.vmem %s6, 8
        %v1698 = vld [vmem:[%s1697] sm:$0xf]
        %v1699 = vld [vmem:[%s1697 + $0x4] sm:$0xf]
        %v1700 = vunpack.c.l.bf16 %v1698
        %v1701 = vunpack.c.l.bf16 %v1699
        %v1703 = vsel %vm1625, %v1700, 0
        %v1706 = vsel %vm1625, %v1701, 0
        %1708 = vmatpush.msra.mxu0 0.0
        %1709 = vmatpush.msra.mxu0 0.0
        %1710 = vmatpush.msra.mxu0 0.0
        %1711 = vmatpush.msra.mxu0 0.0
        %1712 = vmatpush.msra.mxu0 0.0
        %1713 = vmatpush.msra.mxu0 0.0
        %1714 = vmatpush.msra.mxu0 0.0
        %1715 = vmatpush.msra.mxu0 0.0
        %1716 = vmatpush.msra.mxu0 0.0
        %1717 = vmatpush.msra.mxu0 0.0
        %1718 = vmatpush.msra.mxu0 0.0
        %1719 = vmatpush.msra.mxu0 0.0
        %1720 = vmatpush.msra.mxu0 0.0
        %1721 = vmatpush.msra.mxu0 0.0
        %1722 = vmatpush.msra.mxu0 %v1620
        %1723 = vmatpush.msra.mxu0 %v1619
        %1724 = vmatmul.f32.gmra.mxu0 %v1703
        %v1725 = vpop.f32.mrf.mxu0
        %v1726 = vadd.f32 0.0, %v1725
        %1727 = vmatmul.f32.gmra.mxu0 %v1706
        %v1728 = vpop.f32.mrf.mxu0
        %v1729 = vadd.f32 0.0, %v1728
        %1730 = vdwg.mxu0
        %s1731 = scalar_lea.vmem %s7, 112
        %v1732 = vld [vmem:[%s1731] sm:$0xff]
        %v1733 = vld [vmem:[%s1731 + $0x8] sm:$0xff]
        %v1734 = vld [vmem:[%s1731 + $0x10] sm:$0xff]
        %v1735 = vld [vmem:[%s1731 + $0x18] sm:$0xff]
        %v1736 = vld [vmem:[%s1731 + $0x20] sm:$0xff]
        %v1737 = vld [vmem:[%s1731 + $0x28] sm:$0xff]
        %v1738 = vld [vmem:[%s1731 + $0x30] sm:$0xff]
        %v1739 = vld [vmem:[%s1731 + $0x38] sm:$0xff]
        %v1740 = vld [vmem:[%s1731 + $0x40] sm:$0xff]
        %v1741 = vld [vmem:[%s1731 + $0x48] sm:$0xff]
        %v1742 = vld [vmem:[%s1731 + $0x50] sm:$0xff]
        %v1743 = vld [vmem:[%s1731 + $0x58] sm:$0xff]
        %v1744 = vld [vmem:[%s1731 + $0x60] sm:$0xff]
        %v1745 = vld [vmem:[%s1731 + $0x68] sm:$0x33]
        %v1746 = vunpack.c.l.bf16 %v1732
        %v1747 = vunpack.c.h.bf16 %v1732
        %v1748 = vunpack.c.l.bf16 %v1733
        %v1749 = vunpack.c.h.bf16 %v1733
        %v1750 = vunpack.c.l.bf16 %v1734
        %v1751 = vunpack.c.h.bf16 %v1734
        %v1752 = vunpack.c.l.bf16 %v1735
        %v1753 = vunpack.c.h.bf16 %v1735
        %v1754 = vunpack.c.l.bf16 %v1736
        %v1755 = vunpack.c.h.bf16 %v1736
        %v1756 = vunpack.c.l.bf16 %v1737
        %v1757 = vunpack.c.h.bf16 %v1737
        %v1758 = vunpack.c.l.bf16 %v1738
        %v1759 = vunpack.c.h.bf16 %v1738
        %v1760 = vunpack.c.l.bf16 %v1739
        %v1761 = vunpack.c.h.bf16 %v1739
        %v1762 = vunpack.c.l.bf16 %v1740
        %v1763 = vunpack.c.h.bf16 %v1740
        %v1764 = vunpack.c.l.bf16 %v1741
        %v1765 = vunpack.c.h.bf16 %v1741
        %v1766 = vunpack.c.l.bf16 %v1742
        %v1767 = vunpack.c.h.bf16 %v1742
        %v1768 = vunpack.c.l.bf16 %v1743
        %v1769 = vunpack.c.h.bf16 %v1743
        %v1770 = vunpack.c.l.bf16 %v1744
        %v1771 = vunpack.c.h.bf16 %v1744
        %v1772 = vunpack.c.l.bf16 %v1745
        %v1773 = vunpack.c.h.bf16 %v1745
        %vm1774 = vcmask 883712
        %v1776 = vsel %vm1774, %v1726, 0
        %v1779 = vsel %vm1774, %v1729, 0
        %vm1781 = vcmask 1043456
        %v1783 = vsel %vm1781, %v1772, 0
        %v1786 = vsel %vm1781, %v1773, 0
        %1788 = vmatpush.msra.mxu0 0.0
        %1789 = vmatpush.msra.mxu0 0.0
        %1790 = vmatpush.msra.mxu0 %v1783
        %1791 = vmatpush.msra.mxu0 %v1770
        %1792 = vmatpush.msra.mxu0 %v1768
        %1793 = vmatpush.msra.mxu0 %v1766
        %1794 = vmatpush.msra.mxu0 %v1764
        %1795 = vmatpush.msra.mxu0 %v1762
        %1796 = vmatpush.msra.mxu0 %v1760
        %1797 = vmatpush.msra.mxu0 %v1758
        %1798 = vmatpush.msra.mxu0 %v1756
        %1799 = vmatpush.msra.mxu0 %v1754
        %1800 = vmatpush.msra.mxu0 %v1752
        %1801 = vmatpush.msra.mxu0 %v1750
        %1802 = vmatpush.msra.mxu0 %v1748
        %1803 = vmatpush.msra.mxu0 %v1746
        %1804 = vmatmul.f32.gmra.mxu0 %v1776
        %v1805 = vpop.f32.mrf.mxu0
        %v1806 = vadd.f32 0.0, %v1805
        %1807 = vmatmul.f32.gmra.mxu0 %v1779
        %v1808 = vpop.f32.mrf.mxu0
        %v1809 = vadd.f32 0.0, %v1808
        %1810 = vdwg.mxu0
        %1811 = vmatpush.msra.mxu0 0.0
        %1812 = vmatpush.msra.mxu0 0.0
        %1813 = vmatpush.msra.mxu0 %v1786
        %1814 = vmatpush.msra.mxu0 %v1771
        %1815 = vmatpush.msra.mxu0 %v1769
        %1816 = vmatpush.msra.mxu0 %v1767
        %1817 = vmatpush.msra.mxu0 %v1765
        %1818 = vmatpush.msra.mxu0 %v1763
        %1819 = vmatpush.msra.mxu0 %v1761
        %1820 = vmatpush.msra.mxu0 %v1759
        %1821 = vmatpush.msra.mxu0 %v1757
        %1822 = vmatpush.msra.mxu0 %v1755
        %1823 = vmatpush.msra.mxu0 %v1753
        %1824 = vmatpush.msra.mxu0 %v1751
        %1825 = vmatpush.msra.mxu0 %v1749
        %1826 = vmatpush.msra.mxu0 %v1747
        %1827 = vmatmul.f32.gmra.mxu0 %v1776
        %v1828 = vpop.f32.mrf.mxu0
        %v1829 = vadd.f32 0.0, %v1828
        %1830 = vmatmul.f32.gmra.mxu0 %v1779
        %v1831 = vpop.f32.mrf.mxu0
        %v1832 = vadd.f32 0.0, %v1831
        %1833 = vdwg.mxu0
        %v1835 = vsel %vm1774, %v1650, 0
        %v1838 = vsel %vm1774, %v1653, 0
        %v1841 = vsel %vm1781, %v1695, 0
        %v1844 = vsel %vm1781, %v1696, 0
        %1846 = vmatpush.msra.mxu0 0.0
        %1847 = vmatpush.msra.mxu0 0.0
        %1848 = vmatpush.msra.mxu0 %v1841
        %1849 = vmatpush.msra.mxu0 %v1693
        %1850 = vmatpush.msra.mxu0 %v1691
        %1851 = vmatpush.msra.mxu0 %v1689
        %1852 = vmatpush.msra.mxu0 %v1687
        %1853 = vmatpush.msra.mxu0 %v1685
        %1854 = vmatpush.msra.mxu0 %v1683
        %1855 = vmatpush.msra.mxu0 %v1681
        %1856 = vmatpush.msra.mxu0 %v1679
        %1857 = vmatpush.msra.mxu0 %v1677
        %1858 = vmatpush.msra.mxu0 %v1675
        %1859 = vmatpush.msra.mxu0 %v1673
        %1860 = vmatpush.msra.mxu0 %v1671
        %1861 = vmatpush.msra.mxu0 %v1669
        %1862 = vmatmul.f32.gmra.mxu0 %v1835
        %v1863 = vpop.f32.mrf.mxu0
        %v1864 = vadd.f32 %v1806, %v1863
        %1865 = vmatmul.f32.gmra.mxu0 %v1838
        %v1866 = vpop.f32.mrf.mxu0
        %v1867 = vadd.f32 %v1809, %v1866
        %1868 = vdwg.mxu0
        %1869 = vmatpush.msra.mxu0 0.0
        %1870 = vmatpush.msra.mxu0 0.0
        %1871 = vmatpush.msra.mxu0 %v1844
        %1872 = vmatpush.msra.mxu0 %v1694
        %1873 = vmatpush.msra.mxu0 %v1692
        %1874 = vmatpush.msra.mxu0 %v1690
        %1875 = vmatpush.msra.mxu0 %v1688
        %1876 = vmatpush.msra.mxu0 %v1686
        %1877 = vmatpush.msra.mxu0 %v1684
        %1878 = vmatpush.msra.mxu0 %v1682
        %1879 = vmatpush.msra.mxu0 %v1680
        %1880 = vmatpush.msra.mxu0 %v1678
        %1881 = vmatpush.msra.mxu0 %v1676
        %1882 = vmatpush.msra.mxu0 %v1674
        %1883 = vmatpush.msra.mxu0 %v1672
        %1884 = vmatpush.msra.mxu0 %v1670
        %1885 = vmatmul.f32.gmra.mxu0 %v1835
        %v1886 = vpop.f32.mrf.mxu0
        %v1887 = vadd.f32 %v1829, %v1886
        %1888 = vmatmul.f32.gmra.mxu0 %v1838
        %v1889 = vpop.f32.mrf.mxu0
        %v1890 = vadd.f32 %v1832, %v1889
        %1891 = vdwg.mxu0
        %s1892 = scalar_lea.vmem %s6, 16
        %v1893 = vld [vmem:[%s1892] sm:$0xf]
        %v1894 = vld [vmem:[%s1892 + $0x4] sm:$0xf]
        %v1895 = vunpack.c.l.bf16 %v1893
        %v1896 = vunpack.c.l.bf16 %v1894
        %v1898 = vsel %vm1625, %v1895, 0
        %v1901 = vsel %vm1625, %v1896, 0
        %1903 = vmatpush.msra.mxu0 0.0
        %1904 = vmatpush.msra.mxu0 0.0
        %1905 = vmatpush.msra.mxu0 0.0
        %1906 = vmatpush.msra.mxu0 0.0
        %1907 = vmatpush.msra.mxu0 0.0
        %1908 = vmatpush.msra.mxu0 0.0
        %1909 = vmatpush.msra.mxu0 0.0
        %1910 = vmatpush.msra.mxu0 0.0
        %1911 = vmatpush.msra.mxu0 0.0
        %1912 = vmatpush.msra.mxu0 0.0
        %1913 = vmatpush.msra.mxu0 0.0
        %1914 = vmatpush.msra.mxu0 0.0
        %1915 = vmatpush.msra.mxu0 0.0
        %1916 = vmatpush.msra.mxu0 0.0
        %1917 = vmatpush.msra.mxu0 %v1620
        %1918 = vmatpush.msra.mxu0 %v1619
        %1919 = vmatmul.f32.gmra.mxu0 %v1898
        %v1920 = vpop.f32.mrf.mxu0
        %v1921 = vadd.f32 0.0, %v1920
        %1922 = vmatmul.f32.gmra.mxu0 %v1901
        %v1923 = vpop.f32.mrf.mxu0
        %v1924 = vadd.f32 0.0, %v1923
        %1925 = vdwg.mxu0
        %s1926 = scalar_lea.vmem %s7, 224
        %v1927 = vld [vmem:[%s1926] sm:$0xff]
        %v1928 = vld [vmem:[%s1926 + $0x8] sm:$0xff]
        %v1929 = vld [vmem:[%s1926 + $0x10] sm:$0xff]
        %v1930 = vld [vmem:[%s1926 + $0x18] sm:$0xff]
        %v1931 = vld [vmem:[%s1926 + $0x20] sm:$0xff]
        %v1932 = vld [vmem:[%s1926 + $0x28] sm:$0xff]
        %v1933 = vld [vmem:[%s1926 + $0x30] sm:$0xff]
        %v1934 = vld [vmem:[%s1926 + $0x38] sm:$0xff]
        %v1935 = vld [vmem:[%s1926 + $0x40] sm:$0xff]
        %v1936 = vld [vmem:[%s1926 + $0x48] sm:$0xff]
        %v1937 = vld [vmem:[%s1926 + $0x50] sm:$0xff]
        %v1938 = vld [vmem:[%s1926 + $0x58] sm:$0xff]
        %v1939 = vld [vmem:[%s1926 + $0x60] sm:$0xff]
        %v1940 = vld [vmem:[%s1926 + $0x68] sm:$0x33]
        %v1941 = vunpack.c.l.bf16 %v1927
        %v1942 = vunpack.c.h.bf16 %v1927
        %v1943 = vunpack.c.l.bf16 %v1928
        %v1944 = vunpack.c.h.bf16 %v1928
        %v1945 = vunpack.c.l.bf16 %v1929
        %v1946 = vunpack.c.h.bf16 %v1929
        %v1947 = vunpack.c.l.bf16 %v1930
        %v1948 = vunpack.c.h.bf16 %v1930
        %v1949 = vunpack.c.l.bf16 %v1931
        %v1950 = vunpack.c.h.bf16 %v1931
        %v1951 = vunpack.c.l.bf16 %v1932
        %v1952 = vunpack.c.h.bf16 %v1932
        %v1953 = vunpack.c.l.bf16 %v1933
        %v1954 = vunpack.c.h.bf16 %v1933
        %v1955 = vunpack.c.l.bf16 %v1934
        %v1956 = vunpack.c.h.bf16 %v1934
        %v1957 = vunpack.c.l.bf16 %v1935
        %v1958 = vunpack.c.h.bf16 %v1935
        %v1959 = vunpack.c.l.bf16 %v1936
        %v1960 = vunpack.c.h.bf16 %v1936
        %v1961 = vunpack.c.l.bf16 %v1937
        %v1962 = vunpack.c.h.bf16 %v1937
        %v1963 = vunpack.c.l.bf16 %v1938
        %v1964 = vunpack.c.h.bf16 %v1938
        %v1965 = vunpack.c.l.bf16 %v1939
        %v1966 = vunpack.c.h.bf16 %v1939
        %v1967 = vunpack.c.l.bf16 %v1940
        %v1968 = vunpack.c.h.bf16 %v1940
        %v1970 = vsel %vm1774, %v1921, 0
        %v1973 = vsel %vm1774, %v1924, 0
        %v1976 = vsel %vm1781, %v1967, 0
        %v1979 = vsel %vm1781, %v1968, 0
        %1981 = vmatpush.msra.mxu0 0.0
        %1982 = vmatpush.msra.mxu0 0.0
        %1983 = vmatpush.msra.mxu0 %v1976
        %1984 = vmatpush.msra.mxu0 %v1965
        %1985 = vmatpush.msra.mxu0 %v1963
        %1986 = vmatpush.msra.mxu0 %v1961
        %1987 = vmatpush.msra.mxu0 %v1959
        %1988 = vmatpush.msra.mxu0 %v1957
        %1989 = vmatpush.msra.mxu0 %v1955
        %1990 = vmatpush.msra.mxu0 %v1953
        %1991 = vmatpush.msra.mxu0 %v1951
        %1992 = vmatpush.msra.mxu0 %v1949
        %1993 = vmatpush.msra.mxu0 %v1947
        %1994 = vmatpush.msra.mxu0 %v1945
        %1995 = vmatpush.msra.mxu0 %v1943
        %1996 = vmatpush.msra.mxu0 %v1941
        %1997 = vmatmul.f32.gmra.mxu0 %v1970
        %v1998 = vpop.f32.mrf.mxu0
        %v1999 = vadd.f32 0.0, %v1998
        %2000 = vmatmul.f32.gmra.mxu0 %v1973
        %v2001 = vpop.f32.mrf.mxu0
        %v2002 = vadd.f32 0.0, %v2001
        %2003 = vdwg.mxu0
        %2004 = vmatpush.msra.mxu0 0.0
        %2005 = vmatpush.msra.mxu0 0.0
        %2006 = vmatpush.msra.mxu0 %v1979
        %2007 = vmatpush.msra.mxu0 %v1966
        %2008 = vmatpush.msra.mxu0 %v1964
        %2009 = vmatpush.msra.mxu0 %v1962
        %2010 = vmatpush.msra.mxu0 %v1960
        %2011 = vmatpush.msra.mxu0 %v1958
        %2012 = vmatpush.msra.mxu0 %v1956
        %2013 = vmatpush.msra.mxu0 %v1954
        %2014 = vmatpush.msra.mxu0 %v1952
        %2015 = vmatpush.msra.mxu0 %v1950
        %2016 = vmatpush.msra.mxu0 %v1948
        %2017 = vmatpush.msra.mxu0 %v1946
        %2018 = vmatpush.msra.mxu0 %v1944
        %2019 = vmatpush.msra.mxu0 %v1942
        %2020 = vmatmul.f32.gmra.mxu0 %v1970
        %v2021 = vpop.f32.mrf.mxu0
        %v2022 = vadd.f32 0.0, %v2021
        %2023 = vmatmul.f32.gmra.mxu0 %v1973
        %v2024 = vpop.f32.mrf.mxu0
        %v2025 = vadd.f32 0.0, %v2024
        %2026 = vdwg.mxu0
        %v2027 = vadd.f32 %v1864, %v1999
        %v2028 = vadd.f32 %v1887, %v2022
        %v2029 = vadd.f32 %v1867, %v2002
        %v2030 = vadd.f32 %v1890, %v2025
        %v2031 = vld [vmem:[%s8] sm:$0x3]
        %v2033 = vperm.slane %v2031, 0
        %v2034 = vperm.slane %v2031, 1
        %v2037 = vadd.f32 %v2027, %v2033
        %v2038 = vadd.f32 %v2028, %v2034
        %v2039 = vadd.f32 %v2029, %v2033
        %v2040 = vadd.f32 %v2030, %v2034
        %v2041 = vmax.f32 %v2037, 0.0
        %v2042 = vmax.f32 %v2038, 0.0
        %v2043 = vmax.f32 %v2039, 0.0
        %v2044 = vmax.f32 %v2040, 0.0
        %v2045 = vld [vmem:[%s9] sm:$0xf]
        %v2046 = vld [vmem:[%s9 + $0x4] sm:$0xf]
        %v2047 = vld [vmem:[%s9 + $0x8] sm:$0xf]
        %v2048 = vld [vmem:[%s9 + $0xc] sm:$0xf]
        %v2049 = vld [vmem:[%s9 + $0x10] sm:$0xf]
        %v2050 = vld [vmem:[%s9 + $0x14] sm:$0xf]
        %v2051 = vld [vmem:[%s9 + $0x18] sm:$0xf]
        %v2052 = vld [vmem:[%s9 + $0x1c] sm:$0xf]
        %v2053 = vld [vmem:[%s9 + $0x20] sm:$0xf]
        %v2054 = vld [vmem:[%s9 + $0x24] sm:$0xf]
        %v2055 = vld [vmem:[%s9 + $0x28] sm:$0xf]
        %v2056 = vld [vmem:[%s9 + $0x2c] sm:$0xf]
        %v2057 = vld [vmem:[%s9 + $0x30] sm:$0xf]
        %v2058 = vld [vmem:[%s9 + $0x34] sm:$0xf]
        %v2059 = vld [vmem:[%s9 + $0x38] sm:$0xf]
        %v2060 = vld [vmem:[%s9 + $0x3c] sm:$0xf]
        %v2061 = vld [vmem:[%s9 + $0x40] sm:$0xf]
        %v2062 = vld [vmem:[%s9 + $0x44] sm:$0xf]
        %v2063 = vld [vmem:[%s9 + $0x48] sm:$0xf]
        %v2064 = vld [vmem:[%s9 + $0x4c] sm:$0xf]
        %v2065 = vld [vmem:[%s9 + $0x50] sm:$0xf]
        %v2066 = vld [vmem:[%s9 + $0x54] sm:$0xf]
        %v2067 = vld [vmem:[%s9 + $0x58] sm:$0xf]
        %v2068 = vld [vmem:[%s9 + $0x5c] sm:$0xf]
        %v2069 = vunpack.c.l.bf16 %v2045
        %v2070 = vunpack.c.l.bf16 %v2046
        %v2071 = vunpack.c.l.bf16 %v2047
        %v2072 = vunpack.c.l.bf16 %v2048
        %v2073 = vunpack.c.l.bf16 %v2049
        %v2074 = vunpack.c.l.bf16 %v2050
        %v2075 = vunpack.c.l.bf16 %v2051
        %v2076 = vunpack.c.l.bf16 %v2052
        %v2077 = vunpack.c.l.bf16 %v2053
        %v2078 = vunpack.c.l.bf16 %v2054
        %v2079 = vunpack.c.l.bf16 %v2055
        %v2080 = vunpack.c.l.bf16 %v2056
        %v2081 = vunpack.c.l.bf16 %v2057
        %v2082 = vunpack.c.l.bf16 %v2058
        %v2083 = vunpack.c.l.bf16 %v2059
        %v2084 = vunpack.c.l.bf16 %v2060
        %v2085 = vunpack.c.l.bf16 %v2061
        %v2086 = vunpack.c.l.bf16 %v2062
        %v2087 = vunpack.c.l.bf16 %v2063
        %v2088 = vunpack.c.l.bf16 %v2064
        %v2089 = vunpack.c.l.bf16 %v2065
        %v2090 = vunpack.c.l.bf16 %v2066
        %v2091 = vunpack.c.l.bf16 %v2067
        %v2092 = vunpack.c.l.bf16 %v2068
        %v2094 = vsel %vm1370, %v2042, 0
        %v2097 = vsel %vm1370, %v2044, 0
        %2099 = vmatpush.msra.mxu0 %v2084
        %2100 = vmatpush.msra.mxu0 %v2083
        %2101 = vmatpush.msra.mxu0 %v2082
        %2102 = vmatpush.msra.mxu0 %v2081
        %2103 = vmatpush.msra.mxu0 %v2080
        %2104 = vmatpush.msra.mxu0 %v2079
        %2105 = vmatpush.msra.mxu0 %v2078
        %2106 = vmatpush.msra.mxu0 %v2077
        %2107 = vmatpush.msra.mxu0 %v2076
        %2108 = vmatpush.msra.mxu0 %v2075
        %2109 = vmatpush.msra.mxu0 %v2074
        %2110 = vmatpush.msra.mxu0 %v2073
        %2111 = vmatpush.msra.mxu0 %v2072
        %2112 = vmatpush.msra.mxu0 %v2071
        %2113 = vmatpush.msra.mxu0 %v2070
        %2114 = vmatpush.msra.mxu0 %v2069
        %2115 = vmatmul.f32.gmra.mxu0 %v2041
        %v2116 = vpop.f32.mrf.mxu0
        %v2117 = vadd.f32 0.0, %v2116
        %2118 = vmatmul.f32.gmra.mxu0 %v2043
        %v2119 = vpop.f32.mrf.mxu0
        %v2120 = vadd.f32 0.0, %v2119
        %2121 = vdwg.mxu0
        %2122 = vmatpush.msra.mxu0 0.0
        %2123 = vmatpush.msra.mxu0 0.0
        %2124 = vmatpush.msra.mxu0 0.0
        %2125 = vmatpush.msra.mxu0 0.0
        %2126 = vmatpush.msra.mxu0 0.0
        %2127 = vmatpush.msra.mxu0 0.0
        %2128 = vmatpush.msra.mxu0 0.0
        %2129 = vmatpush.msra.mxu0 0.0
        %2130 = vmatpush.msra.mxu0 %v2092
        %2131 = vmatpush.msra.mxu0 %v2091
        %2132 = vmatpush.msra.mxu0 %v2090
        %2133 = vmatpush.msra.mxu0 %v2089
        %2134 = vmatpush.msra.mxu0 %v2088
        %2135 = vmatpush.msra.mxu0 %v2087
        %2136 = vmatpush.msra.mxu0 %v2086
        %2137 = vmatpush.msra.mxu0 %v2085
        %2138 = vmatmul.f32.gmra.mxu0 %v2094
        %v2139 = vpop.f32.mrf.mxu0
        %v2140 = vadd.f32 %v2117, %v2139
        %2141 = vmatmul.f32.gmra.mxu0 %v2097
        %v2142 = vpop.f32.mrf.mxu0
        %v2143 = vadd.f32 %v2120, %v2142
        %2144 = vdwg.mxu0
        %s2145 = scalar_lea.vmem %s9, 96
        %v2146 = vld [vmem:[%s2145] sm:$0xf]
        %v2147 = vld [vmem:[%s2145 + $0x4] sm:$0xf]
        %v2148 = vld [vmem:[%s2145 + $0x8] sm:$0xf]
        %v2149 = vld [vmem:[%s2145 + $0xc] sm:$0xf]
        %v2150 = vld [vmem:[%s2145 + $0x10] sm:$0xf]
        %v2151 = vld [vmem:[%s2145 + $0x14] sm:$0xf]
        %v2152 = vld [vmem:[%s2145 + $0x18] sm:$0xf]
        %v2153 = vld [vmem:[%s2145 + $0x1c] sm:$0xf]
        %v2154 = vld [vmem:[%s2145 + $0x20] sm:$0xf]
        %v2155 = vld [vmem:[%s2145 + $0x24] sm:$0xf]
        %v2156 = vld [vmem:[%s2145 + $0x28] sm:$0xf]
        %v2157 = vld [vmem:[%s2145 + $0x2c] sm:$0xf]
        %v2158 = vld [vmem:[%s2145 + $0x30] sm:$0xf]
        %v2159 = vld [vmem:[%s2145 + $0x34] sm:$0xf]
        %v2160 = vld [vmem:[%s2145 + $0x38] sm:$0xf]
        %v2161 = vld [vmem:[%s2145 + $0x3c] sm:$0xf]
        %v2162 = vld [vmem:[%s2145 + $0x40] sm:$0xf]
        %v2163 = vld [vmem:[%s2145 + $0x44] sm:$0xf]
        %v2164 = vld [vmem:[%s2145 + $0x48] sm:$0xf]
        %v2165 = vld [vmem:[%s2145 + $0x4c] sm:$0xf]
        %v2166 = vld [vmem:[%s2145 + $0x50] sm:$0xf]
        %v2167 = vld [vmem:[%s2145 + $0x54] sm:$0xf]
        %v2168 = vld [vmem:[%s2145 + $0x58] sm:$0xf]
        %v2169 = vld [vmem:[%s2145 + $0x5c] sm:$0xf]
        %v2170 = vunpack.c.l.bf16 %v2146
        %v2171 = vunpack.c.l.bf16 %v2147
        %v2172 = vunpack.c.l.bf16 %v2148
        %v2173 = vunpack.c.l.bf16 %v2149
        %v2174 = vunpack.c.l.bf16 %v2150
        %v2175 = vunpack.c.l.bf16 %v2151
        %v2176 = vunpack.c.l.bf16 %v2152
        %v2177 = vunpack.c.l.bf16 %v2153
        %v2178 = vunpack.c.l.bf16 %v2154
        %v2179 = vunpack.c.l.bf16 %v2155
        %v2180 = vunpack.c.l.bf16 %v2156
        %v2181 = vunpack.c.l.bf16 %v2157
        %v2182 = vunpack.c.l.bf16 %v2158
        %v2183 = vunpack.c.l.bf16 %v2159
        %v2184 = vunpack.c.l.bf16 %v2160
        %v2185 = vunpack.c.l.bf16 %v2161
        %v2186 = vunpack.c.l.bf16 %v2162
        %v2187 = vunpack.c.l.bf16 %v2163
        %v2188 = vunpack.c.l.bf16 %v2164
        %v2189 = vunpack.c.l.bf16 %v2165
        %v2190 = vunpack.c.l.bf16 %v2166
        %v2191 = vunpack.c.l.bf16 %v2167
        %v2192 = vunpack.c.l.bf16 %v2168
        %v2193 = vunpack.c.l.bf16 %v2169
        %2194 = vmatpush.msra.mxu0 %v2185
        %2195 = vmatpush.msra.mxu0 %v2184
        %2196 = vmatpush.msra.mxu0 %v2183
        %2197 = vmatpush.msra.mxu0 %v2182
        %2198 = vmatpush.msra.mxu0 %v2181
        %2199 = vmatpush.msra.mxu0 %v2180
        %2200 = vmatpush.msra.mxu0 %v2179
        %2201 = vmatpush.msra.mxu0 %v2178
        %2202 = vmatpush.msra.mxu0 %v2177
        %2203 = vmatpush.msra.mxu0 %v2176
        %2204 = vmatpush.msra.mxu0 %v2175
        %2205 = vmatpush.msra.mxu0 %v2174
        %2206 = vmatpush.msra.mxu0 %v2173
        %2207 = vmatpush.msra.mxu0 %v2172
        %2208 = vmatpush.msra.mxu0 %v2171
        %2209 = vmatpush.msra.mxu0 %v2170
        %2210 = vmatmul.f32.gmra.mxu0 %v2041
        %v2211 = vpop.f32.mrf.mxu0
        %v2212 = vadd.f32 0.0, %v2211
        %2213 = vmatmul.f32.gmra.mxu0 %v2043
        %v2214 = vpop.f32.mrf.mxu0
        %v2215 = vadd.f32 0.0, %v2214
        %2216 = vdwg.mxu0
        %2217 = vmatpush.msra.mxu0 0.0
        %2218 = vmatpush.msra.mxu0 0.0
        %2219 = vmatpush.msra.mxu0 0.0
        %2220 = vmatpush.msra.mxu0 0.0
        %2221 = vmatpush.msra.mxu0 0.0
        %2222 = vmatpush.msra.mxu0 0.0
        %2223 = vmatpush.msra.mxu0 0.0
        %2224 = vmatpush.msra.mxu0 0.0
        %2225 = vmatpush.msra.mxu0 %v2193
        %2226 = vmatpush.msra.mxu0 %v2192
        %2227 = vmatpush.msra.mxu0 %v2191
        %2228 = vmatpush.msra.mxu0 %v2190
        %2229 = vmatpush.msra.mxu0 %v2189
        %2230 = vmatpush.msra.mxu0 %v2188
        %2231 = vmatpush.msra.mxu0 %v2187
        %2232 = vmatpush.msra.mxu0 %v2186
        %2233 = vmatmul.f32.gmra.mxu0 %v2094
        %v2234 = vpop.f32.mrf.mxu0
        %v2235 = vadd.f32 %v2212, %v2234
        %2236 = vmatmul.f32.gmra.mxu0 %v2097
        %v2237 = vpop.f32.mrf.mxu0
        %v2238 = vadd.f32 %v2215, %v2237
        %2239 = vdwg.mxu0
        %v2240 = vmax.f32 %v2140, %v2235
        %v2241 = vmax.f32 %v2143, %v2238
        %v2242 = vld [vmem:[%s10] sm:$0xf]
        %v2243 = vunpack.c.l.bf16 %v2242
        %v2245 = vsel %vm1625, %v2243, 0
        %2247 = vmatpush.msra.mxu0 0.0
        %2248 = vmatpush.msra.mxu0 0.0
        %2249 = vmatpush.msra.mxu0 0.0
        %2250 = vmatpush.msra.mxu0 0.0
        %2251 = vmatpush.msra.mxu0 0.0
        %2252 = vmatpush.msra.mxu0 0.0
        %2253 = vmatpush.msra.mxu0 0.0
        %2254 = vmatpush.msra.mxu0 0.0
        %2255 = vmatpush.msra.mxu0 0.0
        %2256 = vmatpush.msra.mxu0 0.0
        %2257 = vmatpush.msra.mxu0 0.0
        %2258 = vmatpush.msra.mxu0 0.0
        %2259 = vmatpush.msra.mxu0 0.0
        %2260 = vmatpush.msra.mxu0 0.0
        %2261 = vmatpush.msra.mxu0 %v2241
        %2262 = vmatpush.msra.mxu0 %v2240
        %2263 = vmatmul.f32.gmra.mxu0 %v2245
        %v2264 = vpop.f32.mrf.mxu0
        %v2265 = vadd.f32 0.0, %v2264
        %2266 = vdwg.mxu0
        %s2267 = scalar_lea.vmem %s10, 4
        %v2268 = vld [vmem:[%s2267] sm:$0xf]
        %v2269 = vunpack.c.l.bf16 %v2268
        %v2271 = vsel %vm1625, %v2269, 0
        %2273 = vmatpush.msra.mxu0 0.0
        %2274 = vmatpush.msra.mxu0 0.0
        %2275 = vmatpush.msra.mxu0 0.0
        %2276 = vmatpush.msra.mxu0 0.0
        %2277 = vmatpush.msra.mxu0 0.0
        %2278 = vmatpush.msra.mxu0 0.0
        %2279 = vmatpush.msra.mxu0 0.0
        %2280 = vmatpush.msra.mxu0 0.0
        %2281 = vmatpush.msra.mxu0 0.0
        %2282 = vmatpush.msra.mxu0 0.0
        %2283 = vmatpush.msra.mxu0 0.0
        %2284 = vmatpush.msra.mxu0 0.0
        %2285 = vmatpush.msra.mxu0 0.0
        %2286 = vmatpush.msra.mxu0 0.0
        %2287 = vmatpush.msra.mxu0 %v2241
        %2288 = vmatpush.msra.mxu0 %v2240
        %2289 = vmatmul.f32.gmra.mxu0 %v2271
        %v2290 = vpop.f32.mrf.mxu0
        %v2291 = vadd.f32 0.0, %v2290
        %2292 = vdwg.mxu0
        %v2293 = vmax.f32 %v2265, %v2291
        %v2294 = vld [vmem:[%s11] sm:$0xf]
        %v2295 = vunpack.c.l.bf16 %v2294
        %vm2296 = vcmask 64512
        %v2298 = vsel %vm2296, %v2295, 0
        %2300 = vmatpush.msra.mxu0 0.0
        %2301 = vmatpush.msra.mxu0 0.0
        %2302 = vmatpush.msra.mxu0 0.0
        %2303 = vmatpush.msra.mxu0 0.0
        %2304 = vmatpush.msra.mxu0 0.0
        %2305 = vmatpush.msra.mxu0 0.0
        %2306 = vmatpush.msra.mxu0 0.0
        %2307 = vmatpush.msra.mxu0 0.0
        %2308 = vmatpush.msra.mxu0 0.0
        %2309 = vmatpush.msra.mxu0 0.0
        %2310 = vmatpush.msra.mxu0 0.0
        %2311 = vmatpush.msra.mxu0 0.0
        %2312 = vmatpush.msra.mxu0 0.0
        %2313 = vmatpush.msra.mxu0 0.0
        %2314 = vmatpush.msra.mxu0 0.0
        %2315 = vmatpush.msra.mxu0 %v2293
        %2316 = vmatmul.f32.gmra.mxu0 %v2298
        %v2317 = vpop.f32.mrf.mxu0
        %v2318 = vadd.f32 0.0, %v2317
        %2319 = vdwg.mxu0
        %v2320 = vld [vmem:[%s12] sm:$0xff]
        %v2321 = vld [vmem:[%s12 + $0x8] sm:$0xff]
        %v2322 = vld [vmem:[%s12 + $0x10] sm:$0xff]
        %v2323 = vld [vmem:[%s12 + $0x18] sm:$0xff]
        %v2324 = vld [vmem:[%s12 + $0x20] sm:$0xff]
        %v2325 = vld [vmem:[%s12 + $0x28] sm:$0xff]
        %v2326 = vld [vmem:[%s12 + $0x30] sm:$0xff]
        %v2327 = vld [vmem:[%s12 + $0x38] sm:$0xff]
        %v2328 = vld [vmem:[%s12 + $0x40] sm:$0xff]
        %v2329 = vld [vmem:[%s12 + $0x48] sm:$0xff]
        %v2330 = vld [vmem:[%s12 + $0x50] sm:$0xff]
        %v2331 = vld [vmem:[%s12 + $0x58] sm:$0xff]
        %v2332 = vld [vmem:[%s12 + $0x60] sm:$0xff]
        %v2333 = vld [vmem:[%s12 + $0x68] sm:$0xff]
        %v2334 = vld [vmem:[%s12 + $0x70] sm:$0xff]
        %v2335 = vunpack.c.l.bf16 %v2320
        %v2336 = vunpack.c.h.bf16 %v2320
        %v2337 = vunpack.c.l.bf16 %v2321
        %v2338 = vunpack.c.h.bf16 %v2321
        %v2339 = vunpack.c.l.bf16 %v2322
        %v2340 = vunpack.c.h.bf16 %v2322
        %v2341 = vunpack.c.l.bf16 %v2323
        %v2342 = vunpack.c.h.bf16 %v2323
        %v2343 = vunpack.c.l.bf16 %v2324
        %v2344 = vunpack.c.h.bf16 %v2324
        %v2345 = vunpack.c.l.bf16 %v2325
        %v2346 = vunpack.c.h.bf16 %v2325
        %v2347 = vunpack.c.l.bf16 %v2326
        %v2348 = vunpack.c.h.bf16 %v2326
        %v2349 = vunpack.c.l.bf16 %v2327
        %v2350 = vunpack.c.h.bf16 %v2327
        %v2351 = vunpack.c.l.bf16 %v2328
        %v2352 = vunpack.c.h.bf16 %v2328
        %v2353 = vunpack.c.l.bf16 %v2329
        %v2354 = vunpack.c.h.bf16 %v2329
        %v2355 = vunpack.c.l.bf16 %v2330
        %v2356 = vunpack.c.h.bf16 %v2330
        %v2357 = vunpack.c.l.bf16 %v2331
        %v2358 = vunpack.c.h.bf16 %v2331
        %v2359 = vunpack.c.l.bf16 %v2332
        %v2360 = vunpack.c.h.bf16 %v2332
        %v2361 = vunpack.c.l.bf16 %v2333
        %v2362 = vunpack.c.h.bf16 %v2333
        %v2363 = vunpack.c.l.bf16 %v2334
        %v2364 = vunpack.c.h.bf16 %v2334
        %s2365 = scalar_lea.vmem %s11, 4
        %v2366 = vld [vmem:[%s2365] sm:$0xf]
        %v2367 = vunpack.c.l.bf16 %v2366
        %v2369 = vsel %vm2296, %v2367, 0
        %2371 = vmatpush.msra.mxu0 0.0
        %2372 = vmatpush.msra.mxu0 0.0
        %2373 = vmatpush.msra.mxu0 0.0
        %2374 = vmatpush.msra.mxu0 0.0
        %2375 = vmatpush.msra.mxu0 0.0
        %2376 = vmatpush.msra.mxu0 0.0
        %2377 = vmatpush.msra.mxu0 0.0
        %2378 = vmatpush.msra.mxu0 0.0
        %2379 = vmatpush.msra.mxu0 0.0
        %2380 = vmatpush.msra.mxu0 0.0
        %2381 = vmatpush.msra.mxu0 0.0
        %2382 = vmatpush.msra.mxu0 0.0
        %2383 = vmatpush.msra.mxu0 0.0
        %2384 = vmatpush.msra.mxu0 0.0
        %2385 = vmatpush.msra.mxu0 0.0
        %2386 = vmatpush.msra.mxu0 %v2293
        %2387 = vmatmul.f32.gmra.mxu0 %v2369
        %v2388 = vpop.f32.mrf.mxu0
        %v2389 = vadd.f32 0.0, %v2388
        %2390 = vdwg.mxu0
        %s2391 = scalar_lea.vmem %s12, 120
        %v2392 = vld [vmem:[%s2391] sm:$0xff]
        %v2393 = vld [vmem:[%s2391 + $0x8] sm:$0xff]
        %v2394 = vld [vmem:[%s2391 + $0x10] sm:$0xff]
        %v2395 = vld [vmem:[%s2391 + $0x18] sm:$0xff]
        %v2396 = vld [vmem:[%s2391 + $0x20] sm:$0xff]
        %v2397 = vld [vmem:[%s2391 + $0x28] sm:$0xff]
        %v2398 = vld [vmem:[%s2391 + $0x30] sm:$0xff]
        %v2399 = vld [vmem:[%s2391 + $0x38] sm:$0xff]
        %v2400 = vld [vmem:[%s2391 + $0x40] sm:$0xff]
        %v2401 = vld [vmem:[%s2391 + $0x48] sm:$0xff]
        %v2402 = vld [vmem:[%s2391 + $0x50] sm:$0xff]
        %v2403 = vld [vmem:[%s2391 + $0x58] sm:$0xff]
        %v2404 = vld [vmem:[%s2391 + $0x60] sm:$0xff]
        %v2405 = vld [vmem:[%s2391 + $0x68] sm:$0xff]
        %v2406 = vld [vmem:[%s2391 + $0x70] sm:$0xff]
        %v2407 = vunpack.c.l.bf16 %v2392
        %v2408 = vunpack.c.h.bf16 %v2392
        %v2409 = vunpack.c.l.bf16 %v2393
        %v2410 = vunpack.c.h.bf16 %v2393
        %v2411 = vunpack.c.l.bf16 %v2394
        %v2412 = vunpack.c.h.bf16 %v2394
        %v2413 = vunpack.c.l.bf16 %v2395
        %v2414 = vunpack.c.h.bf16 %v2395
        %v2415 = vunpack.c.l.bf16 %v2396
        %v2416 = vunpack.c.h.bf16 %v2396
        %v2417 = vunpack.c.l.bf16 %v2397
        %v2418 = vunpack.c.h.bf16 %v2397
        %v2419 = vunpack.c.l.bf16 %v2398
        %v2420 = vunpack.c.h.bf16 %v2398
        %v2421 = vunpack.c.l.bf16 %v2399
        %v2422 = vunpack.c.h.bf16 %v2399
        %v2423 = vunpack.c.l.bf16 %v2400
        %v2424 = vunpack.c.h.bf16 %v2400
        %v2425 = vunpack.c.l.bf16 %v2401
        %v2426 = vunpack.c.h.bf16 %v2401
        %v2427 = vunpack.c.l.bf16 %v2402
        %v2428 = vunpack.c.h.bf16 %v2402
        %v2429 = vunpack.c.l.bf16 %v2403
        %v2430 = vunpack.c.h.bf16 %v2403
        %v2431 = vunpack.c.l.bf16 %v2404
        %v2432 = vunpack.c.h.bf16 %v2404
        %v2433 = vunpack.c.l.bf16 %v2405
        %v2434 = vunpack.c.h.bf16 %v2405
        %v2435 = vunpack.c.l.bf16 %v2406
        %v2436 = vunpack.c.h.bf16 %v2406
        %vm2437 = vcmask 982016
        %v2439 = vsel %vm2437, %v2389, 0
        %2441 = vmatpush.msra.mxu0 0.0
        %2442 = vmatpush.msra.mxu0 %v2435
        %2443 = vmatpush.msra.mxu0 %v2433
        %2444 = vmatpush.msra.mxu0 %v2431
        %2445 = vmatpush.msra.mxu0 %v2429
        %2446 = vmatpush.msra.mxu0 %v2427
        %2447 = vmatpush.msra.mxu0 %v2425
        %2448 = vmatpush.msra.mxu0 %v2423
        %2449 = vmatpush.msra.mxu0 %v2421
        %2450 = vmatpush.msra.mxu0 %v2419
        %2451 = vmatpush.msra.mxu0 %v2417
        %2452 = vmatpush.msra.mxu0 %v2415
        %2453 = vmatpush.msra.mxu0 %v2413
        %2454 = vmatpush.msra.mxu0 %v2411
        %2455 = vmatpush.msra.mxu0 %v2409
        %2456 = vmatpush.msra.mxu0 %v2407
        %2457 = vmatmul.f32.gmra.mxu0 %v2439
        %v2458 = vpop.f32.mrf.mxu0
        %v2459 = vadd.f32 0.0, %v2458
        %2460 = vdwg.mxu0
        %2461 = vmatpush.msra.mxu0 0.0
        %2462 = vmatpush.msra.mxu0 %v2436
        %2463 = vmatpush.msra.mxu0 %v2434
        %2464 = vmatpush.msra.mxu0 %v2432
        %2465 = vmatpush.msra.mxu0 %v2430
        %2466 = vmatpush.msra.mxu0 %v2428
        %2467 = vmatpush.msra.mxu0 %v2426
        %2468 = vmatpush.msra.mxu0 %v2424
        %2469 = vmatpush.msra.mxu0 %v2422
        %2470 = vmatpush.msra.mxu0 %v2420
        %2471 = vmatpush.msra.mxu0 %v2418
        %2472 = vmatpush.msra.mxu0 %v2416
        %2473 = vmatpush.msra.mxu0 %v2414
        %2474 = vmatpush.msra.mxu0 %v2412
        %2475 = vmatpush.msra.mxu0 %v2410
        %2476 = vmatpush.msra.mxu0 %v2408
        %2477 = vmatmul.f32.gmra.mxu0 %v2439
        %v2478 = vpop.f32.mrf.mxu0
        %v2479 = vadd.f32 0.0, %v2478
        %2480 = vdwg.mxu0
        %v2482 = vsel %vm2437, %v2318, 0
        %2484 = vmatpush.msra.mxu0 0.0
        %2485 = vmatpush.msra.mxu0 %v2363
        %2486 = vmatpush.msra.mxu0 %v2361
        %2487 = vmatpush.msra.mxu0 %v2359
        %2488 = vmatpush.msra.mxu0 %v2357
        %2489 = vmatpush.msra.mxu0 %v2355
        %2490 = vmatpush.msra.mxu0 %v2353
        %2491 = vmatpush.msra.mxu0 %v2351
        %2492 = vmatpush.msra.mxu0 %v2349
        %2493 = vmatpush.msra.mxu0 %v2347
        %2494 = vmatpush.msra.mxu0 %v2345
        %2495 = vmatpush.msra.mxu0 %v2343
        %2496 = vmatpush.msra.mxu0 %v2341
        %2497 = vmatpush.msra.mxu0 %v2339
        %2498 = vmatpush.msra.mxu0 %v2337
        %2499 = vmatpush.msra.mxu0 %v2335
        %2500 = vmatmul.f32.gmra.mxu0 %v2482
        %v2501 = vpop.f32.mrf.mxu0
        %v2502 = vadd.f32 %v2459, %v2501
        %2503 = vdwg.mxu0
        %2504 = vmatpush.msra.mxu0 0.0
        %2505 = vmatpush.msra.mxu0 %v2364
        %2506 = vmatpush.msra.mxu0 %v2362
        %2507 = vmatpush.msra.mxu0 %v2360
        %2508 = vmatpush.msra.mxu0 %v2358
        %2509 = vmatpush.msra.mxu0 %v2356
        %2510 = vmatpush.msra.mxu0 %v2354
        %2511 = vmatpush.msra.mxu0 %v2352
        %2512 = vmatpush.msra.mxu0 %v2350
        %2513 = vmatpush.msra.mxu0 %v2348
        %2514 = vmatpush.msra.mxu0 %v2346
        %2515 = vmatpush.msra.mxu0 %v2344
        %2516 = vmatpush.msra.mxu0 %v2342
        %2517 = vmatpush.msra.mxu0 %v2340
        %2518 = vmatpush.msra.mxu0 %v2338
        %2519 = vmatpush.msra.mxu0 %v2336
        %2520 = vmatmul.f32.gmra.mxu0 %v2482
        %v2521 = vpop.f32.mrf.mxu0
        %v2522 = vadd.f32 %v2479, %v2521
        %2523 = vdwg.mxu0
        %s2524 = scalar_lea.vmem %s11, 8
        %v2525 = vld [vmem:[%s2524] sm:$0xf]
        %v2526 = vunpack.c.l.bf16 %v2525
        %v2528 = vsel %vm2296, %v2526, 0
        %2530 = vmatpush.msra.mxu0 0.0
        %2531 = vmatpush.msra.mxu0 0.0
        %2532 = vmatpush.msra.mxu0 0.0
        %2533 = vmatpush.msra.mxu0 0.0
        %2534 = vmatpush.msra.mxu0 0.0
        %2535 = vmatpush.msra.mxu0 0.0
        %2536 = vmatpush.msra.mxu0 0.0
        %2537 = vmatpush.msra.mxu0 0.0
        %2538 = vmatpush.msra.mxu0 0.0
        %2539 = vmatpush.msra.mxu0 0.0
        %2540 = vmatpush.msra.mxu0 0.0
        %2541 = vmatpush.msra.mxu0 0.0
        %2542 = vmatpush.msra.mxu0 0.0
        %2543 = vmatpush.msra.mxu0 0.0
        %2544 = vmatpush.msra.mxu0 0.0
        %2545 = vmatpush.msra.mxu0 %v2293
        %2546 = vmatmul.f32.gmra.mxu0 %v2528
        %v2547 = vpop.f32.mrf.mxu0
        %v2548 = vadd.f32 0.0, %v2547
        %2549 = vdwg.mxu0
        %s2550 = scalar_lea.vmem %s12, 240
        %v2551 = vld [vmem:[%s2550] sm:$0xff]
        %v2552 = vld [vmem:[%s2550 + $0x8] sm:$0xff]
        %v2553 = vld [vmem:[%s2550 + $0x10] sm:$0xff]
        %v2554 = vld [vmem:[%s2550 + $0x18] sm:$0xff]
        %v2555 = vld [vmem:[%s2550 + $0x20] sm:$0xff]
        %v2556 = vld [vmem:[%s2550 + $0x28] sm:$0xff]
        %v2557 = vld [vmem:[%s2550 + $0x30] sm:$0xff]
        %v2558 = vld [vmem:[%s2550 + $0x38] sm:$0xff]
        %v2559 = vld [vmem:[%s2550 + $0x40] sm:$0xff]
        %v2560 = vld [vmem:[%s2550 + $0x48] sm:$0xff]
        %v2561 = vld [vmem:[%s2550 + $0x50] sm:$0xff]
        %v2562 = vld [vmem:[%s2550 + $0x58] sm:$0xff]
        %v2563 = vld [vmem:[%s2550 + $0x60] sm:$0xff]
        %v2564 = vld [vmem:[%s2550 + $0x68] sm:$0xff]
        %v2565 = vld [vmem:[%s2550 + $0x70] sm:$0xff]
        %v2566 = vunpack.c.l.bf16 %v2551
        %v2567 = vunpack.c.h.bf16 %v2551
        %v2568 = vunpack.c.l.bf16 %v2552
        %v2569 = vunpack.c.h.bf16 %v2552
        %v2570 = vunpack.c.l.bf16 %v2553
        %v2571 = vunpack.c.h.bf16 %v2553
        %v2572 = vunpack.c.l.bf16 %v2554
        %v2573 = vunpack.c.h.bf16 %v2554
        %v2574 = vunpack.c.l.bf16 %v2555
        %v2575 = vunpack.c.h.bf16 %v2555
        %v2576 = vunpack.c.l.bf16 %v2556
        %v2577 = vunpack.c.h.bf16 %v2556
        %v2578 = vunpack.c.l.bf16 %v2557
        %v2579 = vunpack.c.h.bf16 %v2557
        %v2580 = vunpack.c.l.bf16 %v2558
        %v2581 = vunpack.c.h.bf16 %v2558
        %v2582 = vunpack.c.l.bf16 %v2559
        %v2583 = vunpack.c.h.bf16 %v2559
        %v2584 = vunpack.c.l.bf16 %v2560
        %v2585 = vunpack.c.h.bf16 %v2560
        %v2586 = vunpack.c.l.bf16 %v2561
        %v2587 = vunpack.c.h.bf16 %v2561
        %v2588 = vunpack.c.l.bf16 %v2562
        %v2589 = vunpack.c.h.bf16 %v2562
        %v2590 = vunpack.c.l.bf16 %v2563
        %v2591 = vunpack.c.h.bf16 %v2563
        %v2592 = vunpack.c.l.bf16 %v2564
        %v2593 = vunpack.c.h.bf16 %v2564
        %v2594 = vunpack.c.l.bf16 %v2565
        %v2595 = vunpack.c.h.bf16 %v2565
        %v2597 = vsel %vm2437, %v2548, 0
        %2599 = vmatpush.msra.mxu0 0.0
        %2600 = vmatpush.msra.mxu0 %v2594
        %2601 = vmatpush.msra.mxu0 %v2592
        %2602 = vmatpush.msra.mxu0 %v2590
        %2603 = vmatpush.msra.mxu0 %v2588
        %2604 = vmatpush.msra.mxu0 %v2586
        %2605 = vmatpush.msra.mxu0 %v2584
        %2606 = vmatpush.msra.mxu0 %v2582
        %2607 = vmatpush.msra.mxu0 %v2580
        %2608 = vmatpush.msra.mxu0 %v2578
        %2609 = vmatpush.msra.mxu0 %v2576
        %2610 = vmatpush.msra.mxu0 %v2574
        %2611 = vmatpush.msra.mxu0 %v2572
        %2612 = vmatpush.msra.mxu0 %v2570
        %2613 = vmatpush.msra.mxu0 %v2568
        %2614 = vmatpush.msra.mxu0 %v2566
        %2615 = vmatmul.f32.gmra.mxu0 %v2597
        %v2616 = vpop.f32.mrf.mxu0
        %v2617 = vadd.f32 0.0, %v2616
        %2618 = vdwg.mxu0
        %2619 = vmatpush.msra.mxu0 0.0
        %2620 = vmatpush.msra.mxu0 %v2595
        %2621 = vmatpush.msra.mxu0 %v2593
        %2622 = vmatpush.msra.mxu0 %v2591
        %2623 = vmatpush.msra.mxu0 %v2589
        %2624 = vmatpush.msra.mxu0 %v2587
        %2625 = vmatpush.msra.mxu0 %v2585
        %2626 = vmatpush.msra.mxu0 %v2583
        %2627 = vmatpush.msra.mxu0 %v2581
        %2628 = vmatpush.msra.mxu0 %v2579
        %2629 = vmatpush.msra.mxu0 %v2577
        %2630 = vmatpush.msra.mxu0 %v2575
        %2631 = vmatpush.msra.mxu0 %v2573
        %2632 = vmatpush.msra.mxu0 %v2571
        %2633 = vmatpush.msra.mxu0 %v2569
        %2634 = vmatpush.msra.mxu0 %v2567
        %2635 = vmatmul.f32.gmra.mxu0 %v2597
        %v2636 = vpop.f32.mrf.mxu0
        %v2637 = vadd.f32 0.0, %v2636
        %2638 = vdwg.mxu0
        %v2639 = vadd.f32 %v2502, %v2617
        %v2640 = vadd.f32 %v2522, %v2637
        %v2641 = vld [vmem:[%s13] sm:$0x3]
        %v2643 = vperm.slane %v2641, 0
        %v2644 = vperm.slane %v2641, 1
        %v2647 = vadd.f32 %v2639, %v2643
        %v2648 = vadd.f32 %v2640, %v2644
        %v2649 = vmax.f32 %v2647, 0.0
        %v2650 = vmax.f32 %v2648, 0.0
        %v2651 = vld [vmem:[%s14] sm:$0xf]
        %v2652 = vld [vmem:[%s14 + $0x4] sm:$0xf]
        %v2653 = vld [vmem:[%s14 + $0x8] sm:$0xf]
        %v2654 = vld [vmem:[%s14 + $0xc] sm:$0xf]
        %v2655 = vld [vmem:[%s14 + $0x10] sm:$0xf]
        %v2656 = vld [vmem:[%s14 + $0x14] sm:$0xf]
        %v2657 = vld [vmem:[%s14 + $0x18] sm:$0xf]
        %v2658 = vld [vmem:[%s14 + $0x1c] sm:$0xf]
        %v2659 = vld [vmem:[%s14 + $0x20] sm:$0xf]
        %v2660 = vld [vmem:[%s14 + $0x24] sm:$0xf]
        %v2661 = vld [vmem:[%s14 + $0x28] sm:$0xf]
        %v2662 = vld [vmem:[%s14 + $0x2c] sm:$0xf]
        %v2663 = vld [vmem:[%s14 + $0x30] sm:$0xf]
        %v2664 = vld [vmem:[%s14 + $0x34] sm:$0xf]
        %v2665 = vld [vmem:[%s14 + $0x38] sm:$0xf]
        %v2666 = vld [vmem:[%s14 + $0x3c] sm:$0xf]
        %v2667 = vld [vmem:[%s14 + $0x40] sm:$0xf]
        %v2668 = vld [vmem:[%s14 + $0x44] sm:$0xf]
        %v2669 = vld [vmem:[%s14 + $0x48] sm:$0xf]
        %v2670 = vld [vmem:[%s14 + $0x4c] sm:$0xf]
        %v2671 = vld [vmem:[%s14 + $0x50] sm:$0xf]
        %v2672 = vld [vmem:[%s14 + $0x54] sm:$0xf]
        %v2673 = vld [vmem:[%s14 + $0x58] sm:$0xf]
        %v2674 = vld [vmem:[%s14 + $0x5c] sm:$0xf]
        %v2675 = vunpack.c.l.bf16 %v2651
        %v2676 = vunpack.c.l.bf16 %v2652
        %v2677 = vunpack.c.l.bf16 %v2653
        %v2678 = vunpack.c.l.bf16 %v2654
        %v2679 = vunpack.c.l.bf16 %v2655
        %v2680 = vunpack.c.l.bf16 %v2656
        %v2681 = vunpack.c.l.bf16 %v2657
        %v2682 = vunpack.c.l.bf16 %v2658
        %v2683 = vunpack.c.l.bf16 %v2659
        %v2684 = vunpack.c.l.bf16 %v2660
        %v2685 = vunpack.c.l.bf16 %v2661
        %v2686 = vunpack.c.l.bf16 %v2662
        %v2687 = vunpack.c.l.bf16 %v2663
        %v2688 = vunpack.c.l.bf16 %v2664
        %v2689 = vunpack.c.l.bf16 %v2665
        %v2690 = vunpack.c.l.bf16 %v2666
        %v2691 = vunpack.c.l.bf16 %v2667
        %v2692 = vunpack.c.l.bf16 %v2668
        %v2693 = vunpack.c.l.bf16 %v2669
        %v2694 = vunpack.c.l.bf16 %v2670
        %v2695 = vunpack.c.l.bf16 %v2671
        %v2696 = vunpack.c.l.bf16 %v2672
        %v2697 = vunpack.c.l.bf16 %v2673
        %v2698 = vunpack.c.l.bf16 %v2674
        %v2700 = vsel %vm1370, %v2650, 0
        %2702 = vmatpush.msra.mxu0 %v2690
        %2703 = vmatpush.msra.mxu0 %v2689
        %2704 = vmatpush.msra.mxu0 %v2688
        %2705 = vmatpush.msra.mxu0 %v2687
        %2706 = vmatpush.msra.mxu0 %v2686
        %2707 = vmatpush.msra.mxu0 %v2685
        %2708 = vmatpush.msra.mxu0 %v2684
        %2709 = vmatpush.msra.mxu0 %v2683
        %2710 = vmatpush.msra.mxu0 %v2682
        %2711 = vmatpush.msra.mxu0 %v2681
        %2712 = vmatpush.msra.mxu0 %v2680
        %2713 = vmatpush.msra.mxu0 %v2679
        %2714 = vmatpush.msra.mxu0 %v2678
        %2715 = vmatpush.msra.mxu0 %v2677
        %2716 = vmatpush.msra.mxu0 %v2676
        %2717 = vmatpush.msra.mxu0 %v2675
        %2718 = vmatmul.f32.gmra.mxu0 %v2649
        %v2719 = vpop.f32.mrf.mxu0
        %v2720 = vadd.f32 0.0, %v2719
        %2721 = vdwg.mxu0
        %2722 = vmatpush.msra.mxu0 0.0
        %2723 = vmatpush.msra.mxu0 0.0
        %2724 = vmatpush.msra.mxu0 0.0
        %2725 = vmatpush.msra.mxu0 0.0
        %2726 = vmatpush.msra.mxu0 0.0
        %2727 = vmatpush.msra.mxu0 0.0
        %2728 = vmatpush.msra.mxu0 0.0
        %2729 = vmatpush.msra.mxu0 0.0
        %2730 = vmatpush.msra.mxu0 %v2698
        %2731 = vmatpush.msra.mxu0 %v2697
        %2732 = vmatpush.msra.mxu0 %v2696
        %2733 = vmatpush.msra.mxu0 %v2695
        %2734 = vmatpush.msra.mxu0 %v2694
        %2735 = vmatpush.msra.mxu0 %v2693
        %2736 = vmatpush.msra.mxu0 %v2692
        %2737 = vmatpush.msra.mxu0 %v2691
        %2738 = vmatmul.f32.gmra.mxu0 %v2700
        %v2739 = vpop.f32.mrf.mxu0
        %v2740 = vadd.f32 %v2720, %v2739
        %2741 = vdwg.mxu0
        %s2742 = scalar_lea.vmem %s14, 96
        %v2743 = vld [vmem:[%s2742] sm:$0xf]
        %v2744 = vld [vmem:[%s2742 + $0x4] sm:$0xf]
        %v2745 = vld [vmem:[%s2742 + $0x8] sm:$0xf]
        %v2746 = vld [vmem:[%s2742 + $0xc] sm:$0xf]
        %v2747 = vld [vmem:[%s2742 + $0x10] sm:$0xf]
        %v2748 = vld [vmem:[%s2742 + $0x14] sm:$0xf]
        %v2749 = vld [vmem:[%s2742 + $0x18] sm:$0xf]
        %v2750 = vld [vmem:[%s2742 + $0x1c] sm:$0xf]
        %v2751 = vld [vmem:[%s2742 + $0x20] sm:$0xf]
        %v2752 = vld [vmem:[%s2742 + $0x24] sm:$0xf]
        %v2753 = vld [vmem:[%s2742 + $0x28] sm:$0xf]
        %v2754 = vld [vmem:[%s2742 + $0x2c] sm:$0xf]
        %v2755 = vld [vmem:[%s2742 + $0x30] sm:$0xf]
        %v2756 = vld [vmem:[%s2742 + $0x34] sm:$0xf]
        %v2757 = vld [vmem:[%s2742 + $0x38] sm:$0xf]
        %v2758 = vld [vmem:[%s2742 + $0x3c] sm:$0xf]
        %v2759 = vld [vmem:[%s2742 + $0x40] sm:$0xf]
        %v2760 = vld [vmem:[%s2742 + $0x44] sm:$0xf]
        %v2761 = vld [vmem:[%s2742 + $0x48] sm:$0xf]
        %v2762 = vld [vmem:[%s2742 + $0x4c] sm:$0xf]
        %v2763 = vld [vmem:[%s2742 + $0x50] sm:$0xf]
        %v2764 = vld [vmem:[%s2742 + $0x54] sm:$0xf]
        %v2765 = vld [vmem:[%s2742 + $0x58] sm:$0xf]
        %v2766 = vld [vmem:[%s2742 + $0x5c] sm:$0xf]
        %v2767 = vunpack.c.l.bf16 %v2743
        %v2768 = vunpack.c.l.bf16 %v2744
        %v2769 = vunpack.c.l.bf16 %v2745
        %v2770 = vunpack.c.l.bf16 %v2746
        %v2771 = vunpack.c.l.bf16 %v2747
        %v2772 = vunpack.c.l.bf16 %v2748
        %v2773 = vunpack.c.l.bf16 %v2749
        %v2774 = vunpack.c.l.bf16 %v2750
        %v2775 = vunpack.c.l.bf16 %v2751
        %v2776 = vunpack.c.l.bf16 %v2752
        %v2777 = vunpack.c.l.bf16 %v2753
        %v2778 = vunpack.c.l.bf16 %v2754
        %v2779 = vunpack.c.l.bf16 %v2755
        %v2780 = vunpack.c.l.bf16 %v2756
        %v2781 = vunpack.c.l.bf16 %v2757
        %v2782 = vunpack.c.l.bf16 %v2758
        %v2783 = vunpack.c.l.bf16 %v2759
        %v2784 = vunpack.c.l.bf16 %v2760
        %v2785 = vunpack.c.l.bf16 %v2761
        %v2786 = vunpack.c.l.bf16 %v2762
        %v2787 = vunpack.c.l.bf16 %v2763
        %v2788 = vunpack.c.l.bf16 %v2764
        %v2789 = vunpack.c.l.bf16 %v2765
        %v2790 = vunpack.c.l.bf16 %v2766
        %2791 = vmatpush.msra.mxu0 %v2782
        %2792 = vmatpush.msra.mxu0 %v2781
        %2793 = vmatpush.msra.mxu0 %v2780
        %2794 = vmatpush.msra.mxu0 %v2779
        %2795 = vmatpush.msra.mxu0 %v2778
        %2796 = vmatpush.msra.mxu0 %v2777
        %2797 = vmatpush.msra.mxu0 %v2776
        %2798 = vmatpush.msra.mxu0 %v2775
        %2799 = vmatpush.msra.mxu0 %v2774
        %2800 = vmatpush.msra.mxu0 %v2773
        %2801 = vmatpush.msra.mxu0 %v2772
        %2802 = vmatpush.msra.mxu0 %v2771
        %2803 = vmatpush.msra.mxu0 %v2770
        %2804 = vmatpush.msra.mxu0 %v2769
        %2805 = vmatpush.msra.mxu0 %v2768
        %2806 = vmatpush.msra.mxu0 %v2767
        %2807 = vmatmul.f32.gmra.mxu0 %v2649
        %v2808 = vpop.f32.mrf.mxu0
        %v2809 = vadd.f32 0.0, %v2808
        %2810 = vdwg.mxu0
        %2811 = vmatpush.msra.mxu0 0.0
        %2812 = vmatpush.msra.mxu0 0.0
        %2813 = vmatpush.msra.mxu0 0.0
        %2814 = vmatpush.msra.mxu0 0.0
        %2815 = vmatpush.msra.mxu0 0.0
        %2816 = vmatpush.msra.mxu0 0.0
        %2817 = vmatpush.msra.mxu0 0.0
        %2818 = vmatpush.msra.mxu0 0.0
        %2819 = vmatpush.msra.mxu0 %v2790
        %2820 = vmatpush.msra.mxu0 %v2789
        %2821 = vmatpush.msra.mxu0 %v2788
        %2822 = vmatpush.msra.mxu0 %v2787
        %2823 = vmatpush.msra.mxu0 %v2786
        %2824 = vmatpush.msra.mxu0 %v2785
        %2825 = vmatpush.msra.mxu0 %v2784
        %2826 = vmatpush.msra.mxu0 %v2783
        %2827 = vmatmul.f32.gmra.mxu0 %v2700
        %v2828 = vpop.f32.mrf.mxu0
        %v2829 = vadd.f32 %v2809, %v2828
        %2830 = vdwg.mxu0
        %v2831 = vmax.f32 %v2740, %v2829
        %v2832 = vld [vmem:[%s15] sm:$0x3]
        %v2833 = vunpack.c.l.bf16 %v2832
        %v2835 = vsel %vm2296, %v2833, 0
        %2837 = vmatpush.msra.mxu0 0.0
        %2838 = vmatpush.msra.mxu0 0.0
        %2839 = vmatpush.msra.mxu0 0.0
        %2840 = vmatpush.msra.mxu0 0.0
        %2841 = vmatpush.msra.mxu0 0.0
        %2842 = vmatpush.msra.mxu0 0.0
        %2843 = vmatpush.msra.mxu0 0.0
        %2844 = vmatpush.msra.mxu0 0.0
        %2845 = vmatpush.msra.mxu0 0.0
        %2846 = vmatpush.msra.mxu0 0.0
        %2847 = vmatpush.msra.mxu0 0.0
        %2848 = vmatpush.msra.mxu0 0.0
        %2849 = vmatpush.msra.mxu0 0.0
        %2850 = vmatpush.msra.mxu0 0.0
        %2851 = vmatpush.msra.mxu0 0.0
        %2852 = vmatpush.msra.mxu0 %v2831
        %2853 = vmatmul.f32.gmra.mxu0 %v2835
        %v2854 = vpop.f32.mrf.mxu0
        %v2855 = vadd.f32 0.0, %v2854
        %2856 = vdwg.mxu0
        %s2857 = scalar_lea.vmem %s15, 2
        %v2858 = vld [vmem:[%s2857] sm:$0x3]
        %v2859 = vunpack.c.l.bf16 %v2858
        %v2861 = vsel %vm2296, %v2859, 0
        %2863 = vmatpush.msra.mxu0 0.0
        %2864 = vmatpush.msra.mxu0 0.0
        %2865 = vmatpush.msra.mxu0 0.0
        %2866 = vmatpush.msra.mxu0 0.0
        %2867 = vmatpush.msra.mxu0 0.0
        %2868 = vmatpush.msra.mxu0 0.0
        %2869 = vmatpush.msra.mxu0 0.0
        %2870 = vmatpush.msra.mxu0 0.0
        %2871 = vmatpush.msra.mxu0 0.0
        %2872 = vmatpush.msra.mxu0 0.0
        %2873 = vmatpush.msra.mxu0 0.0
        %2874 = vmatpush.msra.mxu0 0.0
        %2875 = vmatpush.msra.mxu0 0.0
        %2876 = vmatpush.msra.mxu0 0.0
        %2877 = vmatpush.msra.mxu0 0.0
        %2878 = vmatpush.msra.mxu0 %v2831
        %2879 = vmatmul.f32.gmra.mxu0 %v2861
        %v2880 = vpop.f32.mrf.mxu0
        %v2881 = vadd.f32 0.0, %v2880
        %2882 = vdwg.mxu0
        %v2883 = vmax.f32 %v2855, %v2881
        %v2884 = vld [vmem:[%s17] sm:$0x7]
        %v2885 = vld [vmem:[%s16] sm:$0xff]
        %v2886 = vld [vmem:[%s16 + $0x8] sm:$0xf]
        %v2887 = vld [vmem:[%s16 + $0xc] sm:$0xff]
        %v2888 = vld [vmem:[%s16 + $0x14] sm:$0xf]
        %v2889 = vld [vmem:[%s16 + $0x18] sm:$0xff]
        %v2890 = vld [vmem:[%s16 + $0x20] sm:$0xf]
        %v2891 = vld [vmem:[%s16 + $0x24] sm:$0xff]
        %v2892 = vld [vmem:[%s16 + $0x2c] sm:$0xf]
        %v2893 = vld [vmem:[%s16 + $0x30] sm:$0xff]
        %v2894 = vld [vmem:[%s16 + $0x38] sm:$0xf]
        %v2895 = vld [vmem:[%s16 + $0x3c] sm:$0xff]
        %v2896 = vld [vmem:[%s16 + $0x44] sm:$0xf]
        %v2897 = vld [vmem:[%s16 + $0x48] sm:$0xff]
        %v2898 = vld [vmem:[%s16 + $0x50] sm:$0xf]
        %v2899 = vld [vmem:[%s16 + $0x54] sm:$0xff]
        %v2900 = vld [vmem:[%s16 + $0x5c] sm:$0xf]
        %v2901 = vld [vmem:[%s16 + $0x60] sm:$0xff]
        %v2902 = vld [vmem:[%s16 + $0x68] sm:$0xf]
        %v2903 = vld [vmem:[%s16 + $0x6c] sm:$0xff]
        %v2904 = vld [vmem:[%s16 + $0x74] sm:$0xf]
        %v2905 = vld [vmem:[%s16 + $0x78] sm:$0xff]
        %v2906 = vld [vmem:[%s16 + $0x80] sm:$0xf]
        %v2907 = vld [vmem:[%s16 + $0x84] sm:$0xff]
        %v2908 = vld [vmem:[%s16 + $0x8c] sm:$0xf]
        %v2909 = vunpack.c.l.bf16 %v2885
        %v2910 = vunpack.c.h.bf16 %v2885
        %v2911 = vunpack.c.l.bf16 %v2886
        %v2912 = vunpack.c.l.bf16 %v2887
        %v2913 = vunpack.c.h.bf16 %v2887
        %v2914 = vunpack.c.l.bf16 %v2888
        %v2915 = vunpack.c.l.bf16 %v2889
        %v2916 = vunpack.c.h.bf16 %v2889
        %v2917 = vunpack.c.l.bf16 %v2890
        %v2918 = vunpack.c.l.bf16 %v2891
        %v2919 = vunpack.c.h.bf16 %v2891
        %v2920 = vunpack.c.l.bf16 %v2892
        %v2921 = vunpack.c.l.bf16 %v2893
        %v2922 = vunpack.c.h.bf16 %v2893
        %v2923 = vunpack.c.l.bf16 %v2894
        %v2924 = vunpack.c.l.bf16 %v2895
        %v2925 = vunpack.c.h.bf16 %v2895
        %v2926 = vunpack.c.l.bf16 %v2896
        %v2927 = vunpack.c.l.bf16 %v2897
        %v2928 = vunpack.c.h.bf16 %v2897
        %v2929 = vunpack.c.l.bf16 %v2898
        %v2930 = vunpack.c.l.bf16 %v2899
        %v2931 = vunpack.c.h.bf16 %v2899
        %v2932 = vunpack.c.l.bf16 %v2900
        %v2933 = vunpack.c.l.bf16 %v2901
        %v2934 = vunpack.c.h.bf16 %v2901
        %v2935 = vunpack.c.l.bf16 %v2902
        %v2936 = vunpack.c.l.bf16 %v2903
        %v2937 = vunpack.c.h.bf16 %v2903
        %v2938 = vunpack.c.l.bf16 %v2904
        %v2939 = vunpack.c.l.bf16 %v2905
        %v2940 = vunpack.c.h.bf16 %v2905
        %v2941 = vunpack.c.l.bf16 %v2906
        %v2942 = vunpack.c.l.bf16 %v2907
        %v2943 = vunpack.c.h.bf16 %v2907
        %v2944 = vunpack.c.l.bf16 %v2908
        %vm2945 = vcmask 785408
        %v2947 = vsel %vm2945, %v2883, 0
        %2949 = vmatpush.msra.mxu0 0.0
        %2950 = vmatpush.msra.mxu0 0.0
        %2951 = vmatpush.msra.mxu0 0.0
        %2952 = vmatpush.msra.mxu0 0.0
        %2953 = vmatpush.msra.mxu0 %v2942
        %2954 = vmatpush.msra.mxu0 %v2939
        %2955 = vmatpush.msra.mxu0 %v2936
        %2956 = vmatpush.msra.mxu0 %v2933
        %2957 = vmatpush.msra.mxu0 %v2930
        %2958 = vmatpush.msra.mxu0 %v2927
        %2959 = vmatpush.msra.mxu0 %v2924
        %2960 = vmatpush.msra.mxu0 %v2921
        %2961 = vmatpush.msra.mxu0 %v2918
        %2962 = vmatpush.msra.mxu0 %v2915
        %2963 = vmatpush.msra.mxu0 %v2912
        %2964 = vmatpush.msra.mxu0 %v2909
        %2965 = vmatmul.f32.gmra.mxu0 %v2947
        %v2966 = vpop.f32.mrf.mxu0
        %v2967 = vadd.f32 0.0, %v2966
        %2968 = vdwg.mxu0
        %2969 = vmatpush.msra.mxu0 0.0
        %2970 = vmatpush.msra.mxu0 0.0
        %2971 = vmatpush.msra.mxu0 0.0
        %2972 = vmatpush.msra.mxu0 0.0
        %2973 = vmatpush.msra.mxu0 %v2943
        %2974 = vmatpush.msra.mxu0 %v2940
        %2975 = vmatpush.msra.mxu0 %v2937
        %2976 = vmatpush.msra.mxu0 %v2934
        %2977 = vmatpush.msra.mxu0 %v2931
        %2978 = vmatpush.msra.mxu0 %v2928
        %2979 = vmatpush.msra.mxu0 %v2925
        %2980 = vmatpush.msra.mxu0 %v2922
        %2981 = vmatpush.msra.mxu0 %v2919
        %2982 = vmatpush.msra.mxu0 %v2916
        %2983 = vmatpush.msra.mxu0 %v2913
        %2984 = vmatpush.msra.mxu0 %v2910
        %2985 = vmatmul.f32.gmra.mxu0 %v2947
        %v2986 = vpop.f32.mrf.mxu0
        %v2987 = vadd.f32 0.0, %v2986
        %2988 = vdwg.mxu0
        %2989 = vmatpush.msra.mxu0 0.0
        %2990 = vmatpush.msra.mxu0 0.0
        %2991 = vmatpush.msra.mxu0 0.0
        %2992 = vmatpush.msra.mxu0 0.0
        %2993 = vmatpush.msra.mxu0 %v2944
        %2994 = vmatpush.msra.mxu0 %v2941
        %2995 = vmatpush.msra.mxu0 %v2938
        %2996 = vmatpush.msra.mxu0 %v2935
        %2997 = vmatpush.msra.mxu0 %v2932
        %2998 = vmatpush.msra.mxu0 %v2929
        %2999 = vmatpush.msra.mxu0 %v2926
        %3000 = vmatpush.msra.mxu0 %v2923
        %3001 = vmatpush.msra.mxu0 %v2920
        %3002 = vmatpush.msra.mxu0 %v2917
        %3003 = vmatpush.msra.mxu0 %v2914
        %3004 = vmatpush.msra.mxu0 %v2911
        %3005 = vmatmul.f32.gmra.mxu0 %v2947
        %v3006 = vpop.f32.mrf.mxu0
        %v3007 = vadd.f32 0.0, %v3006
        %3008 = vdwg.mxu0
        %v3012 = vrot.slane %v2987, 7
        %v3013 = vrot.slane %v3007, 6
        %vm3014 = vcmask 1040384
        %v3015 = vsel %vm3014, %v2967, %v3012
        %vm3016 = vcmask 1041408
        %v3017 = vsel %vm3016, %v3015, %v3013
        %v3019 = vadd.f32 %v2884, %v3017
        %s3020 = scalar_lea.vmem %s16, 144
        %v3021 = vld [vmem:[%s3020] sm:$0xff]
        %v3022 = vld [vmem:[%s3020 + $0x8] sm:$0xf]
        %v3023 = vld [vmem:[%s3020 + $0xc] sm:$0xff]
        %v3024 = vld [vmem:[%s3020 + $0x14] sm:$0xf]
        %v3025 = vld [vmem:[%s3020 + $0x18] sm:$0xff]
        %v3026 = vld [vmem:[%s3020 + $0x20] sm:$0xf]
        %v3027 = vld [vmem:[%s3020 + $0x24] sm:$0xff]
        %v3028 = vld [vmem:[%s3020 + $0x2c] sm:$0xf]
        %v3029 = vld [vmem:[%s3020 + $0x30] sm:$0xff]
        %v3030 = vld [vmem:[%s3020 + $0x38] sm:$0xf]
        %v3031 = vld [vmem:[%s3020 + $0x3c] sm:$0xff]
        %v3032 = vld [vmem:[%s3020 + $0x44] sm:$0xf]
        %v3033 = vld [vmem:[%s3020 + $0x48] sm:$0xff]
        %v3034 = vld [vmem:[%s3020 + $0x50] sm:$0xf]
        %v3035 = vld [vmem:[%s3020 + $0x54] sm:$0xff]
        %v3036 = vld [vmem:[%s3020 + $0x5c] sm:$0xf]
        %v3037 = vld [vmem:[%s3020 + $0x60] sm:$0xff]
        %v3038 = vld [vmem:[%s3020 + $0x68] sm:$0xf]
        %v3039 = vld [vmem:[%s3020 + $0x6c] sm:$0xff]
        %v3040 = vld [vmem:[%s3020 + $0x74] sm:$0xf]
        %v3041 = vld [vmem:[%s3020 + $0x78] sm:$0xff]
        %v3042 = vld [vmem:[%s3020 + $0x80] sm:$0xf]
        %v3043 = vld [vmem:[%s3020 + $0x84] sm:$0xff]
        %v3044 = vld [vmem:[%s3020 + $0x8c] sm:$0xf]
        %v3045 = vunpack.c.l.bf16 %v3021
        %v3046 = vunpack.c.h.bf16 %v3021
        %v3047 = vunpack.c.l.bf16 %v3022
        %v3048 = vunpack.c.l.bf16 %v3023
        %v3049 = vunpack.c.h.bf16 %v3023
        %v3050 = vunpack.c.l.bf16 %v3024
        %v3051 = vunpack.c.l.bf16 %v3025
        %v3052 = vunpack.c.h.bf16 %v3025
        %v3053 = vunpack.c.l.bf16 %v3026
        %v3054 = vunpack.c.l.bf16 %v3027
        %v3055 = vunpack.c.h.bf16 %v3027
        %v3056 = vunpack.c.l.bf16 %v3028
        %v3057 = vunpack.c.l.bf16 %v3029
        %v3058 = vunpack.c.h.bf16 %v3029
        %v3059 = vunpack.c.l.bf16 %v3030
        %v3060 = vunpack.c.l.bf16 %v3031
        %v3061 = vunpack.c.h.bf16 %v3031
        %v3062 = vunpack.c.l.bf16 %v3032
        %v3063 = vunpack.c.l.bf16 %v3033
        %v3064 = vunpack.c.h.bf16 %v3033
        %v3065 = vunpack.c.l.bf16 %v3034
        %v3066 = vunpack.c.l.bf16 %v3035
        %v3067 = vunpack.c.h.bf16 %v3035
        %v3068 = vunpack.c.l.bf16 %v3036
        %v3069 = vunpack.c.l.bf16 %v3037
        %v3070 = vunpack.c.h.bf16 %v3037
        %v3071 = vunpack.c.l.bf16 %v3038
        %v3072 = vunpack.c.l.bf16 %v3039
        %v3073 = vunpack.c.h.bf16 %v3039
        %v3074 = vunpack.c.l.bf16 %v3040
        %v3075 = vunpack.c.l.bf16 %v3041
        %v3076 = vunpack.c.h.bf16 %v3041
        %v3077 = vunpack.c.l.bf16 %v3042
        %v3078 = vunpack.c.l.bf16 %v3043
        %v3079 = vunpack.c.h.bf16 %v3043
        %v3080 = vunpack.c.l.bf16 %v3044
        %v3081 = vrot.slane %v2883, 1
        %v3082 = vsel %vm2945, %v3081, 0
        %3084 = vmatpush.msra.mxu0 0.0
        %3085 = vmatpush.msra.mxu0 0.0
        %3086 = vmatpush.msra.mxu0 0.0
        %3087 = vmatpush.msra.mxu0 0.0
        %3088 = vmatpush.msra.mxu0 %v3078
        %3089 = vmatpush.msra.mxu0 %v3075
        %3090 = vmatpush.msra.mxu0 %v3072
        %3091 = vmatpush.msra.mxu0 %v3069
        %3092 = vmatpush.msra.mxu0 %v3066
        %3093 = vmatpush.msra.mxu0 %v3063
        %3094 = vmatpush.msra.mxu0 %v3060
        %3095 = vmatpush.msra.mxu0 %v3057
        %3096 = vmatpush.msra.mxu0 %v3054
        %3097 = vmatpush.msra.mxu0 %v3051
        %3098 = vmatpush.msra.mxu0 %v3048
        %3099 = vmatpush.msra.mxu0 %v3045
        %3100 = vmatmul.f32.gmra.mxu0 %v3082
        %v3101 = vpop.f32.mrf.mxu0
        %v3102 = vadd.f32 0.0, %v3101
        %3103 = vdwg.mxu0
        %3104 = vmatpush.msra.mxu0 0.0
        %3105 = vmatpush.msra.mxu0 0.0
        %3106 = vmatpush.msra.mxu0 0.0
        %3107 = vmatpush.msra.mxu0 0.0
        %3108 = vmatpush.msra.mxu0 %v3079
        %3109 = vmatpush.msra.mxu0 %v3076
        %3110 = vmatpush.msra.mxu0 %v3073
        %3111 = vmatpush.msra.mxu0 %v3070
        %3112 = vmatpush.msra.mxu0 %v3067
        %3113 = vmatpush.msra.mxu0 %v3064
        %3114 = vmatpush.msra.mxu0 %v3061
        %3115 = vmatpush.msra.mxu0 %v3058
        %3116 = vmatpush.msra.mxu0 %v3055
        %3117 = vmatpush.msra.mxu0 %v3052
        %3118 = vmatpush.msra.mxu0 %v3049
        %3119 = vmatpush.msra.mxu0 %v3046
        %3120 = vmatmul.f32.gmra.mxu0 %v3082
        %v3121 = vpop.f32.mrf.mxu0
        %v3122 = vadd.f32 0.0, %v3121
        %3123 = vdwg.mxu0
        %3124 = vmatpush.msra.mxu0 0.0
        %3125 = vmatpush.msra.mxu0 0.0
        %3126 = vmatpush.msra.mxu0 0.0
        %3127 = vmatpush.msra.mxu0 0.0
        %3128 = vmatpush.msra.mxu0 %v3080
        %3129 = vmatpush.msra.mxu0 %v3077
        %3130 = vmatpush.msra.mxu0 %v3074
        %3131 = vmatpush.msra.mxu0 %v3071
        %3132 = vmatpush.msra.mxu0 %v3068
        %3133 = vmatpush.msra.mxu0 %v3065
        %3134 = vmatpush.msra.mxu0 %v3062
        %3135 = vmatpush.msra.mxu0 %v3059
        %3136 = vmatpush.msra.mxu0 %v3056
        %3137 = vmatpush.msra.mxu0 %v3053
        %3138 = vmatpush.msra.mxu0 %v3050
        %3139 = vmatpush.msra.mxu0 %v3047
        %3140 = vmatmul.f32.gmra.mxu0 %v3082
        %v3141 = vpop.f32.mrf.mxu0
        %v3142 = vadd.f32 0.0, %v3141
        %3143 = vdwg.mxu0
        %v3147 = vrot.slane %v3122, 7
        %v3148 = vrot.slane %v3142, 6
        %v3149 = vsel %vm3014, %v3102, %v3147
        %v3150 = vsel %vm3016, %v3149, %v3148
        %v3152 = vadd.f32 %v3019, %v3150
        %s3153 = scalar_lea.vmem %s16, 288
        %v3154 = vld [vmem:[%s3153] sm:$0xff]
        %v3155 = vld [vmem:[%s3153 + $0x8] sm:$0xf]
        %v3156 = vld [vmem:[%s3153 + $0xc] sm:$0xff]
        %v3157 = vld [vmem:[%s3153 + $0x14] sm:$0xf]
        %v3158 = vld [vmem:[%s3153 + $0x18] sm:$0xff]
        %v3159 = vld [vmem:[%s3153 + $0x20] sm:$0xf]
        %v3160 = vld [vmem:[%s3153 + $0x24] sm:$0xff]
        %v3161 = vld [vmem:[%s3153 + $0x2c] sm:$0xf]
        %v3162 = vld [vmem:[%s3153 + $0x30] sm:$0xff]
        %v3163 = vld [vmem:[%s3153 + $0x38] sm:$0xf]
        %v3164 = vld [vmem:[%s3153 + $0x3c] sm:$0xff]
        %v3165 = vld [vmem:[%s3153 + $0x44] sm:$0xf]
        %v3166 = vld [vmem:[%s3153 + $0x48] sm:$0xff]
        %v3167 = vld [vmem:[%s3153 + $0x50] sm:$0xf]
        %v3168 = vld [vmem:[%s3153 + $0x54] sm:$0xff]
        %v3169 = vld [vmem:[%s3153 + $0x5c] sm:$0xf]
        %v3170 = vld [vmem:[%s3153 + $0x60] sm:$0xff]
        %v3171 = vld [vmem:[%s3153 + $0x68] sm:$0xf]
        %v3172 = vld [vmem:[%s3153 + $0x6c] sm:$0xff]
        %v3173 = vld [vmem:[%s3153 + $0x74] sm:$0xf]
        %v3174 = vld [vmem:[%s3153 + $0x78] sm:$0xff]
        %v3175 = vld [vmem:[%s3153 + $0x80] sm:$0xf]
        %v3176 = vld [vmem:[%s3153 + $0x84] sm:$0xff]
        %v3177 = vld [vmem:[%s3153 + $0x8c] sm:$0xf]
        %v3178 = vunpack.c.l.bf16 %v3154
        %v3179 = vunpack.c.h.bf16 %v3154
        %v3180 = vunpack.c.l.bf16 %v3155
        %v3181 = vunpack.c.l.bf16 %v3156
        %v3182 = vunpack.c.h.bf16 %v3156
        %v3183 = vunpack.c.l.bf16 %v3157
        %v3184 = vunpack.c.l.bf16 %v3158
        %v3185 = vunpack.c.h.bf16 %v3158
        %v3186 = vunpack.c.l.bf16 %v3159
        %v3187 = vunpack.c.l.bf16 %v3160
        %v3188 = vunpack.c.h.bf16 %v3160
        %v3189 = vunpack.c.l.bf16 %v3161
        %v3190 = vunpack.c.l.bf16 %v3162
        %v3191 = vunpack.c.h.bf16 %v3162
        %v3192 = vunpack.c.l.bf16 %v3163
        %v3193 = vunpack.c.l.bf16 %v3164
        %v3194 = vunpack.c.h.bf16 %v3164
        %v3195 = vunpack.c.l.bf16 %v3165
        %v3196 = vunpack.c.l.bf16 %v3166
        %v3197 = vunpack.c.h.bf16 %v3166
        %v3198 = vunpack.c.l.bf16 %v3167
        %v3199 = vunpack.c.l.bf16 %v3168
        %v3200 = vunpack.c.h.bf16 %v3168
        %v3201 = vunpack.c.l.bf16 %v3169
        %v3202 = vunpack.c.l.bf16 %v3170
        %v3203 = vunpack.c.h.bf16 %v3170
        %v3204 = vunpack.c.l.bf16 %v3171
        %v3205 = vunpack.c.l.bf16 %v3172
        %v3206 = vunpack.c.h.bf16 %v3172
        %v3207 = vunpack.c.l.bf16 %v3173
        %v3208 = vunpack.c.l.bf16 %v3174
        %v3209 = vunpack.c.h.bf16 %v3174
        %v3210 = vunpack.c.l.bf16 %v3175
        %v3211 = vunpack.c.l.bf16 %v3176
        %v3212 = vunpack.c.h.bf16 %v3176
        %v3213 = vunpack.c.l.bf16 %v3177
        %v3214 = vrot.slane %v2883, 2
        %v3215 = vsel %vm2945, %v3214, 0
        %3217 = vmatpush.msra.mxu0 0.0
        %3218 = vmatpush.msra.mxu0 0.0
        %3219 = vmatpush.msra.mxu0 0.0
        %3220 = vmatpush.msra.mxu0 0.0
        %3221 = vmatpush.msra.mxu0 %v3211
        %3222 = vmatpush.msra.mxu0 %v3208
        %3223 = vmatpush.msra.mxu0 %v3205
        %3224 = vmatpush.msra.mxu0 %v3202
        %3225 = vmatpush.msra.mxu0 %v3199
        %3226 = vmatpush.msra.mxu0 %v3196
        %3227 = vmatpush.msra.mxu0 %v3193
        %3228 = vmatpush.msra.mxu0 %v3190
        %3229 = vmatpush.msra.mxu0 %v3187
        %3230 = vmatpush.msra.mxu0 %v3184
        %3231 = vmatpush.msra.mxu0 %v3181
        %3232 = vmatpush.msra.mxu0 %v3178
        %3233 = vmatmul.f32.gmra.mxu0 %v3215
        %v3234 = vpop.f32.mrf.mxu0
        %v3235 = vadd.f32 0.0, %v3234
        %3236 = vdwg.mxu0
        %3237 = vmatpush.msra.mxu0 0.0
        %3238 = vmatpush.msra.mxu0 0.0
        %3239 = vmatpush.msra.mxu0 0.0
        %3240 = vmatpush.msra.mxu0 0.0
        %3241 = vmatpush.msra.mxu0 %v3212
        %3242 = vmatpush.msra.mxu0 %v3209
        %3243 = vmatpush.msra.mxu0 %v3206
        %3244 = vmatpush.msra.mxu0 %v3203
        %3245 = vmatpush.msra.mxu0 %v3200
        %3246 = vmatpush.msra.mxu0 %v3197
        %3247 = vmatpush.msra.mxu0 %v3194
        %3248 = vmatpush.msra.mxu0 %v3191
        %3249 = vmatpush.msra.mxu0 %v3188
        %3250 = vmatpush.msra.mxu0 %v3185
        %3251 = vmatpush.msra.mxu0 %v3182
        %3252 = vmatpush.msra.mxu0 %v3179
        %3253 = vmatmul.f32.gmra.mxu0 %v3215
        %v3254 = vpop.f32.mrf.mxu0
        %v3255 = vadd.f32 0.0, %v3254
        %3256 = vdwg.mxu0
        %3257 = vmatpush.msra.mxu0 0.0
        %3258 = vmatpush.msra.mxu0 0.0
        %3259 = vmatpush.msra.mxu0 0.0
        %3260 = vmatpush.msra.mxu0 0.0
        %3261 = vmatpush.msra.mxu0 %v3213
        %3262 = vmatpush.msra.mxu0 %v3210
        %3263 = vmatpush.msra.mxu0 %v3207
        %3264 = vmatpush.msra.mxu0 %v3204
        %3265 = vmatpush.msra.mxu0 %v3201
        %3266 = vmatpush.msra.mxu0 %v3198
        %3267 = vmatpush.msra.mxu0 %v3195
        %3268 = vmatpush.msra.mxu0 %v3192
        %3269 = vmatpush.msra.mxu0 %v3189
        %3270 = vmatpush.msra.mxu0 %v3186
        %3271 = vmatpush.msra.mxu0 %v3183
        %3272 = vmatpush.msra.mxu0 %v3180
        %3273 = vmatmul.f32.gmra.mxu0 %v3215
        %v3274 = vpop.f32.mrf.mxu0
        %v3275 = vadd.f32 0.0, %v3274
        %3276 = vdwg.mxu0
        %v3280 = vrot.slane %v3255, 7
        %v3281 = vrot.slane %v3275, 6
        %v3282 = vsel %vm3014, %v3235, %v3280
        %v3283 = vsel %vm3016, %v3282, %v3281
        %v3285 = vadd.f32 %v3152, %v3283
        %s3286 = scalar_lea.vmem %s16, 432
        %v3287 = vld [vmem:[%s3286] sm:$0xff]
        %v3288 = vld [vmem:[%s3286 + $0x8] sm:$0xf]
        %v3289 = vld [vmem:[%s3286 + $0xc] sm:$0xff]
        %v3290 = vld [vmem:[%s3286 + $0x14] sm:$0xf]
        %v3291 = vld [vmem:[%s3286 + $0x18] sm:$0xff]
        %v3292 = vld [vmem:[%s3286 + $0x20] sm:$0xf]
        %v3293 = vld [vmem:[%s3286 + $0x24] sm:$0xff]
        %v3294 = vld [vmem:[%s3286 + $0x2c] sm:$0xf]
        %v3295 = vld [vmem:[%s3286 + $0x30] sm:$0xff]
        %v3296 = vld [vmem:[%s3286 + $0x38] sm:$0xf]
        %v3297 = vld [vmem:[%s3286 + $0x3c] sm:$0xff]
        %v3298 = vld [vmem:[%s3286 + $0x44] sm:$0xf]
        %v3299 = vld [vmem:[%s3286 + $0x48] sm:$0xff]
        %v3300 = vld [vmem:[%s3286 + $0x50] sm:$0xf]
        %v3301 = vld [vmem:[%s3286 + $0x54] sm:$0xff]
        %v3302 = vld [vmem:[%s3286 + $0x5c] sm:$0xf]
        %v3303 = vld [vmem:[%s3286 + $0x60] sm:$0xff]
        %v3304 = vld [vmem:[%s3286 + $0x68] sm:$0xf]
        %v3305 = vld [vmem:[%s3286 + $0x6c] sm:$0xff]
        %v3306 = vld [vmem:[%s3286 + $0x74] sm:$0xf]
        %v3307 = vld [vmem:[%s3286 + $0x78] sm:$0xff]
        %v3308 = vld [vmem:[%s3286 + $0x80] sm:$0xf]
        %v3309 = vld [vmem:[%s3286 + $0x84] sm:$0xff]
        %v3310 = vld [vmem:[%s3286 + $0x8c] sm:$0xf]
        %v3311 = vunpack.c.l.bf16 %v3287
        %v3312 = vunpack.c.h.bf16 %v3287
        %v3313 = vunpack.c.l.bf16 %v3288
        %v3314 = vunpack.c.l.bf16 %v3289
        %v3315 = vunpack.c.h.bf16 %v3289
        %v3316 = vunpack.c.l.bf16 %v3290
        %v3317 = vunpack.c.l.bf16 %v3291
        %v3318 = vunpack.c.h.bf16 %v3291
        %v3319 = vunpack.c.l.bf16 %v3292
        %v3320 = vunpack.c.l.bf16 %v3293
        %v3321 = vunpack.c.h.bf16 %v3293
        %v3322 = vunpack.c.l.bf16 %v3294
        %v3323 = vunpack.c.l.bf16 %v3295
        %v3324 = vunpack.c.h.bf16 %v3295
        %v3325 = vunpack.c.l.bf16 %v3296
        %v3326 = vunpack.c.l.bf16 %v3297
        %v3327 = vunpack.c.h.bf16 %v3297
        %v3328 = vunpack.c.l.bf16 %v3298
        %v3329 = vunpack.c.l.bf16 %v3299
        %v3330 = vunpack.c.h.bf16 %v3299
        %v3331 = vunpack.c.l.bf16 %v3300
        %v3332 = vunpack.c.l.bf16 %v3301
        %v3333 = vunpack.c.h.bf16 %v3301
        %v3334 = vunpack.c.l.bf16 %v3302
        %v3335 = vunpack.c.l.bf16 %v3303
        %v3336 = vunpack.c.h.bf16 %v3303
        %v3337 = vunpack.c.l.bf16 %v3304
        %v3338 = vunpack.c.l.bf16 %v3305
        %v3339 = vunpack.c.h.bf16 %v3305
        %v3340 = vunpack.c.l.bf16 %v3306
        %v3341 = vunpack.c.l.bf16 %v3307
        %v3342 = vunpack.c.h.bf16 %v3307
        %v3343 = vunpack.c.l.bf16 %v3308
        %v3344 = vunpack.c.l.bf16 %v3309
        %v3345 = vunpack.c.h.bf16 %v3309
        %v3346 = vunpack.c.l.bf16 %v3310
        %v3347 = vrot.slane %v2883, 3
        %v3348 = vsel %vm2945, %v3347, 0
        %3350 = vmatpush.msra.mxu0 0.0
        %3351 = vmatpush.msra.mxu0 0.0
        %3352 = vmatpush.msra.mxu0 0.0
        %3353 = vmatpush.msra.mxu0 0.0
        %3354 = vmatpush.msra.mxu0 %v3344
        %3355 = vmatpush.msra.mxu0 %v3341
        %3356 = vmatpush.msra.mxu0 %v3338
        %3357 = vmatpush.msra.mxu0 %v3335
        %3358 = vmatpush.msra.mxu0 %v3332
        %3359 = vmatpush.msra.mxu0 %v3329
        %3360 = vmatpush.msra.mxu0 %v3326
        %3361 = vmatpush.msra.mxu0 %v3323
        %3362 = vmatpush.msra.mxu0 %v3320
        %3363 = vmatpush.msra.mxu0 %v3317
        %3364 = vmatpush.msra.mxu0 %v3314
        %3365 = vmatpush.msra.mxu0 %v3311
        %3366 = vmatmul.f32.gmra.mxu0 %v3348
        %v3367 = vpop.f32.mrf.mxu0
        %v3368 = vadd.f32 0.0, %v3367
        %3369 = vdwg.mxu0
        %3370 = vmatpush.msra.mxu0 0.0
        %3371 = vmatpush.msra.mxu0 0.0
        %3372 = vmatpush.msra.mxu0 0.0
        %3373 = vmatpush.msra.mxu0 0.0
        %3374 = vmatpush.msra.mxu0 %v3345
        %3375 = vmatpush.msra.mxu0 %v3342
        %3376 = vmatpush.msra.mxu0 %v3339
        %3377 = vmatpush.msra.mxu0 %v3336
        %3378 = vmatpush.msra.mxu0 %v3333
        %3379 = vmatpush.msra.mxu0 %v3330
        %3380 = vmatpush.msra.mxu0 %v3327
        %3381 = vmatpush.msra.mxu0 %v3324
        %3382 = vmatpush.msra.mxu0 %v3321
        %3383 = vmatpush.msra.mxu0 %v3318
        %3384 = vmatpush.msra.mxu0 %v3315
        %3385 = vmatpush.msra.mxu0 %v3312
        %3386 = vmatmul.f32.gmra.mxu0 %v3348
        %v3387 = vpop.f32.mrf.mxu0
        %v3388 = vadd.f32 0.0, %v3387
        %3389 = vdwg.mxu0
        %3390 = vmatpush.msra.mxu0 0.0
        %3391 = vmatpush.msra.mxu0 0.0
        %3392 = vmatpush.msra.mxu0 0.0
        %3393 = vmatpush.msra.mxu0 0.0
        %3394 = vmatpush.msra.mxu0 %v3346
        %3395 = vmatpush.msra.mxu0 %v3343
        %3396 = vmatpush.msra.mxu0 %v3340
        %3397 = vmatpush.msra.mxu0 %v3337
        %3398 = vmatpush.msra.mxu0 %v3334
        %3399 = vmatpush.msra.mxu0 %v3331
        %3400 = vmatpush.msra.mxu0 %v3328
        %3401 = vmatpush.msra.mxu0 %v3325
        %3402 = vmatpush.msra.mxu0 %v3322
        %3403 = vmatpush.msra.mxu0 %v3319
        %3404 = vmatpush.msra.mxu0 %v3316
        %3405 = vmatpush.msra.mxu0 %v3313
        %3406 = vmatmul.f32.gmra.mxu0 %v3348
        %v3407 = vpop.f32.mrf.mxu0
        %v3408 = vadd.f32 0.0, %v3407
        %3409 = vdwg.mxu0
        %v3413 = vrot.slane %v3388, 7
        %v3414 = vrot.slane %v3408, 6
        %v3415 = vsel %vm3014, %v3368, %v3413
        %v3416 = vsel %vm3016, %v3415, %v3414
        %v3418 = vadd.f32 %v3285, %v3416
        %v3419 = vmax.f32 %v3418, 0.0
        %v3420 = vld [vmem:[%s18] sm:$0xff]
        %v3421 = vld [vmem:[%s18 + $0x8] sm:$0xff]
        %v3422 = vld [vmem:[%s18 + $0x10] sm:$0xff]
        %v3423 = vld [vmem:[%s18 + $0x18] sm:$0xff]
        %v3424 = vld [vmem:[%s18 + $0x20] sm:$0xff]
        %v3425 = vld [vmem:[%s18 + $0x28] sm:$0xff]
        %v3426 = vld [vmem:[%s18 + $0x30] sm:$0xff]
        %v3427 = vld [vmem:[%s18 + $0x38] sm:$0xff]
        %v3428 = vld [vmem:[%s18 + $0x40] sm:$0xff]
        %v3429 = vld [vmem:[%s18 + $0x48] sm:$0xff]
        %v3430 = vld [vmem:[%s18 + $0x50] sm:$0xff]
        %v3431 = vld [vmem:[%s18 + $0x58] sm:$0xff]
        %v3432 = vld [vmem:[%s18 + $0x60] sm:$0xff]
        %v3433 = vld [vmem:[%s18 + $0x68] sm:$0xff]
        %v3434 = vld [vmem:[%s18 + $0x70] sm:$0xff]
        %v3435 = vld [vmem:[%s18 + $0x78] sm:$0xff]
        %v3436 = vld [vmem:[%s18 + $0x80] sm:$0xff]
        %v3437 = vld [vmem:[%s18 + $0x88] sm:$0xff]
        %v3438 = vld [vmem:[%s18 + $0x90] sm:$0xff]
        %v3439 = vld [vmem:[%s18 + $0x98] sm:$0xff]
        %v3440 = vld [vmem:[%s18 + $0xa0] sm:$0xff]
        %v3441 = vld [vmem:[%s18 + $0xa8] sm:$0xff]
        %v3442 = vld [vmem:[%s18 + $0xb0] sm:$0xff]
        %v3443 = vld [vmem:[%s18 + $0xb8] sm:$0xff]
        %v3444 = vld [vmem:[%s18 + $0xc0] sm:$0xff]
        %v3445 = vld [vmem:[%s18 + $0xc8] sm:$0xff]
        %v3446 = vld [vmem:[%s18 + $0xd0] sm:$0xff]
        %v3447 = vld [vmem:[%s18 + $0xd8] sm:$0xff]
        %v3448 = vld [vmem:[%s18 + $0xe0] sm:$0xff]
        %v3449 = vld [vmem:[%s18 + $0xe8] sm:$0xff]
        %v3450 = vld [vmem:[%s18 + $0xf0] sm:$0xff]
        %v3451 = vld [vmem:[%s18 + $0xf8] sm:$0xff]
        %v3452 = vld [vmem:[%s18 + $0x100] sm:$0xff]
        %v3453 = vld [vmem:[%s18 + $0x108] sm:$0xff]
        %v3454 = vld [vmem:[%s18 + $0x110] sm:$0xff]
        %v3455 = vld [vmem:[%s18 + $0x118] sm:$0xff]
        %v3456 = vld [vmem:[%s18 + $0x120] sm:$0xff]
        %v3457 = vld [vmem:[%s18 + $0x128] sm:$0xff]
        %v3458 = vld [vmem:[%s18 + $0x130] sm:$0xff]
        %v3459 = vld [vmem:[%s18 + $0x138] sm:$0xff]
        %v3460 = vld [vmem:[%s18 + $0x140] sm:$0xff]
        %v3461 = vld [vmem:[%s18 + $0x148] sm:$0x11]
        %v3462 = vunpack.c.l.bf16 %v3420
        %v3463 = vunpack.c.h.bf16 %v3420
        %v3464 = vunpack.c.l.bf16 %v3421
        %v3465 = vunpack.c.h.bf16 %v3421
        %v3466 = vunpack.c.l.bf16 %v3422
        %v3467 = vunpack.c.h.bf16 %v3422
        %v3468 = vunpack.c.l.bf16 %v3423
        %v3469 = vunpack.c.h.bf16 %v3423
        %v3470 = vunpack.c.l.bf16 %v3424
        %v3471 = vunpack.c.h.bf16 %v3424
        %v3472 = vunpack.c.l.bf16 %v3425
        %v3473 = vunpack.c.h.bf16 %v3425
        %v3474 = vunpack.c.l.bf16 %v3426
        %v3475 = vunpack.c.h.bf16 %v3426
        %v3476 = vunpack.c.l.bf16 %v3427
        %v3477 = vunpack.c.h.bf16 %v3427
        %v3478 = vunpack.c.l.bf16 %v3428
        %v3479 = vunpack.c.h.bf16 %v3428
        %v3480 = vunpack.c.l.bf16 %v3429
        %v3481 = vunpack.c.h.bf16 %v3429
        %v3482 = vunpack.c.l.bf16 %v3430
        %v3483 = vunpack.c.h.bf16 %v3430
        %v3484 = vunpack.c.l.bf16 %v3431
        %v3485 = vunpack.c.h.bf16 %v3431
        %v3486 = vunpack.c.l.bf16 %v3432
        %v3487 = vunpack.c.h.bf16 %v3432
        %v3488 = vunpack.c.l.bf16 %v3433
        %v3489 = vunpack.c.h.bf16 %v3433
        %v3490 = vunpack.c.l.bf16 %v3434
        %v3491 = vunpack.c.h.bf16 %v3434
        %v3492 = vunpack.c.l.bf16 %v3435
        %v3493 = vunpack.c.h.bf16 %v3435
        %v3494 = vunpack.c.l.bf16 %v3436
        %v3495 = vunpack.c.h.bf16 %v3436
        %v3496 = vunpack.c.l.bf16 %v3437
        %v3497 = vunpack.c.h.bf16 %v3437
        %v3498 = vunpack.c.l.bf16 %v3438
        %v3499 = vunpack.c.h.bf16 %v3438
        %v3500 = vunpack.c.l.bf16 %v3439
        %v3501 = vunpack.c.h.bf16 %v3439
        %v3502 = vunpack.c.l.bf16 %v3440
        %v3503 = vunpack.c.h.bf16 %v3440
        %v3504 = vunpack.c.l.bf16 %v3441
        %v3505 = vunpack.c.h.bf16 %v3441
        %v3506 = vunpack.c.l.bf16 %v3442
        %v3507 = vunpack.c.h.bf16 %v3442
        %v3508 = vunpack.c.l.bf16 %v3443
        %v3509 = vunpack.c.h.bf16 %v3443
        %v3510 = vunpack.c.l.bf16 %v3444
        %v3511 = vunpack.c.h.bf16 %v3444
        %v3512 = vunpack.c.l.bf16 %v3445
        %v3513 = vunpack.c.h.bf16 %v3445
        %v3514 = vunpack.c.l.bf16 %v3446
        %v3515 = vunpack.c.h.bf16 %v3446
        %v3516 = vunpack.c.l.bf16 %v3447
        %v3517 = vunpack.c.h.bf16 %v3447
        %v3518 = vunpack.c.l.bf16 %v3448
        %v3519 = vunpack.c.h.bf16 %v3448
        %v3520 = vunpack.c.l.bf16 %v3449
        %v3521 = vunpack.c.h.bf16 %v3449
        %v3522 = vunpack.c.l.bf16 %v3450
        %v3523 = vunpack.c.h.bf16 %v3450
        %v3524 = vunpack.c.l.bf16 %v3451
        %v3525 = vunpack.c.h.bf16 %v3451
        %v3526 = vunpack.c.l.bf16 %v3452
        %v3527 = vunpack.c.h.bf16 %v3452
        %v3528 = vunpack.c.l.bf16 %v3453
        %v3529 = vunpack.c.h.bf16 %v3453
        %v3530 = vunpack.c.l.bf16 %v3454
        %v3531 = vunpack.c.h.bf16 %v3454
        %v3532 = vunpack.c.l.bf16 %v3455
        %v3533 = vunpack.c.h.bf16 %v3455
        %v3534 = vunpack.c.l.bf16 %v3456
        %v3535 = vunpack.c.h.bf16 %v3456
        %v3536 = vunpack.c.l.bf16 %v3457
        %v3537 = vunpack.c.h.bf16 %v3457
        %v3538 = vunpack.c.l.bf16 %v3458
        %v3539 = vunpack.c.h.bf16 %v3458
        %v3540 = vunpack.c.l.bf16 %v3459
        %v3541 = vunpack.c.h.bf16 %v3459
        %v3542 = vunpack.c.l.bf16 %v3460
        %v3543 = vunpack.c.h.bf16 %v3460
        %v3544 = vunpack.c.l.bf16 %v3461
        %v3545 = vunpack.c.h.bf16 %v3461
        %v3546 = vld [vmem:[%s19] sm:$0x3]
        %v3548 = vperm.slane %v3419, 0
        %v3549 = vperm.slane %v3419, 1
        %v3550 = vperm.slane %v3419, 2
        %v3554 = vperm.slane %v3546, 0
        %v3555 = vperm.slane %v3546, 1
        %vm3558 = vcmask 605184
        %v3559 = vsel %vm3558, %v3550, 0
        %v3562 = vsel %vm3016, %v3544, 0
        %v3565 = vsel %vm3016, %v3545, 0
        %3567 = vmatpush.msra.mxu0 %v3492
        %3568 = vmatpush.msra.mxu0 %v3490
        %3569 = vmatpush.msra.mxu0 %v3488
        %3570 = vmatpush.msra.mxu0 %v3486
        %3571 = vmatpush.msra.mxu0 %v3484
        %3572 = vmatpush.msra.mxu0 %v3482
        %3573 = vmatpush.msra.mxu0 %v3480
        %3574 = vmatpush.msra.mxu0 %v3478
        %3575 = vmatpush.msra.mxu0 %v3476
        %3576 = vmatpush.msra.mxu0 %v3474
        %3577 = vmatpush.msra.mxu0 %v3472
        %3578 = vmatpush.msra.mxu0 %v3470
        %3579 = vmatpush.msra.mxu0 %v3468
        %3580 = vmatpush.msra.mxu0 %v3466
        %3581 = vmatpush.msra.mxu0 %v3464
        %3582 = vmatpush.msra.mxu0 %v3462
        %3583 = vmatmul.f32.gmra.mxu0 %v3548
        %v3584 = vpop.f32.mrf.mxu0
        %v3585 = vadd.f32 %v3554, %v3584
        %3586 = vdwg.mxu0
        %3587 = vmatpush.msra.mxu0 %v3524
        %3588 = vmatpush.msra.mxu0 %v3522
        %3589 = vmatpush.msra.mxu0 %v3520
        %3590 = vmatpush.msra.mxu0 %v3518
        %3591 = vmatpush.msra.mxu0 %v3516
        %3592 = vmatpush.msra.mxu0 %v3514
        %3593 = vmatpush.msra.mxu0 %v3512
        %3594 = vmatpush.msra.mxu0 %v3510
        %3595 = vmatpush.msra.mxu0 %v3508
        %3596 = vmatpush.msra.mxu0 %v3506
        %3597 = vmatpush.msra.mxu0 %v3504
        %3598 = vmatpush.msra.mxu0 %v3502
        %3599 = vmatpush.msra.mxu0 %v3500
        %3600 = vmatpush.msra.mxu0 %v3498
        %3601 = vmatpush.msra.mxu0 %v3496
        %3602 = vmatpush.msra.mxu0 %v3494
        %3603 = vmatmul.f32.gmra.mxu0 %v3549
        %v3604 = vpop.f32.mrf.mxu0
        %v3605 = vadd.f32 %v3585, %v3604
        %3606 = vdwg.mxu0
        %3607 = vmatpush.msra.mxu0 0.0
        %3608 = vmatpush.msra.mxu0 0.0
        %3609 = vmatpush.msra.mxu0 0.0
        %3610 = vmatpush.msra.mxu0 0.0
        %3611 = vmatpush.msra.mxu0 0.0
        %3612 = vmatpush.msra.mxu0 0.0
        %3613 = vmatpush.msra.mxu0 %v3562
        %3614 = vmatpush.msra.mxu0 %v3542
        %3615 = vmatpush.msra.mxu0 %v3540
        %3616 = vmatpush.msra.mxu0 %v3538
        %3617 = vmatpush.msra.mxu0 %v3536
        %3618 = vmatpush.msra.mxu0 %v3534
        %3619 = vmatpush.msra.mxu0 %v3532
        %3620 = vmatpush.msra.mxu0 %v3530
        %3621 = vmatpush.msra.mxu0 %v3528
        %3622 = vmatpush.msra.mxu0 %v3526
        %3623 = vmatmul.f32.gmra.mxu0 %v3559
        %v3624 = vpop.f32.mrf.mxu0
        %v3625 = vadd.f32 %v3605, %v3624
        %3626 = vdwg.mxu0
        %3627 = vmatpush.msra.mxu0 %v3493
        %3628 = vmatpush.msra.mxu0 %v3491
        %3629 = vmatpush.msra.mxu0 %v3489
        %3630 = vmatpush.msra.mxu0 %v3487
        %3631 = vmatpush.msra.mxu0 %v3485
        %3632 = vmatpush.msra.mxu0 %v3483
        %3633 = vmatpush.msra.mxu0 %v3481
        %3634 = vmatpush.msra.mxu0 %v3479
        %3635 = vmatpush.msra.mxu0 %v3477
        %3636 = vmatpush.msra.mxu0 %v3475
        %3637 = vmatpush.msra.mxu0 %v3473
        %3638 = vmatpush.msra.mxu0 %v3471
        %3639 = vmatpush.msra.mxu0 %v3469
        %3640 = vmatpush.msra.mxu0 %v3467
        %3641 = vmatpush.msra.mxu0 %v3465
        %3642 = vmatpush.msra.mxu0 %v3463
        %3643 = vmatmul.f32.gmra.mxu0 %v3548
        %v3644 = vpop.f32.mrf.mxu0
        %v3645 = vadd.f32 %v3555, %v3644
        %3646 = vdwg.mxu0
        %3647 = vmatpush.msra.mxu0 %v3525
        %3648 = vmatpush.msra.mxu0 %v3523
        %3649 = vmatpush.msra.mxu0 %v3521
        %3650 = vmatpush.msra.mxu0 %v3519
        %3651 = vmatpush.msra.mxu0 %v3517
        %3652 = vmatpush.msra.mxu0 %v3515
        %3653 = vmatpush.msra.mxu0 %v3513
        %3654 = vmatpush.msra.mxu0 %v3511
        %3655 = vmatpush.msra.mxu0 %v3509
        %3656 = vmatpush.msra.mxu0 %v3507
        %3657 = vmatpush.msra.mxu0 %v3505
        %3658 = vmatpush.msra.mxu0 %v3503
        %3659 = vmatpush.msra.mxu0 %v3501
        %3660 = vmatpush.msra.mxu0 %v3499
        %3661 = vmatpush.msra.mxu0 %v3497
        %3662 = vmatpush.msra.mxu0 %v3495
        %3663 = vmatmul.f32.gmra.mxu0 %v3549
        %v3664 = vpop.f32.mrf.mxu0
        %v3665 = vadd.f32 %v3645, %v3664
        %3666 = vdwg.mxu0
        %3667 = vmatpush.msra.mxu0 0.0
        %3668 = vmatpush.msra.mxu0 0.0
        %3669 = vmatpush.msra.mxu0 0.0
        %3670 = vmatpush.msra.mxu0 0.0
        %3671 = vmatpush.msra.mxu0 0.0
        %3672 = vmatpush.msra.mxu0 0.0
        %3673 = vmatpush.msra.mxu0 %v3565
        %3674 = vmatpush.msra.mxu0 %v3543
        %3675 = vmatpush.msra.mxu0 %v3541
        %3676 = vmatpush.msra.mxu0 %v3539
        %3677 = vmatpush.msra.mxu0 %v3537
        %3678 = vmatpush.msra.mxu0 %v3535
        %3679 = vmatpush.msra.mxu0 %v3533
        %3680 = vmatpush.msra.mxu0 %v3531
        %3681 = vmatpush.msra.mxu0 %v3529
        %3682 = vmatpush.msra.mxu0 %v3527
        %3683 = vmatmul.f32.gmra.mxu0 %v3559
        %v3684 = vpop.f32.mrf.mxu0
        %v3685 = vadd.f32 %v3665, %v3684
        %3686 = vdwg.mxu0
        %v3687 = vmax.f32 %v3625, 0.0
        %v3688 = vmax.f32 %v3685, 0.0
        %v3689 = vld [vmem:[%s20] sm:$0xf]
        %v3690 = vld [vmem:[%s20 + $0x4] sm:$0xf]
        %v3691 = vld [vmem:[%s20 + $0x8] sm:$0xf]
        %v3692 = vld [vmem:[%s20 + $0xc] sm:$0xf]
        %v3693 = vld [vmem:[%s20 + $0x10] sm:$0xf]
        %v3694 = vld [vmem:[%s20 + $0x14] sm:$0xf]
        %v3695 = vld [vmem:[%s20 + $0x18] sm:$0xf]
        %v3696 = vld [vmem:[%s20 + $0x1c] sm:$0xf]
        %v3697 = vld [vmem:[%s20 + $0x20] sm:$0xf]
        %v3698 = vld [vmem:[%s20 + $0x24] sm:$0xf]
        %v3699 = vld [vmem:[%s20 + $0x28] sm:$0xf]
        %v3700 = vld [vmem:[%s20 + $0x2c] sm:$0xf]
        %v3701 = vld [vmem:[%s20 + $0x30] sm:$0xf]
        %v3702 = vld [vmem:[%s20 + $0x34] sm:$0xf]
        %v3703 = vld [vmem:[%s20 + $0x38] sm:$0xf]
        %v3704 = vld [vmem:[%s20 + $0x3c] sm:$0xf]
        %v3705 = vld [vmem:[%s20 + $0x40] sm:$0xf]
        %v3706 = vld [vmem:[%s20 + $0x44] sm:$0xf]
        %v3707 = vld [vmem:[%s20 + $0x48] sm:$0xf]
        %v3708 = vld [vmem:[%s20 + $0x4c] sm:$0xf]
        %v3709 = vld [vmem:[%s20 + $0x50] sm:$0xf]
        %v3710 = vld [vmem:[%s20 + $0x54] sm:$0xf]
        %v3711 = vld [vmem:[%s20 + $0x58] sm:$0xf]
        %v3712 = vld [vmem:[%s20 + $0x5c] sm:$0xf]
        %v3713 = vld [vmem:[%s20 + $0x60] sm:$0xf]
        %v3714 = vld [vmem:[%s20 + $0x64] sm:$0xf]
        %v3715 = vld [vmem:[%s20 + $0x68] sm:$0xf]
        %v3716 = vld [vmem:[%s20 + $0x6c] sm:$0xf]
        %v3717 = vld [vmem:[%s20 + $0x70] sm:$0xf]
        %v3718 = vld [vmem:[%s20 + $0x74] sm:$0xf]
        %v3719 = vld [vmem:[%s20 + $0x78] sm:$0xf]
        %v3720 = vld [vmem:[%s20 + $0x7c] sm:$0x1]
        %v3721 = vunpack.c.l.bf16 %v3689
        %v3722 = vunpack.c.l.bf16 %v3690
        %v3723 = vunpack.c.l.bf16 %v3691
        %v3724 = vunpack.c.l.bf16 %v3692
        %v3725 = vunpack.c.l.bf16 %v3693
        %v3726 = vunpack.c.l.bf16 %v3694
        %v3727 = vunpack.c.l.bf16 %v3695
        %v3728 = vunpack.c.l.bf16 %v3696
        %v3729 = vunpack.c.l.bf16 %v3697
        %v3730 = vunpack.c.l.bf16 %v3698
        %v3731 = vunpack.c.l.bf16 %v3699
        %v3732 = vunpack.c.l.bf16 %v3700
        %v3733 = vunpack.c.l.bf16 %v3701
        %v3734 = vunpack.c.l.bf16 %v3702
        %v3735 = vunpack.c.l.bf16 %v3703
        %v3736 = vunpack.c.l.bf16 %v3704
        %v3737 = vunpack.c.l.bf16 %v3705
        %v3738 = vunpack.c.l.bf16 %v3706
        %v3739 = vunpack.c.l.bf16 %v3707
        %v3740 = vunpack.c.l.bf16 %v3708
        %v3741 = vunpack.c.l.bf16 %v3709
        %v3742 = vunpack.c.l.bf16 %v3710
        %v3743 = vunpack.c.l.bf16 %v3711
        %v3744 = vunpack.c.l.bf16 %v3712
        %v3745 = vunpack.c.l.bf16 %v3713
        %v3746 = vunpack.c.l.bf16 %v3714
        %v3747 = vunpack.c.l.bf16 %v3715
        %v3748 = vunpack.c.l.bf16 %v3716
        %v3749 = vunpack.c.l.bf16 %v3717
        %v3750 = vunpack.c.l.bf16 %v3718
        %v3751 = vunpack.c.l.bf16 %v3719
        %v3752 = vunpack.c.l.bf16 %v3720
        %v3753 = vld [vmem:[%s21] sm:$0x1]
        %vm3754 = vcmask 998400
        %v3756 = vsel %vm3754, %v3688, 0
        %v3759 = vsel %vm3016, %v3752, 0
        %3761 = vmatpush.msra.mxu0 %v3736
        %3762 = vmatpush.msra.mxu0 %v3735
        %3763 = vmatpush.msra.mxu0 %v3734
        %3764 = vmatpush.msra.mxu0 %v3733
        %3765 = vmatpush.msra.mxu0 %v3732
        %3766 = vmatpush.msra.mxu0 %v3731
        %3767 = vmatpush.msra.mxu0 %v3730
        %3768 = vmatpush.msra.mxu0 %v3729
        %3769 = vmatpush.msra.mxu0 %v3728
        %3770 = vmatpush.msra.mxu0 %v3727
        %3771 = vmatpush.msra.mxu0 %v3726
        %3772 = vmatpush.msra.mxu0 %v3725
        %3773 = vmatpush.msra.mxu0 %v3724
        %3774 = vmatpush.msra.mxu0 %v3723
        %3775 = vmatpush.msra.mxu0 %v3722
        %3776 = vmatpush.msra.mxu0 %v3721
        %3777 = vmatmul.f32.gmra.mxu0 %v3687
        %v3778 = vpop.f32.mrf.mxu0
        %v3779 = vadd.f32 %v3753, %v3778
        %3780 = vdwg.mxu0
        %3781 = vmatpush.msra.mxu0 %v3759
        %3782 = vmatpush.msra.mxu0 %v3751
        %3783 = vmatpush.msra.mxu0 %v3750
        %3784 = vmatpush.msra.mxu0 %v3749
        %3785 = vmatpush.msra.mxu0 %v3748
        %3786 = vmatpush.msra.mxu0 %v3747
        %3787 = vmatpush.msra.mxu0 %v3746
        %3788 = vmatpush.msra.mxu0 %v3745
        %3789 = vmatpush.msra.mxu0 %v3744
        %3790 = vmatpush.msra.mxu0 %v3743
        %3791 = vmatpush.msra.mxu0 %v3742
        %3792 = vmatpush.msra.mxu0 %v3741
        %3793 = vmatpush.msra.mxu0 %v3740
        %3794 = vmatpush.msra.mxu0 %v3739
        %3795 = vmatpush.msra.mxu0 %v3738
        %3796 = vmatpush.msra.mxu0 %v3737
        %3797 = vmatmul.f32.gmra.mxu0 %v3756
        %v3798 = vpop.f32.mrf.mxu0
        %v3799 = vadd.f32 %v3779, %v3798
        %3800 = vdwg.mxu0
        %v3801 = vmax.f32 %v3799, 0.0
        %v3802 = vld [vmem:[%s22] sm:$0xf]
        %v3803 = vld [vmem:[%s22 + $0x4] sm:$0xf]
        %v3804 = vld [vmem:[%s22 + $0x8] sm:$0xf]
        %v3805 = vld [vmem:[%s22 + $0xc] sm:$0xf]
        %v3806 = vld [vmem:[%s22 + $0x10] sm:$0xf]
        %v3807 = vld [vmem:[%s22 + $0x14] sm:$0xf]
        %v3808 = vld [vmem:[%s22 + $0x18] sm:$0xf]
        %v3809 = vld [vmem:[%s22 + $0x1c] sm:$0xf]
        %v3810 = vld [vmem:[%s22 + $0x20] sm:$0xf]
        %v3811 = vld [vmem:[%s22 + $0x24] sm:$0xf]
        %v3812 = vld [vmem:[%s22 + $0x28] sm:$0xf]
        %v3813 = vld [vmem:[%s22 + $0x2c] sm:$0xf]
        %v3814 = vld [vmem:[%s22 + $0x30] sm:$0x3]
        %v3815 = vunpack.c.l.bf16 %v3802
        %v3816 = vunpack.c.l.bf16 %v3803
        %v3817 = vunpack.c.l.bf16 %v3804
        %v3818 = vunpack.c.l.bf16 %v3805
        %v3819 = vunpack.c.l.bf16 %v3806
        %v3820 = vunpack.c.l.bf16 %v3807
        %v3821 = vunpack.c.l.bf16 %v3808
        %v3822 = vunpack.c.l.bf16 %v3809
        %v3823 = vunpack.c.l.bf16 %v3810
        %v3824 = vunpack.c.l.bf16 %v3811
        %v3825 = vunpack.c.l.bf16 %v3812
        %v3826 = vunpack.c.l.bf16 %v3813
        %v3827 = vunpack.c.l.bf16 %v3814
        %v3828 = vld [vmem:[%s23] sm:$0x1]
        %vm3829 = vcmask 818176
        %v3831 = vsel %vm3829, %v3801, 0
        %v3834 = vsel %vm1781, %v3827, 0
        %3836 = vmatpush.msra.mxu0 0.0
        %3837 = vmatpush.msra.mxu0 0.0
        %3838 = vmatpush.msra.mxu0 0.0
        %3839 = vmatpush.msra.mxu0 %v3834
        %3840 = vmatpush.msra.mxu0 %v3826
        %3841 = vmatpush.msra.mxu0 %v3825
        %3842 = vmatpush.msra.mxu0 %v3824
        %3843 = vmatpush.msra.mxu0 %v3823
        %3844 = vmatpush.msra.mxu0 %v3822
        %3845 = vmatpush.msra.mxu0 %v3821
        %3846 = vmatpush.msra.mxu0 %v3820
        %3847 = vmatpush.msra.mxu0 %v3819
        %3848 = vmatpush.msra.mxu0 %v3818
        %3849 = vmatpush.msra.mxu0 %v3817
        %3850 = vmatpush.msra.mxu0 %v3816
        %3851 = vmatpush.msra.mxu0 %v3815
        %3852 = vmatmul.f32.gmra.mxu0 %v3831
        %v3853 = vpop.f32.mrf.mxu0
        %v3854 = vadd.f32 %v3828, %v3853
        %3855 = vdwg.mxu0
        %v3856 = vmax.f32 %v3854, 0.0
        %v3857 = vld [vmem:[%s24] sm:$0xf]
        %v3858 = vld [vmem:[%s24 + $0x4] sm:$0xf]
        %v3859 = vld [vmem:[%s24 + $0x8] sm:$0xf]
        %v3860 = vld [vmem:[%s24 + $0xc] sm:$0xf]
        %v3861 = vld [vmem:[%s24 + $0x10] sm:$0xf]
        %v3862 = vld [vmem:[%s24 + $0x14] sm:$0xf]
        %v3863 = vld [vmem:[%s24 + $0x18] sm:$0x1]
        %v3864 = vunpack.c.l.bf16 %v3857
        %v3865 = vunpack.c.l.bf16 %v3858
        %v3866 = vunpack.c.l.bf16 %v3859
        %v3867 = vunpack.c.l.bf16 %v3860
        %v3868 = vunpack.c.l.bf16 %v3861
        %v3869 = vunpack.c.l.bf16 %v3862
        %v3870 = vunpack.c.l.bf16 %v3863
        %v3871 = vld [vmem:[%s25] sm:$0x1]
        %vm3872 = vcmask 408576
        %v3874 = vsel %vm3872, %v3856, 0
        %v3877 = vsel %vm3016, %v3870, 0
        %3879 = vmatpush.msra.mxu0 0.0
        %3880 = vmatpush.msra.mxu0 0.0
        %3881 = vmatpush.msra.mxu0 0.0
        %3882 = vmatpush.msra.mxu0 0.0
        %3883 = vmatpush.msra.mxu0 0.0
        %3884 = vmatpush.msra.mxu0 0.0
        %3885 = vmatpush.msra.mxu0 0.0
        %3886 = vmatpush.msra.mxu0 0.0
        %3887 = vmatpush.msra.mxu0 0.0
        %3888 = vmatpush.msra.mxu0 %v3877
        %3889 = vmatpush.msra.mxu0 %v3869
        %3890 = vmatpush.msra.mxu0 %v3868
        %3891 = vmatpush.msra.mxu0 %v3867
        %3892 = vmatpush.msra.mxu0 %v3866
        %3893 = vmatpush.msra.mxu0 %v3865
        %3894 = vmatpush.msra.mxu0 %v3864
        %3895 = vmatmul.f32.gmra.mxu0 %v3874
        %v3896 = vpop.f32.mrf.mxu0
        %v3897 = vadd.f32 %v3871, %v3896
        %3898 = vdwg.mxu0
        %vm3899 = vcmask 73728
        %v3900 = vsel %vm3899, %v3897, -inf
        %3901 = vmax.xlane.f32.xlu0 %v3900
        %v3902 = vpop.xlane.xlu0 %3901
        %v3903 = vsub.f32 %v3897, %v3902
        %v3904 = vmul.f32 %v3903, 1.442695
        %v3905 = vpow.pop %v3904
        %v3906 = vsel %vm3899, %v3905, 0.0
        %3907 = vadd.xlane.f32.xlu0 %v3906
        %v3908 = vpop.xlane.xlu0 %3907
        %v3909 = vrcp.pop %v3908
        %v3910 = vmul.f32 %v3908, %v3909
        %v3911 = vsub.f32 1.0, %v3910
        %v3912 = vmul.f32 %v3909, %v3911
        %v3913 = vadd.f32 %v3909, %v3912
        %vm3914 = vweird.f32 %v3908
        %vm3915 = vweird.f32 %v3909
        %vm3916 = vmor %vm3914, %vm3915
        %v3917 = vsel %vm3916, %v3909, %v3913
        %v3918 = vand.u32 2147483647, %v3908
        %vm3919 = vcmp.eq.f32.partialorder %v3918, 8.507059e+37
        %v3920 = vand.u32 %v3908, 2147483648
        %v3921 = vor.u32 1.1754944e-38, %v3920
        %v3922 = vsel %vm3919, %v3921, %v3917
        %v3923 = vmul.f32 %v3905, %v3922
        %3924 = vst.msk [vmem:[%s783] sm:$0x1] %vm3899, %v3923
        %s3925 = sand.u32 %s599, 1
        %s3926 = scalar_lea.sflag [#allocation3], %s3925
        %s3927 = sand.u32 %s599, 1
        %s3928 = scalar_lea.vmem [#allocation2], %s3927
        // Predicated region
        $region125: #{forward.1} parent=123 // pred_check
          %p3929 = pneg %p609
        $region126: #{forward.1} parent=123 // pred_check_branch
          %3931 = sbr.rel (%p3929) target = $region128
        $region127: #{forward.1} parent=123 // pred_region
          %3933 = vsyncadd %s3926, 0
          %s3934 = scalar_lea.hbm %s26, %s40
          %s3936 = sshll.u32 %s3928, 4
          %s3937 = int_to_ptr.vmem [resolvable:$true] %s3936
          %s3938 = sshll.u32 %s3934, 4
          %s3939 = int_to_ptr.hbm [resolvable:$true] %s3938
          %3941 = dma.vmem_to_hbm [thread:$0]  %s3937, 16, %s3939, %s3926
        $region128: #{forward.1} parent=123 // pred_fallthru
          _
      $region124: #{forward.1} parent=5 // pred_fallthru
        _
      %p3942 = scmp.le.s32.totalorder 2, %s35
      // Predicated region
      $region129: #{forward.1} parent=5 // pred_check
        %p3943 = pneg %p3942
      $region130: #{forward.1} parent=5 // pred_check_branch
        %3945 = sbr.rel (%p3943) target = $region132
      $region131: #{forward.1} parent=5 // pred_region
        %s3946 = ssub.s32 %s35, 2
        // Predicated region
        $region133: #{forward.1} parent=131 // pred_check
          %p3947 = pneg %p615
        $region134: #{forward.1} parent=131 // pred_check_branch
          %3949 = sbr.rel (%p3947) target = $region136
        $region135: #{forward.1} parent=131 // pred_region
          %s3950 = sand.u32 %s600, 1
          %s3951 = scalar_lea.sflag [#allocation3], %s3950
          %s3952 = sand.u32 %s600, 1
          %s3953 = scalar_lea.vmem [#allocation2], %s3952
          %3955 = dma.done %s3951, 16
        $region136: #{forward.1} parent=131 // pred_fallthru
          _
      $region132: #{forward.1} parent=5 // pred_fallthru
        _
    $region6: #{forward.1} parent=1 // loop_footer
      %s39 = sadd.s32 1, %s35
    $region7: #{forward.1} parent=1 // loop_footer_branch
      %34 = sbr.rel target = $region3
    $region8: #{forward.1} parent=1 // loop_exit
      _
    %3956 = vsyncpa [#allocation3], 1
    %s3957 = scalar_lea.sflag [#allocation3], 1
    %3958 = vsyncpa %s3957, 1

</llo_original>
